<compile_context>
chip_gen: v7x
topology: tpu7x:2x2x1
jax: 0.10.0
libtpu: 0.0.40
codegen_flags: <defaults>
</compile_context>

<pallas_src>
import functools

import jax
import jax.numpy as jnp
import numpy as np
from jax.experimental import pallas as pl
from jax.experimental.pallas import tpu as pltpu


def _choose_d_tile(D, L, itemsize, target_bytes=1 << 20, cap_bytes=2 << 20):
    """Exact divisor of D (no padding). Prefers multiple-of-128 tiles of ~1 MiB."""
    col_bytes = L * itemsize
    if D % 128 != 0 or D * col_bytes <= cap_bytes:
        # Full-D blocks (only legal choice when D is not a multiple of 128;
        # lane-dense stores need D to be a multiple of 128).
        return D
    cands = [m for m in range(128, D, 128)
             if D % m == 0 and m * col_bytes <= cap_bytes]
    if not cands:
        return 128
    good = [c for c in cands if c * col_bytes >= target_bytes]
    return min(good) if good else max(cands)


def _shift_kernel(x_ref, w1_ref, b1_ref, w2_ref, b2_ref, w3_ref, b3_ref,
                  w4_ref, b4_ref, o_ref, *, seq_len):
    L = seq_len

    # ---- shift-prediction MLP on the transposed (d_tile, L) view -----------
    # In-VMEM transpose (XLU) puts the time axis on lanes; the transposed tile
    # is consumed by the first matmul and does not stay live across the MLP.
    xt = jnp.transpose(x_ref[...].astype(jnp.float32))            # (d, L)
    h = jnp.maximum(
        jnp.dot(xt, w1_ref[...], preferred_element_type=jnp.float32) + b1_ref[...],
        0.0)
    h = jnp.maximum(
        jnp.dot(h, w2_ref[...], preferred_element_type=jnp.float32) + b2_ref[...],
        0.0)
    h = jnp.maximum(
        jnp.dot(h, w3_ref[...], preferred_element_type=jnp.float32) + b3_ref[...],
        0.0)
    # Final (L//8 -> 1) layer as a VPU multiply + lane reduce (no 1-lane matmul).
    logit = jnp.sum(h * w4_ref[...], axis=-1, keepdims=True) + b4_ref[...]   # (d, 1)
    shift_f = jax.nn.sigmoid(logit) * float(L)
    s = jnp.round(shift_f).astype(jnp.int32)                      # per-row roll
    if L & (L - 1) == 0:                                          # power-of-two L
        s = jnp.bitwise_and(s, L - 1)
    else:
        s = jnp.mod(s, L)

    # ---- per-row circular roll of the time axis: log2(L) barrel shifter ----
    # Fresh load + transpose of the tile (shorter live ranges: the MLP
    # intermediates are dead before the roll/select chain).
    y = jnp.transpose(x_ref[...].astype(jnp.float32))             # (d, L)
    nbits = max(1, (L - 1).bit_length())
    for i in range(nbits):
        rolled = pltpu.roll(y, 1 << i, axis=1)    # static XLU lane rotation
        take = ((s >> i) & 1) > 0                 # (d, 1) bool, broadcast over L
        y = jnp.where(take, rolled, y)

    # Transpose back to the original (L, d_tile) layout and store.
    o_ref[...] = jnp.transpose(y).astype(o_ref.dtype)


def shift_forward(x, params):
    """x: (B, L, D) float32 -> (B, L, D). Permute is folded into the kernel."""
    B, L, D = x.shape
    w1, b1, w2, b2, w3, b3, w4, b4 = (
        params["w1"], params["b1"], params["w2"], params["b2"],
        params["w3"], params["b3"], params["w4"], params["b4"])
    w4t = w4.T                                    # (1, L//8) lane-resident row

    itemsize = x.dtype.itemsize
    d_tile = _choose_d_tile(D, L, itemsize)
    n_d = D // d_tile                             # exact: no HBM padding pass
    grid = (B, n_d)

    block_bytes = L * d_tile * itemsize
    weight_bytes = sum(int(a.size) * a.dtype.itemsize
                       for a in (w1, b1, w2, b2, w3, b3, w4t, b4))
    # in+out double-buffered (4x block) + in-kernel transposed/rolled temporaries
    # (~4x block) + double-buffered weights + headroom; at least the 32 MiB
    # v6e/v7x scoped default (raises v5e's 16 MiB), capped at v7x's 64 MiB/TC.
    vmem_limit = int(min(64 << 20,
                         max(32 << 20,
                             8 * block_bytes + 2 * weight_bytes + (4 << 20))))

    def const_spec(a):
        return pl.BlockSpec(a.shape, lambda b, d, _nd=a.ndim: (0,) * _nd)

    x_spec = pl.BlockSpec((None, L, d_tile), lambda b, d: (b, 0, d))
    o_spec = pl.BlockSpec((None, L, d_tile), lambda b, d: (b, 0, d))

    return pl.pallas_call(
        functools.partial(_shift_kernel, seq_len=L),
        out_shape=jax.ShapeDtypeStruct((B, L, D), x.dtype),
        grid_spec=pltpu.PrefetchScalarGridSpec(
            num_scalar_prefetch=0,
            grid=grid,
            in_specs=[
                x_spec,
                const_spec(w1), const_spec(b1),
                const_spec(w2), const_spec(b2),
                const_spec(w3), const_spec(b3),
                const_spec(w4t), const_spec(b4),
            ],
            out_specs=o_spec,
        ),
        compiler_params=pltpu.CompilerParams(
            dimension_semantics=("parallel", "parallel"),
            vmem_limit_bytes=vmem_limit),
    )(x, w1, b1, w2, b2, w3, b3, w4t, b4)


def init_params(key, seq_len):
    """Deterministic synthetic init mimicking nn.Linear default (uniform +/-1/sqrt(fan_in))."""
    dims = [seq_len, seq_len // 2, seq_len // 4, seq_len // 8, 1]
    params = {}
    keys = jax.random.split(key, 8)
    for i in range(4):
        fan_in, fan_out = dims[i], dims[i + 1]
        bound = 1.0 / jnp.sqrt(jnp.float32(fan_in))
        params[f"w{i+1}"] = jax.random.uniform(
            keys[2 * i], (fan_in, fan_out), jnp.float32, -bound, bound)
        params[f"b{i+1}"] = jax.random.uniform(
            keys[2 * i + 1], (1, fan_out), jnp.float32, -bound, bound)
    return params


def reference_forward(x, params):
    """Pure-JAX reference of the PyTorch forward. Returns (y, float_shift (B, D))."""
    B, L, D = x.shape
    hp = jax.lax.Precision.HIGHEST
    xp = jnp.transpose(x, (0, 2, 1))                              # (B, D, L)
    h = jax.nn.relu(jnp.matmul(xp, params["w1"], precision=hp) + params["b1"])
    h = jax.nn.relu(jnp.matmul(h, params["w2"], precision=hp) + params["b2"])
    h = jax.nn.relu(jnp.matmul(h, params["w3"], precision=hp) + params["b3"])
    logit = jnp.matmul(h, params["w4"], precision=hp) + params["b4"]   # (B, D, 1)
    shift_f = jax.nn.sigmoid(logit)[..., 0] * L                   # (B, D) float
    s = jnp.round(shift_f).astype(jnp.int32)
    l_idx = jnp.arange(L)[None, :, None]                          # (1, L, 1)
    src = jnp.mod(l_idx - s[:, None, :], L)                       # (B, L, D)
    return jnp.take_along_axis(x, src, axis=1), shift_f


if __name__ == "__main__":
    # Small demo shape: D a multiple of 128 keeps blocks lane-dense; B=2 gives
    # both v7x TensorCores a grid step.
    B, L, D = 2, 128, 256
    key = jax.random.PRNGKey(0)
    kx, kp = jax.random.split(key)
    x = jax.random.normal(kx, (B, L, D), jnp.float32)
    params = init_params(kp, L)

    y = jax.block_until_ready(shift_forward(x, params))
    _, shift_f_ref = reference_forward(x, params)
    shift_f_ref = np.asarray(jax.block_until_ready(shift_f_ref))

    # Tolerance-aware check on the INTEGER shifts (per review): recover each
    # (b, d) column's actual circular shift and verify it rounds from a value
    # within tolerance of the f32 reference shift predictor.  This avoids
    # spurious failures from matmul-precision .5-boundary flips while still
    # proving the roll semantics are exact.
    x_np, y_np = np.asarray(x), np.asarray(y)
    idx = (np.arange(L)[None, :] - np.arange(L)[:, None]) % L     # idx[c, l] = (l-c)%L
    for b in range(B):
        for d in range(D):
            col_x, col_y = x_np[b, :, d], y_np[b, :, d]
            rolls = col_x[idx]                                    # rolls[c] = roll(col_x, c)
            hits = np.nonzero((rolls == col_y[None, :]).all(axis=1))[0]
            assert hits.size >= 1, f"column ({b},{d}) is not a circular roll of the input"
            k = int(hits[0])
            err = abs((k - shift_f_ref[b, d] + L / 2.0) % L - L / 2.0)
            assert err <= 0.5 + 0.05, \
                f"shift mismatch at ({b},{d}): got {k}, reference {shift_f_ref[b, d]:.4f}"

    print("KERNEL_OK")
</pallas_src>

<mosaic_0001>
module attributes {stable_mosaic.version = 11 : i64} {
  func.func @_shift_kernel(%arg0: i32, %arg1: i32, %arg2: memref<1x128x256xf32, #tpu.memory_space<vmem>>, %arg3: memref<128x64xf32, #tpu.memory_space<vmem>>, %arg4: memref<1x64xf32, #tpu.memory_space<vmem>>, %arg5: memref<64x32xf32, #tpu.memory_space<vmem>>, %arg6: memref<1x32xf32, #tpu.memory_space<vmem>>, %arg7: memref<32x16xf32, #tpu.memory_space<vmem>>, %arg8: memref<1x16xf32, #tpu.memory_space<vmem>>, %arg9: memref<1x16xf32, #tpu.memory_space<vmem>>, %arg10: memref<1x1xf32, #tpu.memory_space<vmem>>, %arg11: memref<1x128x256xf32, #tpu.memory_space<vmem>>) attributes {dimension_semantics = [#tpu.dimension_semantics<parallel>, #tpu.dimension_semantics<parallel>], iteration_bounds = array<i64: 2, 1>, scalar_prefetch = 0 : i64, scratch_operands = 0 : i64, tpu.core_type = #tpu.core_type<tc>, window_params = [{transform_indices = @transform_0, window_bounds = array<i64: 1, 128, 256>}, {pipeline_mode = #tpu.pipeline_mode<synchronous>, transform_indices = @transform_1, window_bounds = array<i64: 128, 64>}, {pipeline_mode = #tpu.pipeline_mode<synchronous>, transform_indices = @transform_2, window_bounds = array<i64: 1, 64>}, {pipeline_mode = #tpu.pipeline_mode<synchronous>, transform_indices = @transform_3, window_bounds = array<i64: 64, 32>}, {pipeline_mode = #tpu.pipeline_mode<synchronous>, transform_indices = @transform_4, window_bounds = array<i64: 1, 32>}, {pipeline_mode = #tpu.pipeline_mode<synchronous>, transform_indices = @transform_5, window_bounds = array<i64: 32, 16>}, {pipeline_mode = #tpu.pipeline_mode<synchronous>, transform_indices = @transform_6, window_bounds = array<i64: 1, 16>}, {pipeline_mode = #tpu.pipeline_mode<synchronous>, transform_indices = @transform_7, window_bounds = array<i64: 1, 16>}, {pipeline_mode = #tpu.pipeline_mode<synchronous>, transform_indices = @transform_8, window_bounds = array<i64: 1, 1>}, {transform_indices = @transform_9, window_bounds = array<i64: 1, 128, 256>}]} {
    %c0 = arith.constant 0 : index
    %c0_0 = arith.constant 0 : index
    %c0_1 = arith.constant 0 : index
    %0 = vector.load %arg2[%c0, %c0_0, %c0_1] : memref<1x128x256xf32, #tpu.memory_space<vmem>>, vector<1x128x256xf32>
    %1 = vector.shape_cast %0 : vector<1x128x256xf32> to vector<128x256xf32>
    %2 = tpu.transpose %1, [1, 0] : vector<128x256xf32> -> vector<256x128xf32>
    %c0_2 = arith.constant 0 : index
    %c0_3 = arith.constant 0 : index
    %3 = vector.load %arg3[%c0_2, %c0_3] : memref<128x64xf32, #tpu.memory_space<vmem>>, vector<128x64xf32>
    %cst = arith.constant dense<0.000000e+00> : vector<256x64xf32>
    %4 = tpu.matmul %2, %3, %cst {dimension_numbers = #tpu.dot_dimension_numbers<[1], [0], [0], [1], [0, 0, 1, 1], [], []>} : vector<256x128xf32>, vector<128x64xf32>, vector<256x64xf32> -> vector<256x64xf32>
    %c0_4 = arith.constant 0 : index
    %c0_5 = arith.constant 0 : index
    %5 = vector.load %arg4[%c0_4, %c0_5] : memref<1x64xf32, #tpu.memory_space<vmem>>, vector<1x64xf32>
    %6 = vector.broadcast %5 : vector<1x64xf32> to vector<256x64xf32>
    %7 = arith.addf %4, %6 : vector<256x64xf32>
    %cst_6 = arith.constant 0.000000e+00 : f32
    %8 = vector.broadcast %cst_6 : f32 to vector<256x64xf32>
    %9 = arith.maximumf %7, %8 : vector<256x64xf32>
    %c0_7 = arith.constant 0 : index
    %c0_8 = arith.constant 0 : index
    %10 = vector.load %arg5[%c0_7, %c0_8] : memref<64x32xf32, #tpu.memory_space<vmem>>, vector<64x32xf32>
    %cst_9 = arith.constant dense<0.000000e+00> : vector<256x32xf32>
    %11 = tpu.matmul %9, %10, %cst_9 {dimension_numbers = #tpu.dot_dimension_numbers<[1], [0], [0], [1], [0, 0, 1, 1], [], []>} : vector<256x64xf32>, vector<64x32xf32>, vector<256x32xf32> -> vector<256x32xf32>
    %c0_10 = arith.constant 0 : index
    %c0_11 = arith.constant 0 : index
    %12 = vector.load %arg6[%c0_10, %c0_11] : memref<1x32xf32, #tpu.memory_space<vmem>>, vector<1x32xf32>
    %13 = vector.broadcast %12 : vector<1x32xf32> to vector<256x32xf32>
    %14 = arith.addf %11, %13 : vector<256x32xf32>
    %cst_12 = arith.constant 0.000000e+00 : f32
    %15 = vector.broadcast %cst_12 : f32 to vector<256x32xf32>
    %16 = arith.maximumf %14, %15 : vector<256x32xf32>
    %c0_13 = arith.constant 0 : index
    %c0_14 = arith.constant 0 : index
    %17 = vector.load %arg7[%c0_13, %c0_14] : memref<32x16xf32, #tpu.memory_space<vmem>>, vector<32x16xf32>
    %cst_15 = arith.constant dense<0.000000e+00> : vector<256x16xf32>
    %18 = tpu.matmul %16, %17, %cst_15 {dimension_numbers = #tpu.dot_dimension_numbers<[1], [0], [0], [1], [0, 0, 1, 1], [], []>} : vector<256x32xf32>, vector<32x16xf32>, vector<256x16xf32> -> vector<256x16xf32>
    %c0_16 = arith.constant 0 : index
    %c0_17 = arith.constant 0 : index
    %19 = vector.load %arg8[%c0_16, %c0_17] : memref<1x16xf32, #tpu.memory_space<vmem>>, vector<1x16xf32>
    %20 = vector.broadcast %19 : vector<1x16xf32> to vector<256x16xf32>
    %21 = arith.addf %18, %20 : vector<256x16xf32>
    %cst_18 = arith.constant 0.000000e+00 : f32
    %22 = vector.broadcast %cst_18 : f32 to vector<256x16xf32>
    %23 = arith.maximumf %21, %22 : vector<256x16xf32>
    %c0_19 = arith.constant 0 : index
    %c0_20 = arith.constant 0 : index
    %24 = vector.load %arg9[%c0_19, %c0_20] : memref<1x16xf32, #tpu.memory_space<vmem>>, vector<1x16xf32>
    %25 = vector.broadcast %24 : vector<1x16xf32> to vector<256x16xf32>
    %26 = arith.mulf %23, %25 : vector<256x16xf32>
    %cst_21 = arith.constant dense<0.000000e+00> : vector<256xf32>
    %27 = vector.multi_reduction <add>, %26, %cst_21 [1] : vector<256x16xf32> to vector<256xf32>
    %28 = vector.shape_cast %27 : vector<256xf32> to vector<256x1xf32>
    %c0_22 = arith.constant 0 : index
    %c0_23 = arith.constant 0 : index
    %29 = vector.load %arg10[%c0_22, %c0_23] : memref<1x1xf32, #tpu.memory_space<vmem>>, vector<1x1xf32>
    %30 = vector.broadcast %29 : vector<1x1xf32> to vector<256x1xf32>
    %31 = arith.addf %28, %30 : vector<256x1xf32>
    %32 = arith.negf %31 : vector<256x1xf32>
    %33 = math.exp %32 : vector<256x1xf32>
    %cst_24 = arith.constant 1.000000e+00 : f32
    %34 = vector.broadcast %cst_24 : f32 to vector<256x1xf32>
    %35 = arith.addf %34, %33 : vector<256x1xf32>
    %36 = arith.divf %34, %35 : vector<256x1xf32>
    %cst_25 = arith.constant 1.280000e+02 : f32
    %37 = vector.broadcast %cst_25 : f32 to vector<256x1xf32>
    %38 = arith.mulf %36, %37 : vector<256x1xf32>
    %39 = math.roundeven %38 : vector<256x1xf32>
    %40 = arith.fptosi %39 : vector<256x1xf32> to vector<256x1xi32>
    %c127_i32 = arith.constant 127 : i32
    %41 = vector.broadcast %c127_i32 : i32 to vector<256x1xi32>
    %42 = arith.andi %40, %41 : vector<256x1xi32>
    %c0_26 = arith.constant 0 : index
    %c0_27 = arith.constant 0 : index
    %c0_28 = arith.constant 0 : index
    %43 = vector.load %arg2[%c0_26, %c0_27, %c0_28] : memref<1x128x256xf32, #tpu.memory_space<vmem>>, vector<1x128x256xf32>
    %44 = vector.shape_cast %43 : vector<1x128x256xf32> to vector<128x256xf32>
    %45 = tpu.transpose %44, [1, 0] : vector<128x256xf32> -> vector<256x128xf32>
    %c1_i32 = arith.constant 1 : i32
    %46 = tpu.dynamic_rotate %45 by %c1_i32 dim 1 : vector<256x128xf32>, i32 -> vector<256x128xf32>
    %c0_i32 = arith.constant 0 : i32
    %47 = vector.broadcast %c0_i32 : i32 to vector<256x1xi32>
    %48 = arith.shrsi %42, %47 : vector<256x1xi32>
    %c1_i32_29 = arith.constant 1 : i32
    %49 = vector.broadcast %c1_i32_29 : i32 to vector<256x1xi32>
    %50 = arith.andi %48, %49 : vector<256x1xi32>
    %c0_i32_30 = arith.constant 0 : i32
    %51 = vector.broadcast %c0_i32_30 : i32 to vector<256x1xi32>
    %52 = arith.cmpi sgt, %50, %51 : vector<256x1xi32>
    %53 = vector.shape_cast %52 : vector<256x1xi1> to vector<256x1xi1>
    %54 = vector.broadcast %53 : vector<256x1xi1> to vector<256x128xi1>
    %55 = arith.select %54, %46, %45 : vector<256x128xi1>, vector<256x128xf32>
    %c2_i32 = arith.constant 2 : i32
    %56 = tpu.dynamic_rotate %55 by %c2_i32 dim 1 : vector<256x128xf32>, i32 -> vector<256x128xf32>
    %c1_i32_31 = arith.constant 1 : i32
    %57 = vector.broadcast %c1_i32_31 : i32 to vector<256x1xi32>
    %58 = arith.shrsi %42, %57 : vector<256x1xi32>
    %c1_i32_32 = arith.constant 1 : i32
    %59 = vector.broadcast %c1_i32_32 : i32 to vector<256x1xi32>
    %60 = arith.andi %58, %59 : vector<256x1xi32>
    %c0_i32_33 = arith.constant 0 : i32
    %61 = vector.broadcast %c0_i32_33 : i32 to vector<256x1xi32>
    %62 = arith.cmpi sgt, %60, %61 : vector<256x1xi32>
    %63 = vector.shape_cast %62 : vector<256x1xi1> to vector<256x1xi1>
    %64 = vector.broadcast %63 : vector<256x1xi1> to vector<256x128xi1>
    %65 = arith.select %64, %56, %55 : vector<256x128xi1>, vector<256x128xf32>
    %c4_i32 = arith.constant 4 : i32
    %66 = tpu.dynamic_rotate %65 by %c4_i32 dim 1 : vector<256x128xf32>, i32 -> vector<256x128xf32>
    %c2_i32_34 = arith.constant 2 : i32
    %67 = vector.broadcast %c2_i32_34 : i32 to vector<256x1xi32>
    %68 = arith.shrsi %42, %67 : vector<256x1xi32>
    %c1_i32_35 = arith.constant 1 : i32
    %69 = vector.broadcast %c1_i32_35 : i32 to vector<256x1xi32>
    %70 = arith.andi %68, %69 : vector<256x1xi32>
    %c0_i32_36 = arith.constant 0 : i32
    %71 = vector.broadcast %c0_i32_36 : i32 to vector<256x1xi32>
    %72 = arith.cmpi sgt, %70, %71 : vector<256x1xi32>
    %73 = vector.shape_cast %72 : vector<256x1xi1> to vector<256x1xi1>
    %74 = vector.broadcast %73 : vector<256x1xi1> to vector<256x128xi1>
    %75 = arith.select %74, %66, %65 : vector<256x128xi1>, vector<256x128xf32>
    %c8_i32 = arith.constant 8 : i32
    %76 = tpu.dynamic_rotate %75 by %c8_i32 dim 1 : vector<256x128xf32>, i32 -> vector<256x128xf32>
    %c3_i32 = arith.constant 3 : i32
    %77 = vector.broadcast %c3_i32 : i32 to vector<256x1xi32>
    %78 = arith.shrsi %42, %77 : vector<256x1xi32>
    %c1_i32_37 = arith.constant 1 : i32
    %79 = vector.broadcast %c1_i32_37 : i32 to vector<256x1xi32>
    %80 = arith.andi %78, %79 : vector<256x1xi32>
    %c0_i32_38 = arith.constant 0 : i32
    %81 = vector.broadcast %c0_i32_38 : i32 to vector<256x1xi32>
    %82 = arith.cmpi sgt, %80, %81 : vector<256x1xi32>
    %83 = vector.shape_cast %82 : vector<256x1xi1> to vector<256x1xi1>
    %84 = vector.broadcast %83 : vector<256x1xi1> to vector<256x128xi1>
    %85 = arith.select %84, %76, %75 : vector<256x128xi1>, vector<256x128xf32>
    %c16_i32 = arith.constant 16 : i32
    %86 = tpu.dynamic_rotate %85 by %c16_i32 dim 1 : vector<256x128xf32>, i32 -> vector<256x128xf32>
    %c4_i32_39 = arith.constant 4 : i32
    %87 = vector.broadcast %c4_i32_39 : i32 to vector<256x1xi32>
    %88 = arith.shrsi %42, %87 : vector<256x1xi32>
    %c1_i32_40 = arith.constant 1 : i32
    %89 = vector.broadcast %c1_i32_40 : i32 to vector<256x1xi32>
    %90 = arith.andi %88, %89 : vector<256x1xi32>
    %c0_i32_41 = arith.constant 0 : i32
    %91 = vector.broadcast %c0_i32_41 : i32 to vector<256x1xi32>
    %92 = arith.cmpi sgt, %90, %91 : vector<256x1xi32>
    %93 = vector.shape_cast %92 : vector<256x1xi1> to vector<256x1xi1>
    %94 = vector.broadcast %93 : vector<256x1xi1> to vector<256x128xi1>
    %95 = arith.select %94, %86, %85 : vector<256x128xi1>, vector<256x128xf32>
    %c32_i32 = arith.constant 32 : i32
    %96 = tpu.dynamic_rotate %95 by %c32_i32 dim 1 : vector<256x128xf32>, i32 -> vector<256x128xf32>
    %c5_i32 = arith.constant 5 : i32
    %97 = vector.broadcast %c5_i32 : i32 to vector<256x1xi32>
    %98 = arith.shrsi %42, %97 : vector<256x1xi32>
    %c1_i32_42 = arith.constant 1 : i32
    %99 = vector.broadcast %c1_i32_42 : i32 to vector<256x1xi32>
    %100 = arith.andi %98, %99 : vector<256x1xi32>
    %c0_i32_43 = arith.constant 0 : i32
    %101 = vector.broadcast %c0_i32_43 : i32 to vector<256x1xi32>
    %102 = arith.cmpi sgt, %100, %101 : vector<256x1xi32>
    %103 = vector.shape_cast %102 : vector<256x1xi1> to vector<256x1xi1>
    %104 = vector.broadcast %103 : vector<256x1xi1> to vector<256x128xi1>
    %105 = arith.select %104, %96, %95 : vector<256x128xi1>, vector<256x128xf32>
    %c64_i32 = arith.constant 64 : i32
    %106 = tpu.dynamic_rotate %105 by %c64_i32 dim 1 : vector<256x128xf32>, i32 -> vector<256x128xf32>
    %c6_i32 = arith.constant 6 : i32
    %107 = vector.broadcast %c6_i32 : i32 to vector<256x1xi32>
    %108 = arith.shrsi %42, %107 : vector<256x1xi32>
    %c1_i32_44 = arith.constant 1 : i32
    %109 = vector.broadcast %c1_i32_44 : i32 to vector<256x1xi32>
    %110 = arith.andi %108, %109 : vector<256x1xi32>
    %c0_i32_45 = arith.constant 0 : i32
    %111 = vector.broadcast %c0_i32_45 : i32 to vector<256x1xi32>
    %112 = arith.cmpi sgt, %110, %111 : vector<256x1xi32>
    %113 = vector.shape_cast %112 : vector<256x1xi1> to vector<256x1xi1>
    %114 = vector.broadcast %113 : vector<256x1xi1> to vector<256x128xi1>
    %115 = arith.select %114, %106, %105 : vector<256x128xi1>, vector<256x128xf32>
    %116 = tpu.transpose %115, [1, 0] : vector<256x128xf32> -> vector<128x256xf32>
    %c0_46 = arith.constant 0 : index
    %c0_47 = arith.constant 0 : index
    %c0_48 = arith.constant 0 : index
    %117 = vector.load %arg11[%c0_46, %c0_47, %c0_48] : memref<1x128x256xf32, #tpu.memory_space<vmem>>, vector<1x128x256xf32>
    %118 = vector.shape_cast %117 : vector<1x128x256xf32> to vector<128x256xf32>
    %119 = vector.shape_cast %116 : vector<128x256xf32> to vector<1x128x256xf32>
    tpu.vector_store %arg11[%c0_46, %c0_47, %c0_48], %119 {strides = array<i32>} : memref<1x128x256xf32, #tpu.memory_space<vmem>>, vector<1x128x256xf32>,
    return
  }
  func.func @transform_0(%arg0: i32, %arg1: i32) -> (i32, i32, i32) {
    %c0_i32 = arith.constant 0 : i32
    %c0_i32_0 = arith.constant 0 : i32
    return %arg0, %c0_i32, %arg1 : i32, i32, i32
  }
  func.func @transform_1(%arg0: i32, %arg1: i32) -> (i32, i32) {
    %c0_i32 = arith.constant 0 : i32
    %c0_i32_0 = arith.constant 0 : i32
    %c0_i32_1 = arith.constant 0 : i32
    return %c0_i32, %c0_i32_0 : i32, i32
  }
  func.func @transform_2(%arg0: i32, %arg1: i32) -> (i32, i32) {
    %c0_i32 = arith.constant 0 : i32
    %c0_i32_0 = arith.constant 0 : i32
    %c0_i32_1 = arith.constant 0 : i32
    return %c0_i32, %c0_i32_0 : i32, i32
  }
  func.func @transform_3(%arg0: i32, %arg1: i32) -> (i32, i32) {
    %c0_i32 = arith.constant 0 : i32
    %c0_i32_0 = arith.constant 0 : i32
    %c0_i32_1 = arith.constant 0 : i32
    return %c0_i32, %c0_i32_0 : i32, i32
  }
  func.func @transform_4(%arg0: i32, %arg1: i32) -> (i32, i32) {
    %c0_i32 = arith.constant 0 : i32
    %c0_i32_0 = arith.constant 0 : i32
    %c0_i32_1 = arith.constant 0 : i32
    return %c0_i32, %c0_i32_0 : i32, i32
  }
  func.func @transform_5(%arg0: i32, %arg1: i32) -> (i32, i32) {
    %c0_i32 = arith.constant 0 : i32
    %c0_i32_0 = arith.constant 0 : i32
    %c0_i32_1 = arith.constant 0 : i32
    return %c0_i32, %c0_i32_0 : i32, i32
  }
  func.func @transform_6(%arg0: i32, %arg1: i32) -> (i32, i32) {
    %c0_i32 = arith.constant 0 : i32
    %c0_i32_0 = arith.constant 0 : i32
    %c0_i32_1 = arith.constant 0 : i32
    return %c0_i32, %c0_i32_0 : i32, i32
  }
  func.func @transform_7(%arg0: i32, %arg1: i32) -> (i32, i32) {
    %c0_i32 = arith.constant 0 : i32
    %c0_i32_0 = arith.constant 0 : i32
    %c0_i32_1 = arith.constant 0 : i32
    return %c0_i32, %c0_i32_0 : i32, i32
  }
  func.func @transform_8(%arg0: i32, %arg1: i32) -> (i32, i32) {
    %c0_i32 = arith.constant 0 : i32
    %c0_i32_0 = arith.constant 0 : i32
    %c0_i32_1 = arith.constant 0 : i32
    return %c0_i32, %c0_i32_0 : i32, i32
  }
  func.func @transform_9(%arg0: i32, %arg1: i32) -> (i32, i32, i32) {
    %c0_i32 = arith.constant 0 : i32
    %c0_i32_0 = arith.constant 0 : i32
    return %arg0, %c0_i32, %arg1 : i32, i32, i32
  }
}

</mosaic_0001>

<llo_original>
// kernel: tpu_custom_call.1
$region0: #{tpu_custom_call.1}
  #allocation0 [shape = 'u32[]', space=smem, size = 0x4, offset = 0x4, fixed_abs, tag = 'smem constant byte address 0x4 - core index']
  #allocation1 [shape = 'u32[144,128]{1,0:T(1,128)}', space=vmem, size = 0x12000, scoped, tag = 'internal scratch']
  #allocation2 [shape = 'f32[1,1]{1,0:T(1,128)S(1)}', space=vmem, size = 0x200, scoped, tag = 'scoped memory for tpu_custom_call.1']
  %s0 = inlined_call_operand.hbm [shape: f32[2,128,256], index: 0, kind: input, shape index: {}]
  %s1 = inlined_call_operand.vmem [shape: f32[128,64], index: 1, kind: input, shape index: {}]
  %s2 = inlined_call_operand.vmem [shape: f32[1,64], index: 2, kind: input, shape index: {}]
  %s3 = inlined_call_operand.vmem [shape: f32[64,32], index: 3, kind: input, shape index: {}]
  %s4 = inlined_call_operand.vmem [shape: f32[1,32], index: 4, kind: input, shape index: {}]
  %s5 = inlined_call_operand.vmem [shape: f32[32,16], index: 5, kind: input, shape index: {}]
  %s6 = inlined_call_operand.vmem [shape: f32[1,16], index: 6, kind: input, shape index: {}]
  %s7 = inlined_call_operand.vmem [shape: f32[1,16], index: 7, kind: input, shape index: {}]
  %s8 = inlined_call_operand.<no memory space> [shape: f32[1,1], index: 8, kind: input, shape index: {}]
  %s9 = inlined_call_operand.hbm [shape: f32[2,128,256], index: 9, kind: output, shape index: {}]
  %s10 = sld [smem:[#allocation0]]
  $region73: #{tpu_custom_call.1} parent=0
    _
  %s12 = ssub.s32 1, %s10
  %s13 = scalar_select 0, %s12, %s10
  %v14 = vstv %s8
  %15 = vst [vmem:[#allocation2] sm:$0x1] %v14
  $region1: #{tpu_custom_call.1} parent=0
    #allocation3 [shape = 'u8[262144]{0}', space=vmem, size = 0x40000, scoped, tag = 'input window, operand 0']
    #allocation4 [shape = 's32[2]{0}', space=sflag, size = 0x8, scoped, tag = 'scoped memory for tpu_custom_call.1']
    #allocation5 [shape = 's32[2]{0}', space=sflag, size = 0x8, scoped, tag = 'scoped memory for tpu_custom_call.1']
    #allocation6 [shape = 'u8[262144]{0}', space=vmem, size = 0x40000, scoped, tag = 'output window, operand 0']
    %16 = vsyncpa [#allocation4], 0
    %s17 = scalar_lea.sflag [#allocation4], 1
    %18 = vsyncpa %s17, 0
    %19 = vsyncpa [#allocation5], 0
    %s20 = scalar_lea.sflag [#allocation5], 1
    %21 = vsyncpa %s20, 0
    loop: start=0, step=1, limit=4
    $region2: #{tpu_custom_call.1} parent=1 // loop_pre_header
      _
    $region3: #{tpu_custom_call.1} parent=1 // loop_header
      %s23 = sphi 0, %s27
      %p24 = scmp.ge.s32.totalorder %s23, 4
      %s30 = sphi 0, %s42
      %s31 = sphi 0, %s38
      %s32 = sphi 0, %s30
      %s33 = sphi 0, %s31
      %s34 = sphi 0, %s32
      %s35 = sphi 0, %s33
      %s47 = sphi 0, %s49
      %s50 = sphi 0, %s47
      %s51 = sphi 0, %s50
      %s67 = sphi 0, %s51
      %s71 = sphi 0, %s71
      %s73 = sphi 0, %s71
      %s74 = sphi 0, %s73
      %s88 = sphi 0, %s74
      %s92 = sphi 0, %s92
      %s94 = sphi 0, %s92
      %s95 = sphi 0, %s94
      %s109 = sphi 0, %s95
      %s113 = sphi 0, %s113
      %s115 = sphi 0, %s113
      %s116 = sphi 0, %s115
      %s130 = sphi 0, %s116
      %s134 = sphi 0, %s134
      %s136 = sphi 0, %s134
      %s137 = sphi 0, %s136
      %s151 = sphi 0, %s137
      %s155 = sphi 0, %s155
      %s157 = sphi 0, %s155
      %s158 = sphi 0, %s157
      %s172 = sphi 0, %s158
      %s176 = sphi 0, %s176
      %s178 = sphi 0, %s176
      %s179 = sphi 0, %s178
      %s193 = sphi 0, %s179
      %s197 = sphi 0, %s197
      %s199 = sphi 0, %s197
      %s200 = sphi 0, %s199
      %s214 = sphi 0, %s200
      %s218 = sphi 0, %s218
      %s220 = sphi 0, %s218
      %s221 = sphi 0, %s220
      %s235 = sphi 0, %s221
      %s243 = sphi 0, %s245
      %s246 = sphi 0, %s243
      %s247 = sphi 0, %s246
      %s263 = sphi 0, %s247
    $region4: #{tpu_custom_call.1} parent=1 // loop_header_branch
      %26 = sbr.rel (%p24) target = $region8
    $region5: #{tpu_custom_call.1} parent=1 // loop_body
      %s28 = ssub.s32 %s23, 1
      %s29 = ssub.s32 %s23, 2
      %s36 = sadd.s32 1, %s31
      %p37 = scmp.ge.s32.totalorder %s36, 1
      %s38 = scalar_select %p37, 0, %s36
      %s39 = sadd.s32 1, %s30
      %s40 = scalar_select %p37, %s39, %s30
      %p41 = scmp.ge.s32.totalorder %s40, 2
      %s42 = scalar_select %p41, 0, %s40
      %s43 = ssub.s32 %s30, %s42
      %s44 = ssub.s32 %s31, %s38
      %s45 = sor.u32 %s43, %s44
      %p46 = scmp.eq.s32.totalorder %s45, 0
      %s48 = sadd.s32 %s47, 1
      %s49 = scalar_select %p46, %s47, %s48
      %p52 = pneg %p46
      %p53 = scmp.eq.s32.totalorder %s23, 1
      %p54 = por %p52, %p53
      %p55 = scmp.ne.s32.totalorder %s47, %s50
      %p56 = scmp.eq.s32.totalorder %s23, 0
      %p57 = por %p55, %p56
      %p58 = scmp.ne.s32.totalorder %s47, %s50
      %p59 = scmp.eq.s32.totalorder %s28, 1
      %p60 = por %p58, %p59
      %p61 = scmp.ne.s32.totalorder %s50, %s51
      %p62 = scmp.eq.s32.totalorder %s28, 0
      %p63 = por %p61, %p62
      %p64 = scmp.ne.s32.totalorder %s50, %s51
      %p65 = scmp.eq.s32.totalorder %s29, 1
      %p66 = por %p64, %p65
      %p68 = scmp.ne.s32.totalorder %s51, %s67
      %p69 = scmp.eq.s32.totalorder %s29, 0
      %p70 = por %p68, %p69
      %s72 = sadd.s32 %s71, 1
      %p75 = scmp.eq.s32.totalorder %s23, 1
      %p76 = scmp.ne.s32.totalorder %s71, %s73
      %p77 = scmp.eq.s32.totalorder %s23, 0
      %p78 = por %p76, %p77
      %p79 = scmp.ne.s32.totalorder %s71, %s73
      %p80 = scmp.eq.s32.totalorder %s28, 1
      %p81 = por %p79, %p80
      %p82 = scmp.ne.s32.totalorder %s73, %s74
      %p83 = scmp.eq.s32.totalorder %s28, 0
      %p84 = por %p82, %p83
      %p85 = scmp.ne.s32.totalorder %s73, %s74
      %p86 = scmp.eq.s32.totalorder %s29, 1
      %p87 = por %p85, %p86
      %p89 = scmp.ne.s32.totalorder %s74, %s88
      %p90 = scmp.eq.s32.totalorder %s29, 0
      %p91 = por %p89, %p90
      %s93 = sadd.s32 %s92, 1
      %p96 = scmp.eq.s32.totalorder %s23, 1
      %p97 = scmp.ne.s32.totalorder %s92, %s94
      %p98 = scmp.eq.s32.totalorder %s23, 0
      %p99 = por %p97, %p98
      %p100 = scmp.ne.s32.totalorder %s92, %s94
      %p101 = scmp.eq.s32.totalorder %s28, 1
      %p102 = por %p100, %p101
      %p103 = scmp.ne.s32.totalorder %s94, %s95
      %p104 = scmp.eq.s32.totalorder %s28, 0
      %p105 = por %p103, %p104
      %p106 = scmp.ne.s32.totalorder %s94, %s95
      %p107 = scmp.eq.s32.totalorder %s29, 1
      %p108 = por %p106, %p107
      %p110 = scmp.ne.s32.totalorder %s95, %s109
      %p111 = scmp.eq.s32.totalorder %s29, 0
      %p112 = por %p110, %p111
      %s114 = sadd.s32 %s113, 1
      %p117 = scmp.eq.s32.totalorder %s23, 1
      %p118 = scmp.ne.s32.totalorder %s113, %s115
      %p119 = scmp.eq.s32.totalorder %s23, 0
      %p120 = por %p118, %p119
      %p121 = scmp.ne.s32.totalorder %s113, %s115
      %p122 = scmp.eq.s32.totalorder %s28, 1
      %p123 = por %p121, %p122
      %p124 = scmp.ne.s32.totalorder %s115, %s116
      %p125 = scmp.eq.s32.totalorder %s28, 0
      %p126 = por %p124, %p125
      %p127 = scmp.ne.s32.totalorder %s115, %s116
      %p128 = scmp.eq.s32.totalorder %s29, 1
      %p129 = por %p127, %p128
      %p131 = scmp.ne.s32.totalorder %s116, %s130
      %p132 = scmp.eq.s32.totalorder %s29, 0
      %p133 = por %p131, %p132
      %s135 = sadd.s32 %s134, 1
      %p138 = scmp.eq.s32.totalorder %s23, 1
      %p139 = scmp.ne.s32.totalorder %s134, %s136
      %p140 = scmp.eq.s32.totalorder %s23, 0
      %p141 = por %p139, %p140
      %p142 = scmp.ne.s32.totalorder %s134, %s136
      %p143 = scmp.eq.s32.totalorder %s28, 1
      %p144 = por %p142, %p143
      %p145 = scmp.ne.s32.totalorder %s136, %s137
      %p146 = scmp.eq.s32.totalorder %s28, 0
      %p147 = por %p145, %p146
      %p148 = scmp.ne.s32.totalorder %s136, %s137
      %p149 = scmp.eq.s32.totalorder %s29, 1
      %p150 = por %p148, %p149
      %p152 = scmp.ne.s32.totalorder %s137, %s151
      %p153 = scmp.eq.s32.totalorder %s29, 0
      %p154 = por %p152, %p153
      %s156 = sadd.s32 %s155, 1
      %p159 = scmp.eq.s32.totalorder %s23, 1
      %p160 = scmp.ne.s32.totalorder %s155, %s157
      %p161 = scmp.eq.s32.totalorder %s23, 0
      %p162 = por %p160, %p161
      %p163 = scmp.ne.s32.totalorder %s155, %s157
      %p164 = scmp.eq.s32.totalorder %s28, 1
      %p165 = por %p163, %p164
      %p166 = scmp.ne.s32.totalorder %s157, %s158
      %p167 = scmp.eq.s32.totalorder %s28, 0
      %p168 = por %p166, %p167
      %p169 = scmp.ne.s32.totalorder %s157, %s158
      %p170 = scmp.eq.s32.totalorder %s29, 1
      %p171 = por %p169, %p170
      %p173 = scmp.ne.s32.totalorder %s158, %s172
      %p174 = scmp.eq.s32.totalorder %s29, 0
      %p175 = por %p173, %p174
      %s177 = sadd.s32 %s176, 1
      %p180 = scmp.eq.s32.totalorder %s23, 1
      %p181 = scmp.ne.s32.totalorder %s176, %s178
      %p182 = scmp.eq.s32.totalorder %s23, 0
      %p183 = por %p181, %p182
      %p184 = scmp.ne.s32.totalorder %s176, %s178
      %p185 = scmp.eq.s32.totalorder %s28, 1
      %p186 = por %p184, %p185
      %p187 = scmp.ne.s32.totalorder %s178, %s179
      %p188 = scmp.eq.s32.totalorder %s28, 0
      %p189 = por %p187, %p188
      %p190 = scmp.ne.s32.totalorder %s178, %s179
      %p191 = scmp.eq.s32.totalorder %s29, 1
      %p192 = por %p190, %p191
      %p194 = scmp.ne.s32.totalorder %s179, %s193
      %p195 = scmp.eq.s32.totalorder %s29, 0
      %p196 = por %p194, %p195
      %s198 = sadd.s32 %s197, 1
      %p201 = scmp.eq.s32.totalorder %s23, 1
      %p202 = scmp.ne.s32.totalorder %s197, %s199
      %p203 = scmp.eq.s32.totalorder %s23, 0
      %p204 = por %p202, %p203
      %p205 = scmp.ne.s32.totalorder %s197, %s199
      %p206 = scmp.eq.s32.totalorder %s28, 1
      %p207 = por %p205, %p206
      %p208 = scmp.ne.s32.totalorder %s199, %s200
      %p209 = scmp.eq.s32.totalorder %s28, 0
      %p210 = por %p208, %p209
      %p211 = scmp.ne.s32.totalorder %s199, %s200
      %p212 = scmp.eq.s32.totalorder %s29, 1
      %p213 = por %p211, %p212
      %p215 = scmp.ne.s32.totalorder %s200, %s214
      %p216 = scmp.eq.s32.totalorder %s29, 0
      %p217 = por %p215, %p216
      %s219 = sadd.s32 %s218, 1
      %p222 = scmp.eq.s32.totalorder %s23, 1
      %p223 = scmp.ne.s32.totalorder %s218, %s220
      %p224 = scmp.eq.s32.totalorder %s23, 0
      %p225 = por %p223, %p224
      %p226 = scmp.ne.s32.totalorder %s218, %s220
      %p227 = scmp.eq.s32.totalorder %s28, 1
      %p228 = por %p226, %p227
      %p229 = scmp.ne.s32.totalorder %s220, %s221
      %p230 = scmp.eq.s32.totalorder %s28, 0
      %p231 = por %p229, %p230
      %p232 = scmp.ne.s32.totalorder %s220, %s221
      %p233 = scmp.eq.s32.totalorder %s29, 1
      %p234 = por %p232, %p233
      %p236 = scmp.ne.s32.totalorder %s221, %s235
      %p237 = scmp.eq.s32.totalorder %s29, 0
      %p238 = por %p236, %p237
      %s239 = ssub.s32 %s30, %s42
      %s240 = ssub.s32 %s31, %s38
      %s241 = sor.u32 %s239, %s240
      %p242 = scmp.eq.s32.totalorder %s241, 0
      %s244 = sadd.s32 %s243, 1
      %s245 = scalar_select %p242, %s243, %s244
      %p248 = pneg %p242
      %p249 = scmp.eq.s32.totalorder %s23, 1
      %p250 = por %p248, %p249
      %p251 = scmp.ne.s32.totalorder %s243, %s246
      %p252 = scmp.eq.s32.totalorder %s23, 0
      %p253 = por %p251, %p252
      %p254 = scmp.ne.s32.totalorder %s243, %s246
      %p255 = scmp.eq.s32.totalorder %s28, 1
      %p256 = por %p254, %p255
      %p257 = scmp.ne.s32.totalorder %s246, %s247
      %p258 = scmp.eq.s32.totalorder %s28, 0
      %p259 = por %p257, %p258
      %p260 = scmp.ne.s32.totalorder %s246, %s247
      %p261 = scmp.eq.s32.totalorder %s29, 1
      %p262 = por %p260, %p261
      %p264 = scmp.ne.s32.totalorder %s247, %s263
      %p265 = scmp.eq.s32.totalorder %s29, 0
      %p266 = por %p264, %p265
      %p267 = scmp.le.s32.totalorder 1, %s23
      %p268 = scmp.lt.s32.totalorder %s23, 3
      %p269 = pnand %p267, %p268
      %p270 = pneg %p269
      // Predicated region
      $region9: #{tpu_custom_call.1} parent=5 // pred_check
        _
      $region10: #{tpu_custom_call.1} parent=5 // pred_check_branch
        %272 = sbr.rel (%p269) target = $region12
      $region11: #{tpu_custom_call.1} parent=5 // pred_region
        %s273 = ssub.s32 %s23, 1
        // Predicated region
        $region13: #{tpu_custom_call.1} parent=11 // pred_check
          %p274 = pneg %p84
        $region14: #{tpu_custom_call.1} parent=11 // pred_check_branch
          %276 = sbr.rel (%p274) target = $region16
        $region15: #{tpu_custom_call.1} parent=11 // pred_region
          _
        $region16: #{tpu_custom_call.1} parent=11 // pred_fallthru
          _
        // Predicated region
        $region17: #{tpu_custom_call.1} parent=11 // pred_check
          %p277 = pneg %p105
        $region18: #{tpu_custom_call.1} parent=11 // pred_check_branch
          %279 = sbr.rel (%p277) target = $region20
        $region19: #{tpu_custom_call.1} parent=11 // pred_region
          _
        $region20: #{tpu_custom_call.1} parent=11 // pred_fallthru
          _
        // Predicated region
        $region21: #{tpu_custom_call.1} parent=11 // pred_check
          %p280 = pneg %p126
        $region22: #{tpu_custom_call.1} parent=11 // pred_check_branch
          %282 = sbr.rel (%p280) target = $region24
        $region23: #{tpu_custom_call.1} parent=11 // pred_region
          _
        $region24: #{tpu_custom_call.1} parent=11 // pred_fallthru
          _
        // Predicated region
        $region25: #{tpu_custom_call.1} parent=11 // pred_check
          %p283 = pneg %p147
        $region26: #{tpu_custom_call.1} parent=11 // pred_check_branch
          %285 = sbr.rel (%p283) target = $region28
        $region27: #{tpu_custom_call.1} parent=11 // pred_region
          _
        $region28: #{tpu_custom_call.1} parent=11 // pred_fallthru
          _
        // Predicated region
        $region29: #{tpu_custom_call.1} parent=11 // pred_check
          %p286 = pneg %p168
        $region30: #{tpu_custom_call.1} parent=11 // pred_check_branch
          %288 = sbr.rel (%p286) target = $region32
        $region31: #{tpu_custom_call.1} parent=11 // pred_region
          _
        $region32: #{tpu_custom_call.1} parent=11 // pred_fallthru
          _
        // Predicated region
        $region33: #{tpu_custom_call.1} parent=11 // pred_check
          %p289 = pneg %p189
        $region34: #{tpu_custom_call.1} parent=11 // pred_check_branch
          %291 = sbr.rel (%p289) target = $region36
        $region35: #{tpu_custom_call.1} parent=11 // pred_region
          _
        $region36: #{tpu_custom_call.1} parent=11 // pred_fallthru
          _
        // Predicated region
        $region37: #{tpu_custom_call.1} parent=11 // pred_check
          %p292 = pneg %p210
        $region38: #{tpu_custom_call.1} parent=11 // pred_check_branch
          %294 = sbr.rel (%p292) target = $region40
        $region39: #{tpu_custom_call.1} parent=11 // pred_region
          _
        $region40: #{tpu_custom_call.1} parent=11 // pred_fallthru
          _
        // Predicated region
        $region41: #{tpu_custom_call.1} parent=11 // pred_check
          %p295 = pneg %p231
        $region42: #{tpu_custom_call.1} parent=11 // pred_check_branch
          %297 = sbr.rel (%p295) target = $region44
        $region43: #{tpu_custom_call.1} parent=11 // pred_region
          _
        $region44: #{tpu_custom_call.1} parent=11 // pred_fallthru
          _
      $region12: #{tpu_custom_call.1} parent=5 // pred_fallthru
        _
      %p298 = scmp.lt.s32.totalorder %s23, 2
      // Predicated region
      $region45: #{tpu_custom_call.1} parent=5 // pred_check
        %p299 = pneg %p298
      $region46: #{tpu_custom_call.1} parent=5 // pred_check_branch
        %301 = sbr.rel (%p299) target = $region48
      $region47: #{tpu_custom_call.1} parent=5 // pred_region
        // Predicated region
        $region49: #{tpu_custom_call.1} parent=47 // pred_check
          %p302 = pneg %p57
        $region50: #{tpu_custom_call.1} parent=47 // pred_check_branch
          %304 = sbr.rel (%p302) target = $region52
        $region51: #{tpu_custom_call.1} parent=47 // pred_region
          %s305 = sand.u32 %s47, 1
          %s306 = scalar_lea.sflag [#allocation4], %s305
          %s307 = sand.u32 %s47, 1
          %s308 = smul.addr %s307, 256
          %s309 = scalar_lea.vmem [#allocation3], %s308
          %s310 = smul.u32 2, %s31
          %s312 = ssub.s32 4096, 4096
          %313 = vsyncadd %s306, %s312
          %s314 = smul.addr %s30, 32
          %s315 = sadd.s32 %s310, %s314
          %s316 = smul.addr %s315, 128
          %s317 = scalar_lea.hbm %s0, %s316
          %s318 = sshll.u32 %s309, 4
          %s319 = int_to_ptr.vmem [resolvable:$true] %s318
          %324 = dma.hbm_to_vmem [thread:$0]  %s317, 4096, %s319, %s306, 256, 256, 16
        $region52: #{tpu_custom_call.1} parent=47 // pred_fallthru
          _
      $region48: #{tpu_custom_call.1} parent=5 // pred_fallthru
        _
      %p325 = scmp.le.s32.totalorder 1, %s23
      %p326 = scmp.lt.s32.totalorder %s23, 3
      %p327 = pnand %p325, %p326
      %p328 = pneg %p327
      // Predicated region
      $region53: #{tpu_custom_call.1} parent=5 // pred_check
        _
      $region54: #{tpu_custom_call.1} parent=5 // pred_check_branch
        %330 = sbr.rel (%p327) target = $region56
      $region55: #{tpu_custom_call.1} parent=5 // pred_region
        %s331 = ssub.s32 %s23, 1
        %s332 = sand.u32 %s50, 1
        %s333 = scalar_lea.sflag [#allocation4], %s332
        %s334 = sand.u32 %s50, 1
        %s335 = smul.addr %s334, 256
        %s336 = scalar_lea.vmem [#allocation3], %s335
        // Predicated region
        $region57: #{tpu_custom_call.1} parent=55 // pred_check
          %p337 = pneg %p63
        $region58: #{tpu_custom_call.1} parent=55 // pred_check_branch
          %339 = sbr.rel (%p337) target = $region60
        $region59: #{tpu_custom_call.1} parent=55 // pred_region
          %340 = dma.done %s333, 4096
        $region60: #{tpu_custom_call.1} parent=55 // pred_fallthru
          _
        %s341 = sand.u32 %s50, 1
        %s342 = scalar_lea.sflag [#allocation4], %s341
        %s343 = sand.u32 %s50, 1
        %s344 = smul.addr %s343, 256
        %s345 = scalar_lea.vmem [#allocation3], %s344
        %p346 = pneg %p63
        %p347 = pneg %p60
        %p348 = pneg %p84
        %p349 = pneg %p81
        %p350 = pneg %p105
        %p351 = pneg %p102
        %p352 = pneg %p126
        %p353 = pneg %p123
        %p354 = pneg %p147
        %p355 = pneg %p144
        %p356 = pneg %p168
        %p357 = pneg %p165
        %p358 = pneg %p189
        %p359 = pneg %p186
        %p360 = pneg %p210
        %p361 = pneg %p207
        %p362 = pneg %p231
        %p363 = pneg %p228
        %p364 = pneg %p259
        %p365 = pneg %p256
        %s366 = sand.u32 %s246, 1
        %s367 = scalar_lea.sflag [#allocation5], %s366
        %s368 = sand.u32 %s246, 1
        %s369 = smul.addr %s368, 256
        %s370 = scalar_lea.vmem [#allocation6], %s369
        %s371 = smul.u32 2, %s33
        %s372 = smul.u32 2, %s33
        %v373 = vld [vmem:[%s336] sm:$0xff]
        %v374 = vld [vmem:[%s336 + $0x8] sm:$0xff]
        %v375 = vld [vmem:[%s336 + $0x10] sm:$0xff]
        %v376 = vld [vmem:[%s336 + $0x18] sm:$0xff]
        %v377 = vld [vmem:[%s336 + $0x20] sm:$0xff]
        %v378 = vld [vmem:[%s336 + $0x28] sm:$0xff]
        %v379 = vld [vmem:[%s336 + $0x30] sm:$0xff]
        %v380 = vld [vmem:[%s336 + $0x38] sm:$0xff]
        %v381 = vld [vmem:[%s336 + $0x40] sm:$0xff]
        %v382 = vld [vmem:[%s336 + $0x48] sm:$0xff]
        %v383 = vld [vmem:[%s336 + $0x50] sm:$0xff]
        %v384 = vld [vmem:[%s336 + $0x58] sm:$0xff]
        %v385 = vld [vmem:[%s336 + $0x60] sm:$0xff]
        %v386 = vld [vmem:[%s336 + $0x68] sm:$0xff]
        %v387 = vld [vmem:[%s336 + $0x70] sm:$0xff]
        %v388 = vld [vmem:[%s336 + $0x78] sm:$0xff]
        %v389 = vld [vmem:[%s336 + $0x80] sm:$0xff]
        %v390 = vld [vmem:[%s336 + $0x88] sm:$0xff]
        %v391 = vld [vmem:[%s336 + $0x90] sm:$0xff]
        %v392 = vld [vmem:[%s336 + $0x98] sm:$0xff]
        %v393 = vld [vmem:[%s336 + $0xa0] sm:$0xff]
        %v394 = vld [vmem:[%s336 + $0xa8] sm:$0xff]
        %v395 = vld [vmem:[%s336 + $0xb0] sm:$0xff]
        %v396 = vld [vmem:[%s336 + $0xb8] sm:$0xff]
        %v397 = vld [vmem:[%s336 + $0xc0] sm:$0xff]
        %v398 = vld [vmem:[%s336 + $0xc8] sm:$0xff]
        %v399 = vld [vmem:[%s336 + $0xd0] sm:$0xff]
        %v400 = vld [vmem:[%s336 + $0xd8] sm:$0xff]
        %v401 = vld [vmem:[%s336 + $0xe0] sm:$0xff]
        %v402 = vld [vmem:[%s336 + $0xe8] sm:$0xff]
        %v403 = vld [vmem:[%s336 + $0xf0] sm:$0xff]
        %v404 = vld [vmem:[%s336 + $0xf8] sm:$0xff]
        %405 = vxpose.xlu0.b32.start [1/16] %v373, 128
        %406 = vxpose.xlu0.b32.cont [2/16] %v375, 128
        %407 = vxpose.xlu0.b32.cont [3/16] %v377, 128
        %408 = vxpose.xlu0.b32.cont [4/16] %v379, 128
        %409 = vxpose.xlu0.b32.cont [5/16] %v381, 128
        %410 = vxpose.xlu0.b32.cont [6/16] %v383, 128
        %411 = vxpose.xlu0.b32.cont [7/16] %v385, 128
        %412 = vxpose.xlu0.b32.cont [8/16] %v387, 128
        %413 = vxpose.xlu0.b32.cont [9/16] %v389, 128
        %414 = vxpose.xlu0.b32.cont [10/16] %v391, 128
        %415 = vxpose.xlu0.b32.cont [11/16] %v393, 128
        %416 = vxpose.xlu0.b32.cont [12/16] %v395, 128
        %417 = vxpose.xlu0.b32.cont [13/16] %v397, 128
        %418 = vxpose.xlu0.b32.cont [14/16] %v399, 128
        %419 = vxpose.xlu0.b32.cont [15/16] %v401, 128
        %420 = vxpose.xlu0.b32.end [16/16] %v403, 128
        %v421 = vpop.trf.xlu0
        %v422 = vpop.trf.xlu0
        %v423 = vpop.trf.xlu0
        %v424 = vpop.trf.xlu0
        %v425 = vpop.trf.xlu0
        %v426 = vpop.trf.xlu0
        %v427 = vpop.trf.xlu0
        %v428 = vpop.trf.xlu0
        %v429 = vpop.trf.xlu0
        %v430 = vpop.trf.xlu0
        %v431 = vpop.trf.xlu0
        %v432 = vpop.trf.xlu0
        %v433 = vpop.trf.xlu0
        %v434 = vpop.trf.xlu0
        %v435 = vpop.trf.xlu0
        %v436 = vpop.trf.xlu0
        %437 = vxpose.xlu0.b32.start [1/16] %v374, 128
        %438 = vxpose.xlu0.b32.cont [2/16] %v376, 128
        %439 = vxpose.xlu0.b32.cont [3/16] %v378, 128
        %440 = vxpose.xlu0.b32.cont [4/16] %v380, 128
        %441 = vxpose.xlu0.b32.cont [5/16] %v382, 128
        %442 = vxpose.xlu0.b32.cont [6/16] %v384, 128
        %443 = vxpose.xlu0.b32.cont [7/16] %v386, 128
        %444 = vxpose.xlu0.b32.cont [8/16] %v388, 128
        %445 = vxpose.xlu0.b32.cont [9/16] %v390, 128
        %446 = vxpose.xlu0.b32.cont [10/16] %v392, 128
        %447 = vxpose.xlu0.b32.cont [11/16] %v394, 128
        %448 = vxpose.xlu0.b32.cont [12/16] %v396, 128
        %449 = vxpose.xlu0.b32.cont [13/16] %v398, 128
        %450 = vxpose.xlu0.b32.cont [14/16] %v400, 128
        %451 = vxpose.xlu0.b32.cont [15/16] %v402, 128
        %452 = vxpose.xlu0.b32.end [16/16] %v404, 128
        %v453 = vpop.trf.xlu0
        %v454 = vpop.trf.xlu0
        %v455 = vpop.trf.xlu0
        %v456 = vpop.trf.xlu0
        %v457 = vpop.trf.xlu0
        %v458 = vpop.trf.xlu0
        %v459 = vpop.trf.xlu0
        %v460 = vpop.trf.xlu0
        %v461 = vpop.trf.xlu0
        %v462 = vpop.trf.xlu0
        %v463 = vpop.trf.xlu0
        %v464 = vpop.trf.xlu0
        %v465 = vpop.trf.xlu0
        %v466 = vpop.trf.xlu0
        %v467 = vpop.trf.xlu0
        %v468 = vpop.trf.xlu0
        %v469 = vld [vmem:[%s1] sm:$0xff]
        %v470 = vld [vmem:[%s1 + $0x8] sm:$0xff]
        %v471 = vld [vmem:[%s1 + $0x10] sm:$0xff]
        %v472 = vld [vmem:[%s1 + $0x18] sm:$0xff]
        %v473 = vld [vmem:[%s1 + $0x20] sm:$0xff]
        %v474 = vld [vmem:[%s1 + $0x28] sm:$0xff]
        %v475 = vld [vmem:[%s1 + $0x30] sm:$0xff]
        %v476 = vld [vmem:[%s1 + $0x38] sm:$0xff]
        %v477 = vld [vmem:[%s1 + $0x40] sm:$0xff]
        %v478 = vld [vmem:[%s1 + $0x48] sm:$0xff]
        %v479 = vld [vmem:[%s1 + $0x50] sm:$0xff]
        %v480 = vld [vmem:[%s1 + $0x58] sm:$0xff]
        %v481 = vld [vmem:[%s1 + $0x60] sm:$0xff]
        %v482 = vld [vmem:[%s1 + $0x68] sm:$0xff]
        %v483 = vld [vmem:[%s1 + $0x70] sm:$0xff]
        %v484 = vld [vmem:[%s1 + $0x78] sm:$0xff]
        %v485 = vld [vmem:[%s2] sm:$0x1]
        %v487 = vlaneseq
        %v488 = vshrl.u32 %v487, 7
        %v489 = vsub.s32 0, %v488
        %v490 = vrot.slane %v485, %v489
        %492 = vmatprep.subr.mxu0 0.0
        %493 = vmatpush1.msra.mxu0 %v469
        %494 = vmatprep.subr.mxu0 0.0
        %495 = vmatpush1.msra.mxu0 %v470
        %496 = vmatprep.subr.mxu0 0.0
        %497 = vmatpush1.msra.mxu0 %v471
        %498 = vmatprep.subr.mxu0 0.0
        %499 = vmatpush1.msra.mxu0 %v472
        %500 = vmatprep.subr.mxu0 0.0
        %501 = vmatpush1.msra.mxu0 %v473
        %502 = vmatprep.subr.mxu0 0.0
        %503 = vmatpush1.msra.mxu0 %v474
        %504 = vmatprep.subr.mxu0 0.0
        %505 = vmatpush1.msra.mxu0 %v475
        %506 = vmatprep.subr.mxu0 0.0
        %507 = vmatpush1.msra.mxu0 %v476
        %508 = vmatprep.subr.mxu0 0.0
        %509 = vmatpush1.msra.mxu0 %v477
        %510 = vmatprep.subr.mxu0 0.0
        %511 = vmatpush1.msra.mxu0 %v478
        %512 = vmatprep.subr.mxu0 0.0
        %513 = vmatpush1.msra.mxu0 %v479
        %514 = vmatprep.subr.mxu0 0.0
        %515 = vmatpush1.msra.mxu0 %v480
        %516 = vmatprep.subr.mxu0 0.0
        %517 = vmatpush1.msra.mxu0 %v481
        %518 = vmatprep.subr.mxu0 0.0
        %519 = vmatpush1.msra.mxu0 %v482
        %520 = vmatprep.subr.mxu0 0.0
        %521 = vmatpush1.msra.mxu0 %v483
        %522 = vmatprep.subr.mxu0 0.0
        %523 = vmatpush1.msra.mxu0 %v484
        %524 = vmatprep.subr.mxu0 0.0
        %525 = vmatpush1.msra.mxu0 0.0
        %526 = vmatprep.subr.mxu0 0.0
        %527 = vmatpush1.msra.mxu0 0.0
        %528 = vmatprep.subr.mxu0 0.0
        %529 = vmatpush1.msra.mxu0 0.0
        %530 = vmatprep.subr.mxu0 0.0
        %531 = vmatpush1.msra.mxu0 0.0
        %532 = vmatprep.subr.mxu0 0.0
        %533 = vmatpush1.msra.mxu0 0.0
        %534 = vmatprep.subr.mxu0 0.0
        %535 = vmatpush1.msra.mxu0 0.0
        %536 = vmatprep.subr.mxu0 0.0
        %537 = vmatpush1.msra.mxu0 0.0
        %538 = vmatprep.subr.mxu0 0.0
        %539 = vmatpush1.msra.mxu0 0.0
        %540 = vmatprep.subr.mxu0 0.0
        %541 = vmatpush1.msra.mxu0 0.0
        %542 = vmatprep.subr.mxu0 0.0
        %543 = vmatpush1.msra.mxu0 0.0
        %544 = vmatprep.subr.mxu0 0.0
        %545 = vmatpush1.msra.mxu0 0.0
        %546 = vmatprep.subr.mxu0 0.0
        %547 = vmatpush1.msra.mxu0 0.0
        %548 = vmatprep.subr.mxu0 0.0
        %549 = vmatpush1.msra.mxu0 0.0
        %550 = vmatprep.subr.mxu0 0.0
        %551 = vmatpush1.msra.mxu0 0.0
        %552 = vmatprep.subr.mxu0 0.0
        %553 = vmatpush1.msra.mxu0 0.0
        %554 = vmatprep.subr.mxu0 0.0
        %555 = vmatpush1.msra.mxu0 0.0
        %556 = vmatprep.mubr.f32.mxu0 0.0
        %557 = vmatmul.mubr.f32.gmra.mrb[0].mxu0 %v421
        %v558 = vpop.f32.mrb[0].mxu0
        %v559 = vadd.f32 %v490, %v558
        %v560 = vpop.f32.mrb[0].mxu0
        %561 = vmatprep.mubr.f32.mxu0 0.0
        %562 = vmatmul.mubr.f32.gmra.mrb[0].mxu0 %v422
        %v563 = vpop.f32.mrb[0].mxu0
        %v564 = vadd.f32 %v490, %v563
        %v565 = vpop.f32.mrb[0].mxu0
        %566 = vmatprep.mubr.f32.mxu0 0.0
        %567 = vmatmul.mubr.f32.gmra.mrb[0].mxu0 %v423
        %v568 = vpop.f32.mrb[0].mxu0
        %v569 = vadd.f32 %v490, %v568
        %v570 = vpop.f32.mrb[0].mxu0
        %571 = vmatprep.mubr.f32.mxu0 0.0
        %572 = vmatmul.mubr.f32.gmra.mrb[0].mxu0 %v424
        %v573 = vpop.f32.mrb[0].mxu0
        %v574 = vadd.f32 %v490, %v573
        %v575 = vpop.f32.mrb[0].mxu0
        %576 = vmatprep.mubr.f32.mxu0 0.0
        %577 = vmatmul.mubr.f32.gmra.mrb[0].mxu0 %v425
        %v578 = vpop.f32.mrb[0].mxu0
        %v579 = vadd.f32 %v490, %v578
        %v580 = vpop.f32.mrb[0].mxu0
        %581 = vmatprep.mubr.f32.mxu0 0.0
        %582 = vmatmul.mubr.f32.gmra.mrb[0].mxu0 %v426
        %v583 = vpop.f32.mrb[0].mxu0
        %v584 = vadd.f32 %v490, %v583
        %v585 = vpop.f32.mrb[0].mxu0
        %586 = vmatprep.mubr.f32.mxu0 0.0
        %587 = vmatmul.mubr.f32.gmra.mrb[0].mxu0 %v427
        %v588 = vpop.f32.mrb[0].mxu0
        %v589 = vadd.f32 %v490, %v588
        %v590 = vpop.f32.mrb[0].mxu0
        %591 = vmatprep.mubr.f32.mxu0 0.0
        %592 = vmatmul.mubr.f32.gmra.mrb[0].mxu0 %v428
        %v593 = vpop.f32.mrb[0].mxu0
        %v594 = vadd.f32 %v490, %v593
        %v595 = vpop.f32.mrb[0].mxu0
        %596 = vmatprep.mubr.f32.mxu0 0.0
        %597 = vmatmul.mubr.f32.gmra.mrb[0].mxu0 %v429
        %v598 = vpop.f32.mrb[0].mxu0
        %v599 = vadd.f32 %v490, %v598
        %v600 = vpop.f32.mrb[0].mxu0
        %601 = vmatprep.mubr.f32.mxu0 0.0
        %602 = vmatmul.mubr.f32.gmra.mrb[0].mxu0 %v430
        %v603 = vpop.f32.mrb[0].mxu0
        %v604 = vadd.f32 %v490, %v603
        %v605 = vpop.f32.mrb[0].mxu0
        %606 = vmatprep.mubr.f32.mxu0 0.0
        %607 = vmatmul.mubr.f32.gmra.mrb[0].mxu0 %v431
        %v608 = vpop.f32.mrb[0].mxu0
        %v609 = vadd.f32 %v490, %v608
        %v610 = vpop.f32.mrb[0].mxu0
        %611 = vmatprep.mubr.f32.mxu0 0.0
        %612 = vmatmul.mubr.f32.gmra.mrb[0].mxu0 %v432
        %v613 = vpop.f32.mrb[0].mxu0
        %v614 = vadd.f32 %v490, %v613
        %v615 = vpop.f32.mrb[0].mxu0
        %616 = vmatprep.mubr.f32.mxu0 0.0
        %617 = vmatmul.mubr.f32.gmra.mrb[0].mxu0 %v433
        %v618 = vpop.f32.mrb[0].mxu0
        %v619 = vadd.f32 %v490, %v618
        %v620 = vpop.f32.mrb[0].mxu0
        %621 = vmatprep.mubr.f32.mxu0 0.0
        %622 = vmatmul.mubr.f32.gmra.mrb[0].mxu0 %v434
        %v623 = vpop.f32.mrb[0].mxu0
        %v624 = vadd.f32 %v490, %v623
        %v625 = vpop.f32.mrb[0].mxu0
        %626 = vmatprep.mubr.f32.mxu0 0.0
        %627 = vmatmul.mubr.f32.gmra.mrb[0].mxu0 %v435
        %v628 = vpop.f32.mrb[0].mxu0
        %v629 = vadd.f32 %v490, %v628
        %v630 = vpop.f32.mrb[0].mxu0
        %631 = vmatprep.mubr.f32.mxu0 0.0
        %632 = vmatmul.mubr.f32.gmra.mrb[0].mxu0 %v436
        %v633 = vpop.f32.mrb[0].mxu0
        %v634 = vadd.f32 %v490, %v633
        %v635 = vpop.f32.mrb[0].mxu0
        %636 = vmatprep.mubr.f32.mxu0 0.0
        %637 = vmatmul.mubr.f32.gmra.mrb[0].mxu0 %v453
        %v638 = vpop.f32.mrb[0].mxu0
        %v639 = vadd.f32 %v490, %v638
        %v640 = vpop.f32.mrb[0].mxu0
        %641 = vmatprep.mubr.f32.mxu0 0.0
        %642 = vmatmul.mubr.f32.gmra.mrb[0].mxu0 %v454
        %v643 = vpop.f32.mrb[0].mxu0
        %v644 = vadd.f32 %v490, %v643
        %v645 = vpop.f32.mrb[0].mxu0
        %646 = vmatprep.mubr.f32.mxu0 0.0
        %647 = vmatmul.mubr.f32.gmra.mrb[0].mxu0 %v455
        %v648 = vpop.f32.mrb[0].mxu0
        %v649 = vadd.f32 %v490, %v648
        %v650 = vpop.f32.mrb[0].mxu0
        %651 = vmatprep.mubr.f32.mxu0 0.0
        %652 = vmatmul.mubr.f32.gmra.mrb[0].mxu0 %v456
        %v653 = vpop.f32.mrb[0].mxu0
        %v654 = vadd.f32 %v490, %v653
        %v655 = vpop.f32.mrb[0].mxu0
        %656 = vmatprep.mubr.f32.mxu0 0.0
        %657 = vmatmul.mubr.f32.gmra.mrb[0].mxu0 %v457
        %v658 = vpop.f32.mrb[0].mxu0
        %v659 = vadd.f32 %v490, %v658
        %v660 = vpop.f32.mrb[0].mxu0
        %661 = vmatprep.mubr.f32.mxu0 0.0
        %662 = vmatmul.mubr.f32.gmra.mrb[0].mxu0 %v458
        %v663 = vpop.f32.mrb[0].mxu0
        %v664 = vadd.f32 %v490, %v663
        %v665 = vpop.f32.mrb[0].mxu0
        %666 = vmatprep.mubr.f32.mxu0 0.0
        %667 = vmatmul.mubr.f32.gmra.mrb[0].mxu0 %v459
        %v668 = vpop.f32.mrb[0].mxu0
        %v669 = vadd.f32 %v490, %v668
        %v670 = vpop.f32.mrb[0].mxu0
        %671 = vmatprep.mubr.f32.mxu0 0.0
        %672 = vmatmul.mubr.f32.gmra.mrb[0].mxu0 %v460
        %v673 = vpop.f32.mrb[0].mxu0
        %v674 = vadd.f32 %v490, %v673
        %v675 = vpop.f32.mrb[0].mxu0
        %676 = vmatprep.mubr.f32.mxu0 0.0
        %677 = vmatmul.mubr.f32.gmra.mrb[0].mxu0 %v461
        %v678 = vpop.f32.mrb[0].mxu0
        %v679 = vadd.f32 %v490, %v678
        %v680 = vpop.f32.mrb[0].mxu0
        %681 = vmatprep.mubr.f32.mxu0 0.0
        %682 = vmatmul.mubr.f32.gmra.mrb[0].mxu0 %v462
        %v683 = vpop.f32.mrb[0].mxu0
        %v684 = vadd.f32 %v490, %v683
        %v685 = vpop.f32.mrb[0].mxu0
        %686 = vmatprep.mubr.f32.mxu0 0.0
        %687 = vmatmul.mubr.f32.gmra.mrb[0].mxu0 %v463
        %v688 = vpop.f32.mrb[0].mxu0
        %v689 = vadd.f32 %v490, %v688
        %v690 = vpop.f32.mrb[0].mxu0
        %691 = vmatprep.mubr.f32.mxu0 0.0
        %692 = vmatmul.mubr.f32.gmra.mrb[0].mxu0 %v464
        %v693 = vpop.f32.mrb[0].mxu0
        %v694 = vadd.f32 %v490, %v693
        %v695 = vpop.f32.mrb[0].mxu0
        %696 = vmatprep.mubr.f32.mxu0 0.0
        %697 = vmatmul.mubr.f32.gmra.mrb[0].mxu0 %v465
        %v698 = vpop.f32.mrb[0].mxu0
        %v699 = vadd.f32 %v490, %v698
        %v700 = vpop.f32.mrb[0].mxu0
        %701 = vmatprep.mubr.f32.mxu0 0.0
        %702 = vmatmul.mubr.f32.gmra.mrb[0].mxu0 %v466
        %v703 = vpop.f32.mrb[0].mxu0
        %v704 = vadd.f32 %v490, %v703
        %v705 = vpop.f32.mrb[0].mxu0
        %706 = vmatprep.mubr.f32.mxu0 0.0
        %707 = vmatmul.mubr.f32.gmra.mrb[0].mxu0 %v467
        %v708 = vpop.f32.mrb[0].mxu0
        %v709 = vadd.f32 %v490, %v708
        %v710 = vpop.f32.mrb[0].mxu0
        %711 = vmatprep.mubr.f32.mxu0 0.0
        %712 = vmatmul.mubr.f32.gmra.mrb[0].mxu0 %v468
        %v713 = vpop.f32.mrb[0].mxu0
        %v714 = vadd.f32 %v490, %v713
        %v715 = vpop.f32.mrb[0].mxu0
        %716 = vdwg.mxu0
        %v717 = vmax.f32 %v559, 0.0
        %v718 = vmax.f32 %v564, 0.0
        %v719 = vmax.f32 %v569, 0.0
        %v720 = vmax.f32 %v574, 0.0
        %v721 = vmax.f32 %v579, 0.0
        %v722 = vmax.f32 %v584, 0.0
        %v723 = vmax.f32 %v589, 0.0
        %v724 = vmax.f32 %v594, 0.0
        %v725 = vmax.f32 %v599, 0.0
        %v726 = vmax.f32 %v604, 0.0
        %v727 = vmax.f32 %v609, 0.0
        %v728 = vmax.f32 %v614, 0.0
        %v729 = vmax.f32 %v619, 0.0
        %v730 = vmax.f32 %v624, 0.0
        %v731 = vmax.f32 %v629, 0.0
        %v732 = vmax.f32 %v634, 0.0
        %v733 = vmax.f32 %v639, 0.0
        %v734 = vmax.f32 %v644, 0.0
        %v735 = vmax.f32 %v649, 0.0
        %v736 = vmax.f32 %v654, 0.0
        %v737 = vmax.f32 %v659, 0.0
        %v738 = vmax.f32 %v664, 0.0
        %v739 = vmax.f32 %v669, 0.0
        %v740 = vmax.f32 %v674, 0.0
        %v741 = vmax.f32 %v679, 0.0
        %v742 = vmax.f32 %v684, 0.0
        %v743 = vmax.f32 %v689, 0.0
        %v744 = vmax.f32 %v694, 0.0
        %v745 = vmax.f32 %v699, 0.0
        %v746 = vmax.f32 %v704, 0.0
        %v747 = vmax.f32 %v709, 0.0
        %v748 = vmax.f32 %v714, 0.0
        %v749 = vld [vmem:[%s3] sm:$0xff]
        %v750 = vld [vmem:[%s3 + $0x8] sm:$0xff]
        %v751 = vld [vmem:[%s3 + $0x10] sm:$0xff]
        %v752 = vld [vmem:[%s3 + $0x18] sm:$0xff]
        %v753 = vld [vmem:[%s3 + $0x20] sm:$0xff]
        %v754 = vld [vmem:[%s3 + $0x28] sm:$0xff]
        %v755 = vld [vmem:[%s3 + $0x30] sm:$0xff]
        %v756 = vld [vmem:[%s3 + $0x38] sm:$0xff]
        %v757 = vld [vmem:[%s4] sm:$0x1]
        %v759 = vlaneseq
        %v760 = vshrl.u32 %v759, 7
        %v761 = vsub.s32 0, %v760
        %v762 = vrot.slane %v757, %v761
        %vm764 = vcmask 523264
        %v766 = vsel %vm764, %v717, 0
        %v769 = vsel %vm764, %v718, 0
        %v772 = vsel %vm764, %v719, 0
        %v775 = vsel %vm764, %v720, 0
        %v778 = vsel %vm764, %v721, 0
        %v781 = vsel %vm764, %v722, 0
        %v784 = vsel %vm764, %v723, 0
        %v787 = vsel %vm764, %v724, 0
        %v790 = vsel %vm764, %v725, 0
        %v793 = vsel %vm764, %v726, 0
        %v796 = vsel %vm764, %v727, 0
        %v799 = vsel %vm764, %v728, 0
        %v802 = vsel %vm764, %v729, 0
        %v805 = vsel %vm764, %v730, 0
        %v808 = vsel %vm764, %v731, 0
        %v811 = vsel %vm764, %v732, 0
        %v814 = vsel %vm764, %v733, 0
        %v817 = vsel %vm764, %v734, 0
        %v820 = vsel %vm764, %v735, 0
        %v823 = vsel %vm764, %v736, 0
        %v826 = vsel %vm764, %v737, 0
        %v829 = vsel %vm764, %v738, 0
        %v832 = vsel %vm764, %v739, 0
        %v835 = vsel %vm764, %v740, 0
        %v838 = vsel %vm764, %v741, 0
        %v841 = vsel %vm764, %v742, 0
        %v844 = vsel %vm764, %v743, 0
        %v847 = vsel %vm764, %v744, 0
        %v850 = vsel %vm764, %v745, 0
        %v853 = vsel %vm764, %v746, 0
        %v856 = vsel %vm764, %v747, 0
        %v859 = vsel %vm764, %v748, 0
        %861 = vmatprep.subr.mxu0 0.0
        %862 = vmatpush1.msra.mxu0 %v749
        %863 = vmatprep.subr.mxu0 0.0
        %864 = vmatpush1.msra.mxu0 %v750
        %865 = vmatprep.subr.mxu0 0.0
        %866 = vmatpush1.msra.mxu0 %v751
        %867 = vmatprep.subr.mxu0 0.0
        %868 = vmatpush1.msra.mxu0 %v752
        %869 = vmatprep.subr.mxu0 0.0
        %870 = vmatpush1.msra.mxu0 %v753
        %871 = vmatprep.subr.mxu0 0.0
        %872 = vmatpush1.msra.mxu0 %v754
        %873 = vmatprep.subr.mxu0 0.0
        %874 = vmatpush1.msra.mxu0 %v755
        %875 = vmatprep.subr.mxu0 0.0
        %876 = vmatpush1.msra.mxu0 %v756
        %877 = vmatprep.subr.mxu0 0.0
        %878 = vmatpush1.msra.mxu0 0.0
        %879 = vmatprep.subr.mxu0 0.0
        %880 = vmatpush1.msra.mxu0 0.0
        %881 = vmatprep.subr.mxu0 0.0
        %882 = vmatpush1.msra.mxu0 0.0
        %883 = vmatprep.subr.mxu0 0.0
        %884 = vmatpush1.msra.mxu0 0.0
        %885 = vmatprep.subr.mxu0 0.0
        %886 = vmatpush1.msra.mxu0 0.0
        %887 = vmatprep.subr.mxu0 0.0
        %888 = vmatpush1.msra.mxu0 0.0
        %889 = vmatprep.subr.mxu0 0.0
        %890 = vmatpush1.msra.mxu0 0.0
        %891 = vmatprep.subr.mxu0 0.0
        %892 = vmatpush1.msra.mxu0 0.0
        %893 = vmatprep.subr.mxu0 0.0
        %894 = vmatpush1.msra.mxu0 0.0
        %895 = vmatprep.subr.mxu0 0.0
        %896 = vmatpush1.msra.mxu0 0.0
        %897 = vmatprep.subr.mxu0 0.0
        %898 = vmatpush1.msra.mxu0 0.0
        %899 = vmatprep.subr.mxu0 0.0
        %900 = vmatpush1.msra.mxu0 0.0
        %901 = vmatprep.subr.mxu0 0.0
        %902 = vmatpush1.msra.mxu0 0.0
        %903 = vmatprep.subr.mxu0 0.0
        %904 = vmatpush1.msra.mxu0 0.0
        %905 = vmatprep.subr.mxu0 0.0
        %906 = vmatpush1.msra.mxu0 0.0
        %907 = vmatprep.subr.mxu0 0.0
        %908 = vmatpush1.msra.mxu0 0.0
        %909 = vmatprep.subr.mxu0 0.0
        %910 = vmatpush1.msra.mxu0 0.0
        %911 = vmatprep.subr.mxu0 0.0
        %912 = vmatpush1.msra.mxu0 0.0
        %913 = vmatprep.subr.mxu0 0.0
        %914 = vmatpush1.msra.mxu0 0.0
        %915 = vmatprep.subr.mxu0 0.0
        %916 = vmatpush1.msra.mxu0 0.0
        %917 = vmatprep.subr.mxu0 0.0
        %918 = vmatpush1.msra.mxu0 0.0
        %919 = vmatprep.subr.mxu0 0.0
        %920 = vmatpush1.msra.mxu0 0.0
        %921 = vmatprep.subr.mxu0 0.0
        %922 = vmatpush1.msra.mxu0 0.0
        %923 = vmatprep.subr.mxu0 0.0
        %924 = vmatpush1.msra.mxu0 0.0
        %925 = vmatprep.mubr.f32.mxu0 0.0
        %926 = vmatmul.mubr.f32.gmra.mrb[0].mxu0 %v766
        %v927 = vpop.f32.mrb[0].mxu0
        %v928 = vadd.f32 %v762, %v927
        %v929 = vpop.f32.mrb[0].mxu0
        %930 = vmatprep.mubr.f32.mxu0 0.0
        %931 = vmatmul.mubr.f32.gmra.mrb[0].mxu0 %v769
        %v932 = vpop.f32.mrb[0].mxu0
        %v933 = vadd.f32 %v762, %v932
        %v934 = vpop.f32.mrb[0].mxu0
        %935 = vmatprep.mubr.f32.mxu0 0.0
        %936 = vmatmul.mubr.f32.gmra.mrb[0].mxu0 %v772
        %v937 = vpop.f32.mrb[0].mxu0
        %v938 = vadd.f32 %v762, %v937
        %v939 = vpop.f32.mrb[0].mxu0
        %940 = vmatprep.mubr.f32.mxu0 0.0
        %941 = vmatmul.mubr.f32.gmra.mrb[0].mxu0 %v775
        %v942 = vpop.f32.mrb[0].mxu0
        %v943 = vadd.f32 %v762, %v942
        %v944 = vpop.f32.mrb[0].mxu0
        %945 = vmatprep.mubr.f32.mxu0 0.0
        %946 = vmatmul.mubr.f32.gmra.mrb[0].mxu0 %v778
        %v947 = vpop.f32.mrb[0].mxu0
        %v948 = vadd.f32 %v762, %v947
        %v949 = vpop.f32.mrb[0].mxu0
        %950 = vmatprep.mubr.f32.mxu0 0.0
        %951 = vmatmul.mubr.f32.gmra.mrb[0].mxu0 %v781
        %v952 = vpop.f32.mrb[0].mxu0
        %v953 = vadd.f32 %v762, %v952
        %v954 = vpop.f32.mrb[0].mxu0
        %955 = vmatprep.mubr.f32.mxu0 0.0
        %956 = vmatmul.mubr.f32.gmra.mrb[0].mxu0 %v784
        %v957 = vpop.f32.mrb[0].mxu0
        %v958 = vadd.f32 %v762, %v957
        %v959 = vpop.f32.mrb[0].mxu0
        %960 = vmatprep.mubr.f32.mxu0 0.0
        %961 = vmatmul.mubr.f32.gmra.mrb[0].mxu0 %v787
        %v962 = vpop.f32.mrb[0].mxu0
        %v963 = vadd.f32 %v762, %v962
        %v964 = vpop.f32.mrb[0].mxu0
        %965 = vmatprep.mubr.f32.mxu0 0.0
        %966 = vmatmul.mubr.f32.gmra.mrb[0].mxu0 %v790
        %v967 = vpop.f32.mrb[0].mxu0
        %v968 = vadd.f32 %v762, %v967
        %v969 = vpop.f32.mrb[0].mxu0
        %970 = vmatprep.mubr.f32.mxu0 0.0
        %971 = vmatmul.mubr.f32.gmra.mrb[0].mxu0 %v793
        %v972 = vpop.f32.mrb[0].mxu0
        %v973 = vadd.f32 %v762, %v972
        %v974 = vpop.f32.mrb[0].mxu0
        %975 = vmatprep.mubr.f32.mxu0 0.0
        %976 = vmatmul.mubr.f32.gmra.mrb[0].mxu0 %v796
        %v977 = vpop.f32.mrb[0].mxu0
        %v978 = vadd.f32 %v762, %v977
        %v979 = vpop.f32.mrb[0].mxu0
        %980 = vmatprep.mubr.f32.mxu0 0.0
        %981 = vmatmul.mubr.f32.gmra.mrb[0].mxu0 %v799
        %v982 = vpop.f32.mrb[0].mxu0
        %v983 = vadd.f32 %v762, %v982
        %v984 = vpop.f32.mrb[0].mxu0
        %985 = vmatprep.mubr.f32.mxu0 0.0
        %986 = vmatmul.mubr.f32.gmra.mrb[0].mxu0 %v802
        %v987 = vpop.f32.mrb[0].mxu0
        %v988 = vadd.f32 %v762, %v987
        %v989 = vpop.f32.mrb[0].mxu0
        %990 = vmatprep.mubr.f32.mxu0 0.0
        %991 = vmatmul.mubr.f32.gmra.mrb[0].mxu0 %v805
        %v992 = vpop.f32.mrb[0].mxu0
        %v993 = vadd.f32 %v762, %v992
        %v994 = vpop.f32.mrb[0].mxu0
        %995 = vmatprep.mubr.f32.mxu0 0.0
        %996 = vmatmul.mubr.f32.gmra.mrb[0].mxu0 %v808
        %v997 = vpop.f32.mrb[0].mxu0
        %v998 = vadd.f32 %v762, %v997
        %v999 = vpop.f32.mrb[0].mxu0
        %1000 = vmatprep.mubr.f32.mxu0 0.0
        %1001 = vmatmul.mubr.f32.gmra.mrb[0].mxu0 %v811
        %v1002 = vpop.f32.mrb[0].mxu0
        %v1003 = vadd.f32 %v762, %v1002
        %v1004 = vpop.f32.mrb[0].mxu0
        %1005 = vmatprep.mubr.f32.mxu0 0.0
        %1006 = vmatmul.mubr.f32.gmra.mrb[0].mxu0 %v814
        %v1007 = vpop.f32.mrb[0].mxu0
        %v1008 = vadd.f32 %v762, %v1007
        %v1009 = vpop.f32.mrb[0].mxu0
        %1010 = vmatprep.mubr.f32.mxu0 0.0
        %1011 = vmatmul.mubr.f32.gmra.mrb[0].mxu0 %v817
        %v1012 = vpop.f32.mrb[0].mxu0
        %v1013 = vadd.f32 %v762, %v1012
        %v1014 = vpop.f32.mrb[0].mxu0
        %1015 = vmatprep.mubr.f32.mxu0 0.0
        %1016 = vmatmul.mubr.f32.gmra.mrb[0].mxu0 %v820
        %v1017 = vpop.f32.mrb[0].mxu0
        %v1018 = vadd.f32 %v762, %v1017
        %v1019 = vpop.f32.mrb[0].mxu0
        %1020 = vmatprep.mubr.f32.mxu0 0.0
        %1021 = vmatmul.mubr.f32.gmra.mrb[0].mxu0 %v823
        %v1022 = vpop.f32.mrb[0].mxu0
        %v1023 = vadd.f32 %v762, %v1022
        %v1024 = vpop.f32.mrb[0].mxu0
        %1025 = vmatprep.mubr.f32.mxu0 0.0
        %1026 = vmatmul.mubr.f32.gmra.mrb[0].mxu0 %v826
        %v1027 = vpop.f32.mrb[0].mxu0
        %v1028 = vadd.f32 %v762, %v1027
        %v1029 = vpop.f32.mrb[0].mxu0
        %1030 = vmatprep.mubr.f32.mxu0 0.0
        %1031 = vmatmul.mubr.f32.gmra.mrb[0].mxu0 %v829
        %v1032 = vpop.f32.mrb[0].mxu0
        %v1033 = vadd.f32 %v762, %v1032
        %v1034 = vpop.f32.mrb[0].mxu0
        %1035 = vmatprep.mubr.f32.mxu0 0.0
        %1036 = vmatmul.mubr.f32.gmra.mrb[0].mxu0 %v832
        %v1037 = vpop.f32.mrb[0].mxu0
        %v1038 = vadd.f32 %v762, %v1037
        %v1039 = vpop.f32.mrb[0].mxu0
        %1040 = vmatprep.mubr.f32.mxu0 0.0
        %1041 = vmatmul.mubr.f32.gmra.mrb[0].mxu0 %v835
        %v1042 = vpop.f32.mrb[0].mxu0
        %v1043 = vadd.f32 %v762, %v1042
        %v1044 = vpop.f32.mrb[0].mxu0
        %1045 = vmatprep.mubr.f32.mxu0 0.0
        %1046 = vmatmul.mubr.f32.gmra.mrb[0].mxu0 %v838
        %v1047 = vpop.f32.mrb[0].mxu0
        %v1048 = vadd.f32 %v762, %v1047
        %v1049 = vpop.f32.mrb[0].mxu0
        %1050 = vmatprep.mubr.f32.mxu0 0.0
        %1051 = vmatmul.mubr.f32.gmra.mrb[0].mxu0 %v841
        %v1052 = vpop.f32.mrb[0].mxu0
        %v1053 = vadd.f32 %v762, %v1052
        %v1054 = vpop.f32.mrb[0].mxu0
        %1055 = vmatprep.mubr.f32.mxu0 0.0
        %1056 = vmatmul.mubr.f32.gmra.mrb[0].mxu0 %v844
        %v1057 = vpop.f32.mrb[0].mxu0
        %v1058 = vadd.f32 %v762, %v1057
        %v1059 = vpop.f32.mrb[0].mxu0
        %1060 = vmatprep.mubr.f32.mxu0 0.0
        %1061 = vmatmul.mubr.f32.gmra.mrb[0].mxu0 %v847
        %v1062 = vpop.f32.mrb[0].mxu0
        %v1063 = vadd.f32 %v762, %v1062
        %v1064 = vpop.f32.mrb[0].mxu0
        %1065 = vmatprep.mubr.f32.mxu0 0.0
        %1066 = vmatmul.mubr.f32.gmra.mrb[0].mxu0 %v850
        %v1067 = vpop.f32.mrb[0].mxu0
        %v1068 = vadd.f32 %v762, %v1067
        %v1069 = vpop.f32.mrb[0].mxu0
        %1070 = vmatprep.mubr.f32.mxu0 0.0
        %1071 = vmatmul.mubr.f32.gmra.mrb[0].mxu0 %v853
        %v1072 = vpop.f32.mrb[0].mxu0
        %v1073 = vadd.f32 %v762, %v1072
        %v1074 = vpop.f32.mrb[0].mxu0
        %1075 = vmatprep.mubr.f32.mxu0 0.0
        %1076 = vmatmul.mubr.f32.gmra.mrb[0].mxu0 %v856
        %v1077 = vpop.f32.mrb[0].mxu0
        %v1078 = vadd.f32 %v762, %v1077
        %v1079 = vpop.f32.mrb[0].mxu0
        %1080 = vmatprep.mubr.f32.mxu0 0.0
        %1081 = vmatmul.mubr.f32.gmra.mrb[0].mxu0 %v859
        %v1082 = vpop.f32.mrb[0].mxu0
        %v1083 = vadd.f32 %v762, %v1082
        %v1084 = vpop.f32.mrb[0].mxu0
        %1085 = vdwg.mxu0
        %v1086 = vmax.f32 %v928, 0.0
        %v1087 = vmax.f32 %v933, 0.0
        %v1088 = vmax.f32 %v938, 0.0
        %v1089 = vmax.f32 %v943, 0.0
        %v1090 = vmax.f32 %v948, 0.0
        %v1091 = vmax.f32 %v953, 0.0
        %v1092 = vmax.f32 %v958, 0.0
        %v1093 = vmax.f32 %v963, 0.0
        %v1094 = vmax.f32 %v968, 0.0
        %v1095 = vmax.f32 %v973, 0.0
        %v1096 = vmax.f32 %v978, 0.0
        %v1097 = vmax.f32 %v983, 0.0
        %v1098 = vmax.f32 %v988, 0.0
        %v1099 = vmax.f32 %v993, 0.0
        %v1100 = vmax.f32 %v998, 0.0
        %v1101 = vmax.f32 %v1003, 0.0
        %v1102 = vmax.f32 %v1008, 0.0
        %v1103 = vmax.f32 %v1013, 0.0
        %v1104 = vmax.f32 %v1018, 0.0
        %v1105 = vmax.f32 %v1023, 0.0
        %v1106 = vmax.f32 %v1028, 0.0
        %v1107 = vmax.f32 %v1033, 0.0
        %v1108 = vmax.f32 %v1038, 0.0
        %v1109 = vmax.f32 %v1043, 0.0
        %v1110 = vmax.f32 %v1048, 0.0
        %v1111 = vmax.f32 %v1053, 0.0
        %v1112 = vmax.f32 %v1058, 0.0
        %v1113 = vmax.f32 %v1063, 0.0
        %v1114 = vmax.f32 %v1068, 0.0
        %v1115 = vmax.f32 %v1073, 0.0
        %v1116 = vmax.f32 %v1078, 0.0
        %v1117 = vmax.f32 %v1083, 0.0
        %v1118 = vld [vmem:[%s5] sm:$0xff]
        %v1119 = vld [vmem:[%s5 + $0x8] sm:$0xff]
        %v1120 = vld [vmem:[%s5 + $0x10] sm:$0xff]
        %v1121 = vld [vmem:[%s5 + $0x18] sm:$0xff]
        %v1122 = vld [vmem:[%s6] sm:$0x1]
        %v1124 = vlaneseq
        %v1125 = vshrl.u32 %v1124, 7
        %v1126 = vsub.s32 0, %v1125
        %v1127 = vrot.slane %v1122, %v1126
        %vm1129 = vcmask 261120
        %v1131 = vsel %vm1129, %v1086, 0
        %v1134 = vsel %vm1129, %v1087, 0
        %v1137 = vsel %vm1129, %v1088, 0
        %v1140 = vsel %vm1129, %v1089, 0
        %v1143 = vsel %vm1129, %v1090, 0
        %v1146 = vsel %vm1129, %v1091, 0
        %v1149 = vsel %vm1129, %v1092, 0
        %v1152 = vsel %vm1129, %v1093, 0
        %v1155 = vsel %vm1129, %v1094, 0
        %v1158 = vsel %vm1129, %v1095, 0
        %v1161 = vsel %vm1129, %v1096, 0
        %v1164 = vsel %vm1129, %v1097, 0
        %v1167 = vsel %vm1129, %v1098, 0
        %v1170 = vsel %vm1129, %v1099, 0
        %v1173 = vsel %vm1129, %v1100, 0
        %v1176 = vsel %vm1129, %v1101, 0
        %v1179 = vsel %vm1129, %v1102, 0
        %v1182 = vsel %vm1129, %v1103, 0
        %v1185 = vsel %vm1129, %v1104, 0
        %v1188 = vsel %vm1129, %v1105, 0
        %v1191 = vsel %vm1129, %v1106, 0
        %v1194 = vsel %vm1129, %v1107, 0
        %v1197 = vsel %vm1129, %v1108, 0
        %v1200 = vsel %vm1129, %v1109, 0
        %v1203 = vsel %vm1129, %v1110, 0
        %v1206 = vsel %vm1129, %v1111, 0
        %v1209 = vsel %vm1129, %v1112, 0
        %v1212 = vsel %vm1129, %v1113, 0
        %v1215 = vsel %vm1129, %v1114, 0
        %v1218 = vsel %vm1129, %v1115, 0
        %v1221 = vsel %vm1129, %v1116, 0
        %v1224 = vsel %vm1129, %v1117, 0
        %1226 = vmatprep.subr.mxu0 0.0
        %1227 = vmatpush1.msra.mxu0 %v1118
        %1228 = vmatprep.subr.mxu0 0.0
        %1229 = vmatpush1.msra.mxu0 %v1119
        %1230 = vmatprep.subr.mxu0 0.0
        %1231 = vmatpush1.msra.mxu0 %v1120
        %1232 = vmatprep.subr.mxu0 0.0
        %1233 = vmatpush1.msra.mxu0 %v1121
        %1234 = vmatprep.subr.mxu0 0.0
        %1235 = vmatpush1.msra.mxu0 0.0
        %1236 = vmatprep.subr.mxu0 0.0
        %1237 = vmatpush1.msra.mxu0 0.0
        %1238 = vmatprep.subr.mxu0 0.0
        %1239 = vmatpush1.msra.mxu0 0.0
        %1240 = vmatprep.subr.mxu0 0.0
        %1241 = vmatpush1.msra.mxu0 0.0
        %1242 = vmatprep.subr.mxu0 0.0
        %1243 = vmatpush1.msra.mxu0 0.0
        %1244 = vmatprep.subr.mxu0 0.0
        %1245 = vmatpush1.msra.mxu0 0.0
        %1246 = vmatprep.subr.mxu0 0.0
        %1247 = vmatpush1.msra.mxu0 0.0
        %1248 = vmatprep.subr.mxu0 0.0
        %1249 = vmatpush1.msra.mxu0 0.0
        %1250 = vmatprep.subr.mxu0 0.0
        %1251 = vmatpush1.msra.mxu0 0.0
        %1252 = vmatprep.subr.mxu0 0.0
        %1253 = vmatpush1.msra.mxu0 0.0
        %1254 = vmatprep.subr.mxu0 0.0
        %1255 = vmatpush1.msra.mxu0 0.0
        %1256 = vmatprep.subr.mxu0 0.0
        %1257 = vmatpush1.msra.mxu0 0.0
        %1258 = vmatprep.subr.mxu0 0.0
        %1259 = vmatpush1.msra.mxu0 0.0
        %1260 = vmatprep.subr.mxu0 0.0
        %1261 = vmatpush1.msra.mxu0 0.0
        %1262 = vmatprep.subr.mxu0 0.0
        %1263 = vmatpush1.msra.mxu0 0.0
        %1264 = vmatprep.subr.mxu0 0.0
        %1265 = vmatpush1.msra.mxu0 0.0
        %1266 = vmatprep.subr.mxu0 0.0
        %1267 = vmatpush1.msra.mxu0 0.0
        %1268 = vmatprep.subr.mxu0 0.0
        %1269 = vmatpush1.msra.mxu0 0.0
        %1270 = vmatprep.subr.mxu0 0.0
        %1271 = vmatpush1.msra.mxu0 0.0
        %1272 = vmatprep.subr.mxu0 0.0
        %1273 = vmatpush1.msra.mxu0 0.0
        %1274 = vmatprep.subr.mxu0 0.0
        %1275 = vmatpush1.msra.mxu0 0.0
        %1276 = vmatprep.subr.mxu0 0.0
        %1277 = vmatpush1.msra.mxu0 0.0
        %1278 = vmatprep.subr.mxu0 0.0
        %1279 = vmatpush1.msra.mxu0 0.0
        %1280 = vmatprep.subr.mxu0 0.0
        %1281 = vmatpush1.msra.mxu0 0.0
        %1282 = vmatprep.subr.mxu0 0.0
        %1283 = vmatpush1.msra.mxu0 0.0
        %1284 = vmatprep.subr.mxu0 0.0
        %1285 = vmatpush1.msra.mxu0 0.0
        %1286 = vmatprep.subr.mxu0 0.0
        %1287 = vmatpush1.msra.mxu0 0.0
        %1288 = vmatprep.subr.mxu0 0.0
        %1289 = vmatpush1.msra.mxu0 0.0
        %1290 = vmatprep.mubr.f32.mxu0 0.0
        %1291 = vmatmul.mubr.f32.gmra.mrb[0].mxu0 %v1131
        %v1292 = vpop.f32.mrb[0].mxu0
        %v1293 = vadd.f32 %v1127, %v1292
        %v1294 = vpop.f32.mrb[0].mxu0
        %1295 = vmatprep.mubr.f32.mxu0 0.0
        %1296 = vmatmul.mubr.f32.gmra.mrb[0].mxu0 %v1134
        %v1297 = vpop.f32.mrb[0].mxu0
        %v1298 = vadd.f32 %v1127, %v1297
        %v1299 = vpop.f32.mrb[0].mxu0
        %1300 = vmatprep.mubr.f32.mxu0 0.0
        %1301 = vmatmul.mubr.f32.gmra.mrb[0].mxu0 %v1137
        %v1302 = vpop.f32.mrb[0].mxu0
        %v1303 = vadd.f32 %v1127, %v1302
        %v1304 = vpop.f32.mrb[0].mxu0
        %1305 = vmatprep.mubr.f32.mxu0 0.0
        %1306 = vmatmul.mubr.f32.gmra.mrb[0].mxu0 %v1140
        %v1307 = vpop.f32.mrb[0].mxu0
        %v1308 = vadd.f32 %v1127, %v1307
        %v1309 = vpop.f32.mrb[0].mxu0
        %1310 = vmatprep.mubr.f32.mxu0 0.0
        %1311 = vmatmul.mubr.f32.gmra.mrb[0].mxu0 %v1143
        %v1312 = vpop.f32.mrb[0].mxu0
        %v1313 = vadd.f32 %v1127, %v1312
        %v1314 = vpop.f32.mrb[0].mxu0
        %1315 = vmatprep.mubr.f32.mxu0 0.0
        %1316 = vmatmul.mubr.f32.gmra.mrb[0].mxu0 %v1146
        %v1317 = vpop.f32.mrb[0].mxu0
        %v1318 = vadd.f32 %v1127, %v1317
        %v1319 = vpop.f32.mrb[0].mxu0
        %1320 = vmatprep.mubr.f32.mxu0 0.0
        %1321 = vmatmul.mubr.f32.gmra.mrb[0].mxu0 %v1149
        %v1322 = vpop.f32.mrb[0].mxu0
        %v1323 = vadd.f32 %v1127, %v1322
        %v1324 = vpop.f32.mrb[0].mxu0
        %1325 = vmatprep.mubr.f32.mxu0 0.0
        %1326 = vmatmul.mubr.f32.gmra.mrb[0].mxu0 %v1152
        %v1327 = vpop.f32.mrb[0].mxu0
        %v1328 = vadd.f32 %v1127, %v1327
        %v1329 = vpop.f32.mrb[0].mxu0
        %1330 = vmatprep.mubr.f32.mxu0 0.0
        %1331 = vmatmul.mubr.f32.gmra.mrb[0].mxu0 %v1155
        %v1332 = vpop.f32.mrb[0].mxu0
        %v1333 = vadd.f32 %v1127, %v1332
        %v1334 = vpop.f32.mrb[0].mxu0
        %1335 = vmatprep.mubr.f32.mxu0 0.0
        %1336 = vmatmul.mubr.f32.gmra.mrb[0].mxu0 %v1158
        %v1337 = vpop.f32.mrb[0].mxu0
        %v1338 = vadd.f32 %v1127, %v1337
        %v1339 = vpop.f32.mrb[0].mxu0
        %1340 = vmatprep.mubr.f32.mxu0 0.0
        %1341 = vmatmul.mubr.f32.gmra.mrb[0].mxu0 %v1161
        %v1342 = vpop.f32.mrb[0].mxu0
        %v1343 = vadd.f32 %v1127, %v1342
        %v1344 = vpop.f32.mrb[0].mxu0
        %1345 = vmatprep.mubr.f32.mxu0 0.0
        %1346 = vmatmul.mubr.f32.gmra.mrb[0].mxu0 %v1164
        %v1347 = vpop.f32.mrb[0].mxu0
        %v1348 = vadd.f32 %v1127, %v1347
        %v1349 = vpop.f32.mrb[0].mxu0
        %1350 = vmatprep.mubr.f32.mxu0 0.0
        %1351 = vmatmul.mubr.f32.gmra.mrb[0].mxu0 %v1167
        %v1352 = vpop.f32.mrb[0].mxu0
        %v1353 = vadd.f32 %v1127, %v1352
        %v1354 = vpop.f32.mrb[0].mxu0
        %1355 = vmatprep.mubr.f32.mxu0 0.0
        %1356 = vmatmul.mubr.f32.gmra.mrb[0].mxu0 %v1170
        %v1357 = vpop.f32.mrb[0].mxu0
        %v1358 = vadd.f32 %v1127, %v1357
        %v1359 = vpop.f32.mrb[0].mxu0
        %1360 = vmatprep.mubr.f32.mxu0 0.0
        %1361 = vmatmul.mubr.f32.gmra.mrb[0].mxu0 %v1173
        %v1362 = vpop.f32.mrb[0].mxu0
        %v1363 = vadd.f32 %v1127, %v1362
        %v1364 = vpop.f32.mrb[0].mxu0
        %1365 = vmatprep.mubr.f32.mxu0 0.0
        %1366 = vmatmul.mubr.f32.gmra.mrb[0].mxu0 %v1176
        %v1367 = vpop.f32.mrb[0].mxu0
        %v1368 = vadd.f32 %v1127, %v1367
        %v1369 = vpop.f32.mrb[0].mxu0
        %1370 = vmatprep.mubr.f32.mxu0 0.0
        %1371 = vmatmul.mubr.f32.gmra.mrb[0].mxu0 %v1179
        %v1372 = vpop.f32.mrb[0].mxu0
        %v1373 = vadd.f32 %v1127, %v1372
        %v1374 = vpop.f32.mrb[0].mxu0
        %1375 = vmatprep.mubr.f32.mxu0 0.0
        %1376 = vmatmul.mubr.f32.gmra.mrb[0].mxu0 %v1182
        %v1377 = vpop.f32.mrb[0].mxu0
        %v1378 = vadd.f32 %v1127, %v1377
        %v1379 = vpop.f32.mrb[0].mxu0
        %1380 = vmatprep.mubr.f32.mxu0 0.0
        %1381 = vmatmul.mubr.f32.gmra.mrb[0].mxu0 %v1185
        %v1382 = vpop.f32.mrb[0].mxu0
        %v1383 = vadd.f32 %v1127, %v1382
        %v1384 = vpop.f32.mrb[0].mxu0
        %1385 = vmatprep.mubr.f32.mxu0 0.0
        %1386 = vmatmul.mubr.f32.gmra.mrb[0].mxu0 %v1188
        %v1387 = vpop.f32.mrb[0].mxu0
        %v1388 = vadd.f32 %v1127, %v1387
        %v1389 = vpop.f32.mrb[0].mxu0
        %1390 = vmatprep.mubr.f32.mxu0 0.0
        %1391 = vmatmul.mubr.f32.gmra.mrb[0].mxu0 %v1191
        %v1392 = vpop.f32.mrb[0].mxu0
        %v1393 = vadd.f32 %v1127, %v1392
        %v1394 = vpop.f32.mrb[0].mxu0
        %1395 = vmatprep.mubr.f32.mxu0 0.0
        %1396 = vmatmul.mubr.f32.gmra.mrb[0].mxu0 %v1194
        %v1397 = vpop.f32.mrb[0].mxu0
        %v1398 = vadd.f32 %v1127, %v1397
        %v1399 = vpop.f32.mrb[0].mxu0
        %1400 = vmatprep.mubr.f32.mxu0 0.0
        %1401 = vmatmul.mubr.f32.gmra.mrb[0].mxu0 %v1197
        %v1402 = vpop.f32.mrb[0].mxu0
        %v1403 = vadd.f32 %v1127, %v1402
        %v1404 = vpop.f32.mrb[0].mxu0
        %1405 = vmatprep.mubr.f32.mxu0 0.0
        %1406 = vmatmul.mubr.f32.gmra.mrb[0].mxu0 %v1200
        %v1407 = vpop.f32.mrb[0].mxu0
        %v1408 = vadd.f32 %v1127, %v1407
        %v1409 = vpop.f32.mrb[0].mxu0
        %1410 = vmatprep.mubr.f32.mxu0 0.0
        %1411 = vmatmul.mubr.f32.gmra.mrb[0].mxu0 %v1203
        %v1412 = vpop.f32.mrb[0].mxu0
        %v1413 = vadd.f32 %v1127, %v1412
        %v1414 = vpop.f32.mrb[0].mxu0
        %1415 = vmatprep.mubr.f32.mxu0 0.0
        %1416 = vmatmul.mubr.f32.gmra.mrb[0].mxu0 %v1206
        %v1417 = vpop.f32.mrb[0].mxu0
        %v1418 = vadd.f32 %v1127, %v1417
        %v1419 = vpop.f32.mrb[0].mxu0
        %1420 = vmatprep.mubr.f32.mxu0 0.0
        %1421 = vmatmul.mubr.f32.gmra.mrb[0].mxu0 %v1209
        %v1422 = vpop.f32.mrb[0].mxu0
        %v1423 = vadd.f32 %v1127, %v1422
        %v1424 = vpop.f32.mrb[0].mxu0
        %1425 = vmatprep.mubr.f32.mxu0 0.0
        %1426 = vmatmul.mubr.f32.gmra.mrb[0].mxu0 %v1212
        %v1427 = vpop.f32.mrb[0].mxu0
        %v1428 = vadd.f32 %v1127, %v1427
        %v1429 = vpop.f32.mrb[0].mxu0
        %1430 = vmatprep.mubr.f32.mxu0 0.0
        %1431 = vmatmul.mubr.f32.gmra.mrb[0].mxu0 %v1215
        %v1432 = vpop.f32.mrb[0].mxu0
        %v1433 = vadd.f32 %v1127, %v1432
        %v1434 = vpop.f32.mrb[0].mxu0
        %1435 = vmatprep.mubr.f32.mxu0 0.0
        %1436 = vmatmul.mubr.f32.gmra.mrb[0].mxu0 %v1218
        %v1437 = vpop.f32.mrb[0].mxu0
        %v1438 = vadd.f32 %v1127, %v1437
        %v1439 = vpop.f32.mrb[0].mxu0
        %1440 = vmatprep.mubr.f32.mxu0 0.0
        %1441 = vmatmul.mubr.f32.gmra.mrb[0].mxu0 %v1221
        %v1442 = vpop.f32.mrb[0].mxu0
        %v1443 = vadd.f32 %v1127, %v1442
        %v1444 = vpop.f32.mrb[0].mxu0
        %1445 = vmatprep.mubr.f32.mxu0 0.0
        %1446 = vmatmul.mubr.f32.gmra.mrb[0].mxu0 %v1224
        %v1447 = vpop.f32.mrb[0].mxu0
        %v1448 = vadd.f32 %v1127, %v1447
        %v1449 = vpop.f32.mrb[0].mxu0
        %1450 = vdwg.mxu0
        %v1451 = vmax.f32 %v1293, 0.0
        %v1452 = vmax.f32 %v1298, 0.0
        %v1453 = vmax.f32 %v1303, 0.0
        %v1454 = vmax.f32 %v1308, 0.0
        %v1455 = vmax.f32 %v1313, 0.0
        %v1456 = vmax.f32 %v1318, 0.0
        %v1457 = vmax.f32 %v1323, 0.0
        %v1458 = vmax.f32 %v1328, 0.0
        %v1459 = vmax.f32 %v1333, 0.0
        %v1460 = vmax.f32 %v1338, 0.0
        %v1461 = vmax.f32 %v1343, 0.0
        %v1462 = vmax.f32 %v1348, 0.0
        %v1463 = vmax.f32 %v1353, 0.0
        %v1464 = vmax.f32 %v1358, 0.0
        %v1465 = vmax.f32 %v1363, 0.0
        %v1466 = vmax.f32 %v1368, 0.0
        %v1467 = vmax.f32 %v1373, 0.0
        %v1468 = vmax.f32 %v1378, 0.0
        %v1469 = vmax.f32 %v1383, 0.0
        %v1470 = vmax.f32 %v1388, 0.0
        %v1471 = vmax.f32 %v1393, 0.0
        %v1472 = vmax.f32 %v1398, 0.0
        %v1473 = vmax.f32 %v1403, 0.0
        %v1474 = vmax.f32 %v1408, 0.0
        %v1475 = vmax.f32 %v1413, 0.0
        %v1476 = vmax.f32 %v1418, 0.0
        %v1477 = vmax.f32 %v1423, 0.0
        %v1478 = vmax.f32 %v1428, 0.0
        %v1479 = vmax.f32 %v1433, 0.0
        %v1480 = vmax.f32 %v1438, 0.0
        %v1481 = vmax.f32 %v1443, 0.0
        %v1482 = vmax.f32 %v1448, 0.0
        %v1483 = vld [vmem:[%s7] sm:$0x1]
        %v1485 = vlaneseq
        %v1486 = vshrl.u32 %v1485, 7
        %v1487 = vsub.s32 0, %v1486
        %v1488 = vrot.slane %v1483, %v1487
        %v1490 = vmul.f32 %v1451, %v1488
        %v1491 = vmul.f32 %v1452, %v1488
        %v1492 = vmul.f32 %v1453, %v1488
        %v1493 = vmul.f32 %v1454, %v1488
        %v1494 = vmul.f32 %v1455, %v1488
        %v1495 = vmul.f32 %v1456, %v1488
        %v1496 = vmul.f32 %v1457, %v1488
        %v1497 = vmul.f32 %v1458, %v1488
        %v1498 = vmul.f32 %v1459, %v1488
        %v1499 = vmul.f32 %v1460, %v1488
        %v1500 = vmul.f32 %v1461, %v1488
        %v1501 = vmul.f32 %v1462, %v1488
        %v1502 = vmul.f32 %v1463, %v1488
        %v1503 = vmul.f32 %v1464, %v1488
        %v1504 = vmul.f32 %v1465, %v1488
        %v1505 = vmul.f32 %v1466, %v1488
        %v1506 = vmul.f32 %v1467, %v1488
        %v1507 = vmul.f32 %v1468, %v1488
        %v1508 = vmul.f32 %v1469, %v1488
        %v1509 = vmul.f32 %v1470, %v1488
        %v1510 = vmul.f32 %v1471, %v1488
        %v1511 = vmul.f32 %v1472, %v1488
        %v1512 = vmul.f32 %v1473, %v1488
        %v1513 = vmul.f32 %v1474, %v1488
        %v1514 = vmul.f32 %v1475, %v1488
        %v1515 = vmul.f32 %v1476, %v1488
        %v1516 = vmul.f32 %v1477, %v1488
        %v1517 = vmul.f32 %v1478, %v1488
        %v1518 = vmul.f32 %v1479, %v1488
        %v1519 = vmul.f32 %v1480, %v1488
        %v1520 = vmul.f32 %v1481, %v1488
        %v1521 = vmul.f32 %v1482, %v1488
        %vm1522 = vcmask 130048
        %v1523 = vsel %vm1522, %v1490, 0.0
        %1524 = vadd.xlane.f32.xlu0 %v1523
        %v1525 = vpop.xlane.xlu0 %1524
        %v1526 = vsel %vm1522, %v1491, 0.0
        %1527 = vadd.xlane.f32.xlu0 %v1526
        %v1528 = vpop.xlane.xlu0 %1527
        %v1529 = vsel %vm1522, %v1492, 0.0
        %1530 = vadd.xlane.f32.xlu0 %v1529
        %v1531 = vpop.xlane.xlu0 %1530
        %v1532 = vsel %vm1522, %v1493, 0.0
        %1533 = vadd.xlane.f32.xlu0 %v1532
        %v1534 = vpop.xlane.xlu0 %1533
        %v1535 = vsel %vm1522, %v1494, 0.0
        %1536 = vadd.xlane.f32.xlu0 %v1535
        %v1537 = vpop.xlane.xlu0 %1536
        %v1538 = vsel %vm1522, %v1495, 0.0
        %1539 = vadd.xlane.f32.xlu0 %v1538
        %v1540 = vpop.xlane.xlu0 %1539
        %v1541 = vsel %vm1522, %v1496, 0.0
        %1542 = vadd.xlane.f32.xlu0 %v1541
        %v1543 = vpop.xlane.xlu0 %1542
        %v1544 = vsel %vm1522, %v1497, 0.0
        %1545 = vadd.xlane.f32.xlu0 %v1544
        %v1546 = vpop.xlane.xlu0 %1545
        %v1547 = vsel %vm1522, %v1498, 0.0
        %1548 = vadd.xlane.f32.xlu0 %v1547
        %v1549 = vpop.xlane.xlu0 %1548
        %v1550 = vsel %vm1522, %v1499, 0.0
        %1551 = vadd.xlane.f32.xlu0 %v1550
        %v1552 = vpop.xlane.xlu0 %1551
        %v1553 = vsel %vm1522, %v1500, 0.0
        %1554 = vadd.xlane.f32.xlu0 %v1553
        %v1555 = vpop.xlane.xlu0 %1554
        %v1556 = vsel %vm1522, %v1501, 0.0
        %1557 = vadd.xlane.f32.xlu0 %v1556
        %v1558 = vpop.xlane.xlu0 %1557
        %v1559 = vsel %vm1522, %v1502, 0.0
        %1560 = vadd.xlane.f32.xlu0 %v1559
        %v1561 = vpop.xlane.xlu0 %1560
        %v1562 = vsel %vm1522, %v1503, 0.0
        %1563 = vadd.xlane.f32.xlu0 %v1562
        %v1564 = vpop.xlane.xlu0 %1563
        %v1565 = vsel %vm1522, %v1504, 0.0
        %1566 = vadd.xlane.f32.xlu0 %v1565
        %v1567 = vpop.xlane.xlu0 %1566
        %v1568 = vsel %vm1522, %v1505, 0.0
        %1569 = vadd.xlane.f32.xlu0 %v1568
        %v1570 = vpop.xlane.xlu0 %1569
        %v1571 = vsel %vm1522, %v1506, 0.0
        %1572 = vadd.xlane.f32.xlu0 %v1571
        %v1573 = vpop.xlane.xlu0 %1572
        %v1574 = vsel %vm1522, %v1507, 0.0
        %1575 = vadd.xlane.f32.xlu0 %v1574
        %v1576 = vpop.xlane.xlu0 %1575
        %v1577 = vsel %vm1522, %v1508, 0.0
        %1578 = vadd.xlane.f32.xlu0 %v1577
        %v1579 = vpop.xlane.xlu0 %1578
        %v1580 = vsel %vm1522, %v1509, 0.0
        %1581 = vadd.xlane.f32.xlu0 %v1580
        %v1582 = vpop.xlane.xlu0 %1581
        %v1583 = vsel %vm1522, %v1510, 0.0
        %1584 = vadd.xlane.f32.xlu0 %v1583
        %v1585 = vpop.xlane.xlu0 %1584
        %v1586 = vsel %vm1522, %v1511, 0.0
        %1587 = vadd.xlane.f32.xlu0 %v1586
        %v1588 = vpop.xlane.xlu0 %1587
        %v1589 = vsel %vm1522, %v1512, 0.0
        %1590 = vadd.xlane.f32.xlu0 %v1589
        %v1591 = vpop.xlane.xlu0 %1590
        %v1592 = vsel %vm1522, %v1513, 0.0
        %1593 = vadd.xlane.f32.xlu0 %v1592
        %v1594 = vpop.xlane.xlu0 %1593
        %v1595 = vsel %vm1522, %v1514, 0.0
        %1596 = vadd.xlane.f32.xlu0 %v1595
        %v1597 = vpop.xlane.xlu0 %1596
        %v1598 = vsel %vm1522, %v1515, 0.0
        %1599 = vadd.xlane.f32.xlu0 %v1598
        %v1600 = vpop.xlane.xlu0 %1599
        %v1601 = vsel %vm1522, %v1516, 0.0
        %1602 = vadd.xlane.f32.xlu0 %v1601
        %v1603 = vpop.xlane.xlu0 %1602
        %v1604 = vsel %vm1522, %v1517, 0.0
        %1605 = vadd.xlane.f32.xlu0 %v1604
        %v1606 = vpop.xlane.xlu0 %1605
        %v1607 = vsel %vm1522, %v1518, 0.0
        %1608 = vadd.xlane.f32.xlu0 %v1607
        %v1609 = vpop.xlane.xlu0 %1608
        %v1610 = vsel %vm1522, %v1519, 0.0
        %1611 = vadd.xlane.f32.xlu0 %v1610
        %v1612 = vpop.xlane.xlu0 %1611
        %v1613 = vsel %vm1522, %v1520, 0.0
        %1614 = vadd.xlane.f32.xlu0 %v1613
        %v1615 = vpop.xlane.xlu0 %1614
        %v1616 = vsel %vm1522, %v1521, 0.0
        %1617 = vadd.xlane.f32.xlu0 %v1616
        %v1618 = vpop.xlane.xlu0 %1617
        %v1619 = vld [vmem:[#allocation2] sm:$0x1]
        %v1621 = vlaneseq
        %v1622 = vshrl.u32 %v1621, 7
        %v1623 = vsub.s32 0, %v1622
        %v1624 = vrot.slane %v1619, %v1623
        %v1626 = vadd.f32 %v1525, %v1624
        %v1627 = vadd.f32 %v1528, %v1624
        %v1628 = vadd.f32 %v1531, %v1624
        %v1629 = vadd.f32 %v1534, %v1624
        %v1630 = vadd.f32 %v1537, %v1624
        %v1631 = vadd.f32 %v1540, %v1624
        %v1632 = vadd.f32 %v1543, %v1624
        %v1633 = vadd.f32 %v1546, %v1624
        %v1634 = vadd.f32 %v1549, %v1624
        %v1635 = vadd.f32 %v1552, %v1624
        %v1636 = vadd.f32 %v1555, %v1624
        %v1637 = vadd.f32 %v1558, %v1624
        %v1638 = vadd.f32 %v1561, %v1624
        %v1639 = vadd.f32 %v1564, %v1624
        %v1640 = vadd.f32 %v1567, %v1624
        %v1641 = vadd.f32 %v1570, %v1624
        %v1642 = vadd.f32 %v1573, %v1624
        %v1643 = vadd.f32 %v1576, %v1624
        %v1644 = vadd.f32 %v1579, %v1624
        %v1645 = vadd.f32 %v1582, %v1624
        %v1646 = vadd.f32 %v1585, %v1624
        %v1647 = vadd.f32 %v1588, %v1624
        %v1648 = vadd.f32 %v1591, %v1624
        %v1649 = vadd.f32 %v1594, %v1624
        %v1650 = vadd.f32 %v1597, %v1624
        %v1651 = vadd.f32 %v1600, %v1624
        %v1652 = vadd.f32 %v1603, %v1624
        %v1653 = vadd.f32 %v1606, %v1624
        %v1654 = vadd.f32 %v1609, %v1624
        %v1655 = vadd.f32 %v1612, %v1624
        %v1656 = vadd.f32 %v1615, %v1624
        %v1657 = vadd.f32 %v1618, %v1624
        %v1658 = vxor.u32 %v1626, 2147483648
        %v1659 = vxor.u32 %v1627, 2147483648
        %v1660 = vxor.u32 %v1628, 2147483648
        %v1661 = vxor.u32 %v1629, 2147483648
        %v1662 = vxor.u32 %v1630, 2147483648
        %v1663 = vxor.u32 %v1631, 2147483648
        %v1664 = vxor.u32 %v1632, 2147483648
        %v1665 = vxor.u32 %v1633, 2147483648
        %v1666 = vxor.u32 %v1634, 2147483648
        %v1667 = vxor.u32 %v1635, 2147483648
        %v1668 = vxor.u32 %v1636, 2147483648
        %v1669 = vxor.u32 %v1637, 2147483648
        %v1670 = vxor.u32 %v1638, 2147483648
        %v1671 = vxor.u32 %v1639, 2147483648
        %v1672 = vxor.u32 %v1640, 2147483648
        %v1673 = vxor.u32 %v1641, 2147483648
        %v1674 = vxor.u32 %v1642, 2147483648
        %v1675 = vxor.u32 %v1643, 2147483648
        %v1676 = vxor.u32 %v1644, 2147483648
        %v1677 = vxor.u32 %v1645, 2147483648
        %v1678 = vxor.u32 %v1646, 2147483648
        %v1679 = vxor.u32 %v1647, 2147483648
        %v1680 = vxor.u32 %v1648, 2147483648
        %v1681 = vxor.u32 %v1649, 2147483648
        %v1682 = vxor.u32 %v1650, 2147483648
        %v1683 = vxor.u32 %v1651, 2147483648
        %v1684 = vxor.u32 %v1652, 2147483648
        %v1685 = vxor.u32 %v1653, 2147483648
        %v1686 = vxor.u32 %v1654, 2147483648
        %v1687 = vxor.u32 %v1655, 2147483648
        %v1688 = vxor.u32 %v1656, 2147483648
        %v1689 = vxor.u32 %v1657, 2147483648
        %v1690 = vmul.f32 %v1658, 1.442695
        %v1691 = vpow.pop %v1690
        %v1692 = vmul.f32 %v1659, 1.442695
        %v1693 = vpow.pop %v1692
        %v1694 = vmul.f32 %v1660, 1.442695
        %v1695 = vpow.pop %v1694
        %v1696 = vmul.f32 %v1661, 1.442695
        %v1697 = vpow.pop %v1696
        %v1698 = vmul.f32 %v1662, 1.442695
        %v1699 = vpow.pop %v1698
        %v1700 = vmul.f32 %v1663, 1.442695
        %v1701 = vpow.pop %v1700
        %v1702 = vmul.f32 %v1664, 1.442695
        %v1703 = vpow.pop %v1702
        %v1704 = vmul.f32 %v1665, 1.442695
        %v1705 = vpow.pop %v1704
        %v1706 = vmul.f32 %v1666, 1.442695
        %v1707 = vpow.pop %v1706
        %v1708 = vmul.f32 %v1667, 1.442695
        %v1709 = vpow.pop %v1708
        %v1710 = vmul.f32 %v1668, 1.442695
        %v1711 = vpow.pop %v1710
        %v1712 = vmul.f32 %v1669, 1.442695
        %v1713 = vpow.pop %v1712
        %v1714 = vmul.f32 %v1670, 1.442695
        %v1715 = vpow.pop %v1714
        %v1716 = vmul.f32 %v1671, 1.442695
        %v1717 = vpow.pop %v1716
        %v1718 = vmul.f32 %v1672, 1.442695
        %v1719 = vpow.pop %v1718
        %v1720 = vmul.f32 %v1673, 1.442695
        %v1721 = vpow.pop %v1720
        %v1722 = vmul.f32 %v1674, 1.442695
        %v1723 = vpow.pop %v1722
        %v1724 = vmul.f32 %v1675, 1.442695
        %v1725 = vpow.pop %v1724
        %v1726 = vmul.f32 %v1676, 1.442695
        %v1727 = vpow.pop %v1726
        %v1728 = vmul.f32 %v1677, 1.442695
        %v1729 = vpow.pop %v1728
        %v1730 = vmul.f32 %v1678, 1.442695
        %v1731 = vpow.pop %v1730
        %v1732 = vmul.f32 %v1679, 1.442695
        %v1733 = vpow.pop %v1732
        %v1734 = vmul.f32 %v1680, 1.442695
        %v1735 = vpow.pop %v1734
        %v1736 = vmul.f32 %v1681, 1.442695
        %v1737 = vpow.pop %v1736
        %v1738 = vmul.f32 %v1682, 1.442695
        %v1739 = vpow.pop %v1738
        %v1740 = vmul.f32 %v1683, 1.442695
        %v1741 = vpow.pop %v1740
        %v1742 = vmul.f32 %v1684, 1.442695
        %v1743 = vpow.pop %v1742
        %v1744 = vmul.f32 %v1685, 1.442695
        %v1745 = vpow.pop %v1744
        %v1746 = vmul.f32 %v1686, 1.442695
        %v1747 = vpow.pop %v1746
        %v1748 = vmul.f32 %v1687, 1.442695
        %v1749 = vpow.pop %v1748
        %v1750 = vmul.f32 %v1688, 1.442695
        %v1751 = vpow.pop %v1750
        %v1752 = vmul.f32 %v1689, 1.442695
        %v1753 = vpow.pop %v1752
        %v1754 = vadd.f32 %v1691, 1.0
        %v1755 = vadd.f32 %v1693, 1.0
        %v1756 = vadd.f32 %v1695, 1.0
        %v1757 = vadd.f32 %v1697, 1.0
        %v1758 = vadd.f32 %v1699, 1.0
        %v1759 = vadd.f32 %v1701, 1.0
        %v1760 = vadd.f32 %v1703, 1.0
        %v1761 = vadd.f32 %v1705, 1.0
        %v1762 = vadd.f32 %v1707, 1.0
        %v1763 = vadd.f32 %v1709, 1.0
        %v1764 = vadd.f32 %v1711, 1.0
        %v1765 = vadd.f32 %v1713, 1.0
        %v1766 = vadd.f32 %v1715, 1.0
        %v1767 = vadd.f32 %v1717, 1.0
        %v1768 = vadd.f32 %v1719, 1.0
        %v1769 = vadd.f32 %v1721, 1.0
        %v1770 = vadd.f32 %v1723, 1.0
        %v1771 = vadd.f32 %v1725, 1.0
        %v1772 = vadd.f32 %v1727, 1.0
        %v1773 = vadd.f32 %v1729, 1.0
        %v1774 = vadd.f32 %v1731, 1.0
        %v1775 = vadd.f32 %v1733, 1.0
        %v1776 = vadd.f32 %v1735, 1.0
        %v1777 = vadd.f32 %v1737, 1.0
        %v1778 = vadd.f32 %v1739, 1.0
        %v1779 = vadd.f32 %v1741, 1.0
        %v1780 = vadd.f32 %v1743, 1.0
        %v1781 = vadd.f32 %v1745, 1.0
        %v1782 = vadd.f32 %v1747, 1.0
        %v1783 = vadd.f32 %v1749, 1.0
        %v1784 = vadd.f32 %v1751, 1.0
        %v1785 = vadd.f32 %v1753, 1.0
        %v1786 = vrcp.pop %v1754
        %v1787 = vmul.f32 1.0, %v1786
        %v1788 = vrcp.pop %v1755
        %v1789 = vmul.f32 1.0, %v1788
        %v1790 = vrcp.pop %v1756
        %v1791 = vmul.f32 1.0, %v1790
        %v1792 = vrcp.pop %v1757
        %v1793 = vmul.f32 1.0, %v1792
        %v1794 = vrcp.pop %v1758
        %v1795 = vmul.f32 1.0, %v1794
        %v1796 = vrcp.pop %v1759
        %v1797 = vmul.f32 1.0, %v1796
        %v1798 = vrcp.pop %v1760
        %v1799 = vmul.f32 1.0, %v1798
        %v1800 = vrcp.pop %v1761
        %v1801 = vmul.f32 1.0, %v1800
        %v1802 = vrcp.pop %v1762
        %v1803 = vmul.f32 1.0, %v1802
        %v1804 = vrcp.pop %v1763
        %v1805 = vmul.f32 1.0, %v1804
        %v1806 = vrcp.pop %v1764
        %v1807 = vmul.f32 1.0, %v1806
        %v1808 = vrcp.pop %v1765
        %v1809 = vmul.f32 1.0, %v1808
        %v1810 = vrcp.pop %v1766
        %v1811 = vmul.f32 1.0, %v1810
        %v1812 = vrcp.pop %v1767
        %v1813 = vmul.f32 1.0, %v1812
        %v1814 = vrcp.pop %v1768
        %v1815 = vmul.f32 1.0, %v1814
        %v1816 = vrcp.pop %v1769
        %v1817 = vmul.f32 1.0, %v1816
        %v1818 = vrcp.pop %v1770
        %v1819 = vmul.f32 1.0, %v1818
        %v1820 = vrcp.pop %v1771
        %v1821 = vmul.f32 1.0, %v1820
        %v1822 = vrcp.pop %v1772
        %v1823 = vmul.f32 1.0, %v1822
        %v1824 = vrcp.pop %v1773
        %v1825 = vmul.f32 1.0, %v1824
        %v1826 = vrcp.pop %v1774
        %v1827 = vmul.f32 1.0, %v1826
        %v1828 = vrcp.pop %v1775
        %v1829 = vmul.f32 1.0, %v1828
        %v1830 = vrcp.pop %v1776
        %v1831 = vmul.f32 1.0, %v1830
        %v1832 = vrcp.pop %v1777
        %v1833 = vmul.f32 1.0, %v1832
        %v1834 = vrcp.pop %v1778
        %v1835 = vmul.f32 1.0, %v1834
        %v1836 = vrcp.pop %v1779
        %v1837 = vmul.f32 1.0, %v1836
        %v1838 = vrcp.pop %v1780
        %v1839 = vmul.f32 1.0, %v1838
        %v1840 = vrcp.pop %v1781
        %v1841 = vmul.f32 1.0, %v1840
        %v1842 = vrcp.pop %v1782
        %v1843 = vmul.f32 1.0, %v1842
        %v1844 = vrcp.pop %v1783
        %v1845 = vmul.f32 1.0, %v1844
        %v1846 = vrcp.pop %v1784
        %v1847 = vmul.f32 1.0, %v1846
        %v1848 = vrcp.pop %v1785
        %v1849 = vmul.f32 1.0, %v1848
        %v1850 = vmul.f32 %v1787, 128.0
        %v1851 = vmul.f32 %v1789, 128.0
        %v1852 = vmul.f32 %v1791, 128.0
        %v1853 = vmul.f32 %v1793, 128.0
        %v1854 = vmul.f32 %v1795, 128.0
        %v1855 = vmul.f32 %v1797, 128.0
        %v1856 = vmul.f32 %v1799, 128.0
        %v1857 = vmul.f32 %v1801, 128.0
        %v1858 = vmul.f32 %v1803, 128.0
        %v1859 = vmul.f32 %v1805, 128.0
        %v1860 = vmul.f32 %v1807, 128.0
        %v1861 = vmul.f32 %v1809, 128.0
        %v1862 = vmul.f32 %v1811, 128.0
        %v1863 = vmul.f32 %v1813, 128.0
        %v1864 = vmul.f32 %v1815, 128.0
        %v1865 = vmul.f32 %v1817, 128.0
        %v1866 = vmul.f32 %v1819, 128.0
        %v1867 = vmul.f32 %v1821, 128.0
        %v1868 = vmul.f32 %v1823, 128.0
        %v1869 = vmul.f32 %v1825, 128.0
        %v1870 = vmul.f32 %v1827, 128.0
        %v1871 = vmul.f32 %v1829, 128.0
        %v1872 = vmul.f32 %v1831, 128.0
        %v1873 = vmul.f32 %v1833, 128.0
        %v1874 = vmul.f32 %v1835, 128.0
        %v1875 = vmul.f32 %v1837, 128.0
        %v1876 = vmul.f32 %v1839, 128.0
        %v1877 = vmul.f32 %v1841, 128.0
        %v1878 = vmul.f32 %v1843, 128.0
        %v1879 = vmul.f32 %v1845, 128.0
        %v1880 = vmul.f32 %v1847, 128.0
        %v1881 = vmul.f32 %v1849, 128.0
        %v1882 = vcvt.f32.s32.ties.to.even %v1850
        %v1883 = vcvt.f32.s32.ties.to.even %v1851
        %v1884 = vcvt.f32.s32.ties.to.even %v1852
        %v1885 = vcvt.f32.s32.ties.to.even %v1853
        %v1886 = vcvt.f32.s32.ties.to.even %v1854
        %v1887 = vcvt.f32.s32.ties.to.even %v1855
        %v1888 = vcvt.f32.s32.ties.to.even %v1856
        %v1889 = vcvt.f32.s32.ties.to.even %v1857
        %v1890 = vcvt.f32.s32.ties.to.even %v1858
        %v1891 = vcvt.f32.s32.ties.to.even %v1859
        %v1892 = vcvt.f32.s32.ties.to.even %v1860
        %v1893 = vcvt.f32.s32.ties.to.even %v1861
        %v1894 = vcvt.f32.s32.ties.to.even %v1862
        %v1895 = vcvt.f32.s32.ties.to.even %v1863
        %v1896 = vcvt.f32.s32.ties.to.even %v1864
        %v1897 = vcvt.f32.s32.ties.to.even %v1865
        %v1898 = vcvt.f32.s32.ties.to.even %v1866
        %v1899 = vcvt.f32.s32.ties.to.even %v1867
        %v1900 = vcvt.f32.s32.ties.to.even %v1868
        %v1901 = vcvt.f32.s32.ties.to.even %v1869
        %v1902 = vcvt.f32.s32.ties.to.even %v1870
        %v1903 = vcvt.f32.s32.ties.to.even %v1871
        %v1904 = vcvt.f32.s32.ties.to.even %v1872
        %v1905 = vcvt.f32.s32.ties.to.even %v1873
        %v1906 = vcvt.f32.s32.ties.to.even %v1874
        %v1907 = vcvt.f32.s32.ties.to.even %v1875
        %v1908 = vcvt.f32.s32.ties.to.even %v1876
        %v1909 = vcvt.f32.s32.ties.to.even %v1877
        %v1910 = vcvt.f32.s32.ties.to.even %v1878
        %v1911 = vcvt.f32.s32.ties.to.even %v1879
        %v1912 = vcvt.f32.s32.ties.to.even %v1880
        %v1913 = vcvt.f32.s32.ties.to.even %v1881
        %v1914 = vand.u32 %v1882, 127
        %v1915 = vand.u32 %v1883, 127
        %v1916 = vand.u32 %v1884, 127
        %v1917 = vand.u32 %v1885, 127
        %v1918 = vand.u32 %v1886, 127
        %v1919 = vand.u32 %v1887, 127
        %v1920 = vand.u32 %v1888, 127
        %v1921 = vand.u32 %v1889, 127
        %v1922 = vand.u32 %v1890, 127
        %v1923 = vand.u32 %v1891, 127
        %v1924 = vand.u32 %v1892, 127
        %v1925 = vand.u32 %v1893, 127
        %v1926 = vand.u32 %v1894, 127
        %v1927 = vand.u32 %v1895, 127
        %v1928 = vand.u32 %v1896, 127
        %v1929 = vand.u32 %v1897, 127
        %v1930 = vand.u32 %v1898, 127
        %v1931 = vand.u32 %v1899, 127
        %v1932 = vand.u32 %v1900, 127
        %v1933 = vand.u32 %v1901, 127
        %v1934 = vand.u32 %v1902, 127
        %v1935 = vand.u32 %v1903, 127
        %v1936 = vand.u32 %v1904, 127
        %v1937 = vand.u32 %v1905, 127
        %v1938 = vand.u32 %v1906, 127
        %v1939 = vand.u32 %v1907, 127
        %v1940 = vand.u32 %v1908, 127
        %v1941 = vand.u32 %v1909, 127
        %v1942 = vand.u32 %v1910, 127
        %v1943 = vand.u32 %v1911, 127
        %v1944 = vand.u32 %v1912, 127
        %v1945 = vand.u32 %v1913, 127
        %1946 = vrot.lane.b32.xlu0 %v421, 1
        %v1947 = vpop.permute.xlu0 %1946
        %1948 = vrot.lane.b32.xlu0 %v422, 1
        %v1949 = vpop.permute.xlu0 %1948
        %1950 = vrot.lane.b32.xlu0 %v423, 1
        %v1951 = vpop.permute.xlu0 %1950
        %1952 = vrot.lane.b32.xlu0 %v424, 1
        %v1953 = vpop.permute.xlu0 %1952
        %1954 = vrot.lane.b32.xlu0 %v425, 1
        %v1955 = vpop.permute.xlu0 %1954
        %1956 = vrot.lane.b32.xlu0 %v426, 1
        %v1957 = vpop.permute.xlu0 %1956
        %1958 = vrot.lane.b32.xlu0 %v427, 1
        %v1959 = vpop.permute.xlu0 %1958
        %1960 = vrot.lane.b32.xlu0 %v428, 1
        %v1961 = vpop.permute.xlu0 %1960
        %1962 = vrot.lane.b32.xlu0 %v429, 1
        %v1963 = vpop.permute.xlu0 %1962
        %1964 = vrot.lane.b32.xlu0 %v430, 1
        %v1965 = vpop.permute.xlu0 %1964
        %1966 = vrot.lane.b32.xlu0 %v431, 1
        %v1967 = vpop.permute.xlu0 %1966
        %1968 = vrot.lane.b32.xlu0 %v432, 1
        %v1969 = vpop.permute.xlu0 %1968
        %1970 = vrot.lane.b32.xlu0 %v433, 1
        %v1971 = vpop.permute.xlu0 %1970
        %1972 = vrot.lane.b32.xlu0 %v434, 1
        %v1973 = vpop.permute.xlu0 %1972
        %1974 = vrot.lane.b32.xlu0 %v435, 1
        %v1975 = vpop.permute.xlu0 %1974
        %1976 = vrot.lane.b32.xlu0 %v436, 1
        %v1977 = vpop.permute.xlu0 %1976
        %1978 = vrot.lane.b32.xlu0 %v453, 1
        %v1979 = vpop.permute.xlu0 %1978
        %1980 = vrot.lane.b32.xlu0 %v454, 1
        %v1981 = vpop.permute.xlu0 %1980
        %1982 = vrot.lane.b32.xlu0 %v455, 1
        %v1983 = vpop.permute.xlu0 %1982
        %1984 = vrot.lane.b32.xlu0 %v456, 1
        %v1985 = vpop.permute.xlu0 %1984
        %1986 = vrot.lane.b32.xlu0 %v457, 1
        %v1987 = vpop.permute.xlu0 %1986
        %1988 = vrot.lane.b32.xlu0 %v458, 1
        %v1989 = vpop.permute.xlu0 %1988
        %1990 = vrot.lane.b32.xlu0 %v459, 1
        %v1991 = vpop.permute.xlu0 %1990
        %1992 = vrot.lane.b32.xlu0 %v460, 1
        %v1993 = vpop.permute.xlu0 %1992
        %1994 = vrot.lane.b32.xlu0 %v461, 1
        %v1995 = vpop.permute.xlu0 %1994
        %1996 = vrot.lane.b32.xlu0 %v462, 1
        %v1997 = vpop.permute.xlu0 %1996
        %1998 = vrot.lane.b32.xlu0 %v463, 1
        %v1999 = vpop.permute.xlu0 %1998
        %2000 = vrot.lane.b32.xlu0 %v464, 1
        %v2001 = vpop.permute.xlu0 %2000
        %2002 = vrot.lane.b32.xlu0 %v465, 1
        %v2003 = vpop.permute.xlu0 %2002
        %2004 = vrot.lane.b32.xlu0 %v466, 1
        %v2005 = vpop.permute.xlu0 %2004
        %2006 = vrot.lane.b32.xlu0 %v467, 1
        %v2007 = vpop.permute.xlu0 %2006
        %2008 = vrot.lane.b32.xlu0 %v468, 1
        %v2009 = vpop.permute.xlu0 %2008
        %v2010 = vand.u32 %v1914, 1
        %v2011 = vand.u32 %v1915, 1
        %v2012 = vand.u32 %v1916, 1
        %v2013 = vand.u32 %v1917, 1
        %v2014 = vand.u32 %v1918, 1
        %v2015 = vand.u32 %v1919, 1
        %v2016 = vand.u32 %v1920, 1
        %v2017 = vand.u32 %v1921, 1
        %v2018 = vand.u32 %v1922, 1
        %v2019 = vand.u32 %v1923, 1
        %v2020 = vand.u32 %v1924, 1
        %v2021 = vand.u32 %v1925, 1
        %v2022 = vand.u32 %v1926, 1
        %v2023 = vand.u32 %v1927, 1
        %v2024 = vand.u32 %v1928, 1
        %v2025 = vand.u32 %v1929, 1
        %v2026 = vand.u32 %v1930, 1
        %v2027 = vand.u32 %v1931, 1
        %v2028 = vand.u32 %v1932, 1
        %v2029 = vand.u32 %v1933, 1
        %v2030 = vand.u32 %v1934, 1
        %v2031 = vand.u32 %v1935, 1
        %v2032 = vand.u32 %v1936, 1
        %v2033 = vand.u32 %v1937, 1
        %v2034 = vand.u32 %v1938, 1
        %v2035 = vand.u32 %v1939, 1
        %v2036 = vand.u32 %v1940, 1
        %v2037 = vand.u32 %v1941, 1
        %v2038 = vand.u32 %v1942, 1
        %v2039 = vand.u32 %v1943, 1
        %v2040 = vand.u32 %v1944, 1
        %v2041 = vand.u32 %v1945, 1
        %vm2042 = vcmp.gt.s32.totalorder %v2010, 0
        %vm2043 = vcmp.gt.s32.totalorder %v2011, 0
        %vm2044 = vcmp.gt.s32.totalorder %v2012, 0
        %vm2045 = vcmp.gt.s32.totalorder %v2013, 0
        %vm2046 = vcmp.gt.s32.totalorder %v2014, 0
        %vm2047 = vcmp.gt.s32.totalorder %v2015, 0
        %vm2048 = vcmp.gt.s32.totalorder %v2016, 0
        %vm2049 = vcmp.gt.s32.totalorder %v2017, 0
        %vm2050 = vcmp.gt.s32.totalorder %v2018, 0
        %vm2051 = vcmp.gt.s32.totalorder %v2019, 0
        %vm2052 = vcmp.gt.s32.totalorder %v2020, 0
        %vm2053 = vcmp.gt.s32.totalorder %v2021, 0
        %vm2054 = vcmp.gt.s32.totalorder %v2022, 0
        %vm2055 = vcmp.gt.s32.totalorder %v2023, 0
        %vm2056 = vcmp.gt.s32.totalorder %v2024, 0
        %vm2057 = vcmp.gt.s32.totalorder %v2025, 0
        %vm2058 = vcmp.gt.s32.totalorder %v2026, 0
        %vm2059 = vcmp.gt.s32.totalorder %v2027, 0
        %vm2060 = vcmp.gt.s32.totalorder %v2028, 0
        %vm2061 = vcmp.gt.s32.totalorder %v2029, 0
        %vm2062 = vcmp.gt.s32.totalorder %v2030, 0
        %vm2063 = vcmp.gt.s32.totalorder %v2031, 0
        %vm2064 = vcmp.gt.s32.totalorder %v2032, 0
        %vm2065 = vcmp.gt.s32.totalorder %v2033, 0
        %vm2066 = vcmp.gt.s32.totalorder %v2034, 0
        %vm2067 = vcmp.gt.s32.totalorder %v2035, 0
        %vm2068 = vcmp.gt.s32.totalorder %v2036, 0
        %vm2069 = vcmp.gt.s32.totalorder %v2037, 0
        %vm2070 = vcmp.gt.s32.totalorder %v2038, 0
        %vm2071 = vcmp.gt.s32.totalorder %v2039, 0
        %vm2072 = vcmp.gt.s32.totalorder %v2040, 0
        %vm2073 = vcmp.gt.s32.totalorder %v2041, 0
        %v2074 = vsel %vm2042, 1, 0
        %v2075 = vsel %vm2043, 1, 0
        %v2076 = vsel %vm2044, 1, 0
        %v2077 = vsel %vm2045, 1, 0
        %v2078 = vsel %vm2046, 1, 0
        %v2079 = vsel %vm2047, 1, 0
        %v2080 = vsel %vm2048, 1, 0
        %v2081 = vsel %vm2049, 1, 0
        %v2082 = vsel %vm2050, 1, 0
        %v2083 = vsel %vm2051, 1, 0
        %v2084 = vsel %vm2052, 1, 0
        %v2085 = vsel %vm2053, 1, 0
        %v2086 = vsel %vm2054, 1, 0
        %v2087 = vsel %vm2055, 1, 0
        %v2088 = vsel %vm2056, 1, 0
        %v2089 = vsel %vm2057, 1, 0
        %v2090 = vsel %vm2058, 1, 0
        %v2091 = vsel %vm2059, 1, 0
        %v2092 = vsel %vm2060, 1, 0
        %v2093 = vsel %vm2061, 1, 0
        %v2094 = vsel %vm2062, 1, 0
        %v2095 = vsel %vm2063, 1, 0
        %v2096 = vsel %vm2064, 1, 0
        %v2097 = vsel %vm2065, 1, 0
        %v2098 = vsel %vm2066, 1, 0
        %v2099 = vsel %vm2067, 1, 0
        %v2100 = vsel %vm2068, 1, 0
        %v2101 = vsel %vm2069, 1, 0
        %v2102 = vsel %vm2070, 1, 0
        %v2103 = vsel %vm2071, 1, 0
        %v2104 = vsel %vm2072, 1, 0
        %v2105 = vsel %vm2073, 1, 0
        %2106 = vset.pattern.permute.xlu0 0
        %2107 = vperm.xlu0 %2106, %v2074
        %v2108 = vpop.permute.xlu0 %2107
        %2109 = vset.pattern.permute.xlu0 0
        %2110 = vperm.xlu0 %2109, %v2075
        %v2111 = vpop.permute.xlu0 %2110
        %2112 = vset.pattern.permute.xlu0 0
        %2113 = vperm.xlu0 %2112, %v2076
        %v2114 = vpop.permute.xlu0 %2113
        %2115 = vset.pattern.permute.xlu0 0
        %2116 = vperm.xlu0 %2115, %v2077
        %v2117 = vpop.permute.xlu0 %2116
        %2118 = vset.pattern.permute.xlu0 0
        %2119 = vperm.xlu0 %2118, %v2078
        %v2120 = vpop.permute.xlu0 %2119
        %2121 = vset.pattern.permute.xlu0 0
        %2122 = vperm.xlu0 %2121, %v2079
        %v2123 = vpop.permute.xlu0 %2122
        %2124 = vset.pattern.permute.xlu0 0
        %2125 = vperm.xlu0 %2124, %v2080
        %v2126 = vpop.permute.xlu0 %2125
        %2127 = vset.pattern.permute.xlu0 0
        %2128 = vperm.xlu0 %2127, %v2081
        %v2129 = vpop.permute.xlu0 %2128
        %2130 = vset.pattern.permute.xlu0 0
        %2131 = vperm.xlu0 %2130, %v2082
        %v2132 = vpop.permute.xlu0 %2131
        %2133 = vset.pattern.permute.xlu0 0
        %2134 = vperm.xlu0 %2133, %v2083
        %v2135 = vpop.permute.xlu0 %2134
        %2136 = vset.pattern.permute.xlu0 0
        %2137 = vperm.xlu0 %2136, %v2084
        %v2138 = vpop.permute.xlu0 %2137
        %2139 = vset.pattern.permute.xlu0 0
        %2140 = vperm.xlu0 %2139, %v2085
        %v2141 = vpop.permute.xlu0 %2140
        %2142 = vset.pattern.permute.xlu0 0
        %2143 = vperm.xlu0 %2142, %v2086
        %v2144 = vpop.permute.xlu0 %2143
        %2145 = vset.pattern.permute.xlu0 0
        %2146 = vperm.xlu0 %2145, %v2087
        %v2147 = vpop.permute.xlu0 %2146
        %2148 = vset.pattern.permute.xlu0 0
        %2149 = vperm.xlu0 %2148, %v2088
        %v2150 = vpop.permute.xlu0 %2149
        %2151 = vset.pattern.permute.xlu0 0
        %2152 = vperm.xlu0 %2151, %v2089
        %v2153 = vpop.permute.xlu0 %2152
        %2154 = vset.pattern.permute.xlu0 0
        %2155 = vperm.xlu0 %2154, %v2090
        %v2156 = vpop.permute.xlu0 %2155
        %2157 = vset.pattern.permute.xlu0 0
        %2158 = vperm.xlu0 %2157, %v2091
        %v2159 = vpop.permute.xlu0 %2158
        %2160 = vset.pattern.permute.xlu0 0
        %2161 = vperm.xlu0 %2160, %v2092
        %v2162 = vpop.permute.xlu0 %2161
        %2163 = vset.pattern.permute.xlu0 0
        %2164 = vperm.xlu0 %2163, %v2093
        %v2165 = vpop.permute.xlu0 %2164
        %2166 = vset.pattern.permute.xlu0 0
        %2167 = vperm.xlu0 %2166, %v2094
        %v2168 = vpop.permute.xlu0 %2167
        %2169 = vset.pattern.permute.xlu0 0
        %2170 = vperm.xlu0 %2169, %v2095
        %v2171 = vpop.permute.xlu0 %2170
        %2172 = vset.pattern.permute.xlu0 0
        %2173 = vperm.xlu0 %2172, %v2096
        %v2174 = vpop.permute.xlu0 %2173
        %2175 = vset.pattern.permute.xlu0 0
        %2176 = vperm.xlu0 %2175, %v2097
        %v2177 = vpop.permute.xlu0 %2176
        %2178 = vset.pattern.permute.xlu0 0
        %2179 = vperm.xlu0 %2178, %v2098
        %v2180 = vpop.permute.xlu0 %2179
        %2181 = vset.pattern.permute.xlu0 0
        %2182 = vperm.xlu0 %2181, %v2099
        %v2183 = vpop.permute.xlu0 %2182
        %2184 = vset.pattern.permute.xlu0 0
        %2185 = vperm.xlu0 %2184, %v2100
        %v2186 = vpop.permute.xlu0 %2185
        %2187 = vset.pattern.permute.xlu0 0
        %2188 = vperm.xlu0 %2187, %v2101
        %v2189 = vpop.permute.xlu0 %2188
        %2190 = vset.pattern.permute.xlu0 0
        %2191 = vperm.xlu0 %2190, %v2102
        %v2192 = vpop.permute.xlu0 %2191
        %2193 = vset.pattern.permute.xlu0 0
        %2194 = vperm.xlu0 %2193, %v2103
        %v2195 = vpop.permute.xlu0 %2194
        %2196 = vset.pattern.permute.xlu0 0
        %2197 = vperm.xlu0 %2196, %v2104
        %v2198 = vpop.permute.xlu0 %2197
        %2199 = vset.pattern.permute.xlu0 0
        %2200 = vperm.xlu0 %2199, %v2105
        %v2201 = vpop.permute.xlu0 %2200
        %vm2202 = vcmp.eq.s32.totalorder %v2108, 1
        %vm2203 = vcmp.eq.s32.totalorder %v2111, 1
        %vm2204 = vcmp.eq.s32.totalorder %v2114, 1
        %vm2205 = vcmp.eq.s32.totalorder %v2117, 1
        %vm2206 = vcmp.eq.s32.totalorder %v2120, 1
        %vm2207 = vcmp.eq.s32.totalorder %v2123, 1
        %vm2208 = vcmp.eq.s32.totalorder %v2126, 1
        %vm2209 = vcmp.eq.s32.totalorder %v2129, 1
        %vm2210 = vcmp.eq.s32.totalorder %v2132, 1
        %vm2211 = vcmp.eq.s32.totalorder %v2135, 1
        %vm2212 = vcmp.eq.s32.totalorder %v2138, 1
        %vm2213 = vcmp.eq.s32.totalorder %v2141, 1
        %vm2214 = vcmp.eq.s32.totalorder %v2144, 1
        %vm2215 = vcmp.eq.s32.totalorder %v2147, 1
        %vm2216 = vcmp.eq.s32.totalorder %v2150, 1
        %vm2217 = vcmp.eq.s32.totalorder %v2153, 1
        %vm2218 = vcmp.eq.s32.totalorder %v2156, 1
        %vm2219 = vcmp.eq.s32.totalorder %v2159, 1
        %vm2220 = vcmp.eq.s32.totalorder %v2162, 1
        %vm2221 = vcmp.eq.s32.totalorder %v2165, 1
        %vm2222 = vcmp.eq.s32.totalorder %v2168, 1
        %vm2223 = vcmp.eq.s32.totalorder %v2171, 1
        %vm2224 = vcmp.eq.s32.totalorder %v2174, 1
        %vm2225 = vcmp.eq.s32.totalorder %v2177, 1
        %vm2226 = vcmp.eq.s32.totalorder %v2180, 1
        %vm2227 = vcmp.eq.s32.totalorder %v2183, 1
        %vm2228 = vcmp.eq.s32.totalorder %v2186, 1
        %vm2229 = vcmp.eq.s32.totalorder %v2189, 1
        %vm2230 = vcmp.eq.s32.totalorder %v2192, 1
        %vm2231 = vcmp.eq.s32.totalorder %v2195, 1
        %vm2232 = vcmp.eq.s32.totalorder %v2198, 1
        %vm2233 = vcmp.eq.s32.totalorder %v2201, 1
        %v2234 = vsel %vm2202, %v1947, %v421
        %v2235 = vsel %vm2203, %v1949, %v422
        %v2236 = vsel %vm2204, %v1951, %v423
        %v2237 = vsel %vm2205, %v1953, %v424
        %v2238 = vsel %vm2206, %v1955, %v425
        %v2239 = vsel %vm2207, %v1957, %v426
        %v2240 = vsel %vm2208, %v1959, %v427
        %v2241 = vsel %vm2209, %v1961, %v428
        %v2242 = vsel %vm2210, %v1963, %v429
        %v2243 = vsel %vm2211, %v1965, %v430
        %v2244 = vsel %vm2212, %v1967, %v431
        %v2245 = vsel %vm2213, %v1969, %v432
        %v2246 = vsel %vm2214, %v1971, %v433
        %v2247 = vsel %vm2215, %v1973, %v434
        %v2248 = vsel %vm2216, %v1975, %v435
        %v2249 = vsel %vm2217, %v1977, %v436
        %v2250 = vsel %vm2218, %v1979, %v453
        %v2251 = vsel %vm2219, %v1981, %v454
        %v2252 = vsel %vm2220, %v1983, %v455
        %v2253 = vsel %vm2221, %v1985, %v456
        %v2254 = vsel %vm2222, %v1987, %v457
        %v2255 = vsel %vm2223, %v1989, %v458
        %v2256 = vsel %vm2224, %v1991, %v459
        %v2257 = vsel %vm2225, %v1993, %v460
        %v2258 = vsel %vm2226, %v1995, %v461
        %v2259 = vsel %vm2227, %v1997, %v462
        %v2260 = vsel %vm2228, %v1999, %v463
        %v2261 = vsel %vm2229, %v2001, %v464
        %v2262 = vsel %vm2230, %v2003, %v465
        %v2263 = vsel %vm2231, %v2005, %v466
        %v2264 = vsel %vm2232, %v2007, %v467
        %v2265 = vsel %vm2233, %v2009, %v468
        %2266 = vrot.lane.b32.xlu0 %v2234, 2
        %v2267 = vpop.permute.xlu0 %2266
        %2268 = vrot.lane.b32.xlu0 %v2235, 2
        %v2269 = vpop.permute.xlu0 %2268
        %2270 = vrot.lane.b32.xlu0 %v2236, 2
        %v2271 = vpop.permute.xlu0 %2270
        %2272 = vrot.lane.b32.xlu0 %v2237, 2
        %v2273 = vpop.permute.xlu0 %2272
        %2274 = vrot.lane.b32.xlu0 %v2238, 2
        %v2275 = vpop.permute.xlu0 %2274
        %2276 = vrot.lane.b32.xlu0 %v2239, 2
        %v2277 = vpop.permute.xlu0 %2276
        %2278 = vrot.lane.b32.xlu0 %v2240, 2
        %v2279 = vpop.permute.xlu0 %2278
        %2280 = vrot.lane.b32.xlu0 %v2241, 2
        %v2281 = vpop.permute.xlu0 %2280
        %2282 = vrot.lane.b32.xlu0 %v2242, 2
        %v2283 = vpop.permute.xlu0 %2282
        %2284 = vrot.lane.b32.xlu0 %v2243, 2
        %v2285 = vpop.permute.xlu0 %2284
        %2286 = vrot.lane.b32.xlu0 %v2244, 2
        %v2287 = vpop.permute.xlu0 %2286
        %2288 = vrot.lane.b32.xlu0 %v2245, 2
        %v2289 = vpop.permute.xlu0 %2288
        %2290 = vrot.lane.b32.xlu0 %v2246, 2
        %v2291 = vpop.permute.xlu0 %2290
        %2292 = vrot.lane.b32.xlu0 %v2247, 2
        %v2293 = vpop.permute.xlu0 %2292
        %2294 = vrot.lane.b32.xlu0 %v2248, 2
        %v2295 = vpop.permute.xlu0 %2294
        %2296 = vrot.lane.b32.xlu0 %v2249, 2
        %v2297 = vpop.permute.xlu0 %2296
        %2298 = vrot.lane.b32.xlu0 %v2250, 2
        %v2299 = vpop.permute.xlu0 %2298
        %2300 = vrot.lane.b32.xlu0 %v2251, 2
        %v2301 = vpop.permute.xlu0 %2300
        %2302 = vrot.lane.b32.xlu0 %v2252, 2
        %v2303 = vpop.permute.xlu0 %2302
        %2304 = vrot.lane.b32.xlu0 %v2253, 2
        %v2305 = vpop.permute.xlu0 %2304
        %2306 = vrot.lane.b32.xlu0 %v2254, 2
        %v2307 = vpop.permute.xlu0 %2306
        %2308 = vrot.lane.b32.xlu0 %v2255, 2
        %v2309 = vpop.permute.xlu0 %2308
        %2310 = vrot.lane.b32.xlu0 %v2256, 2
        %v2311 = vpop.permute.xlu0 %2310
        %2312 = vrot.lane.b32.xlu0 %v2257, 2
        %v2313 = vpop.permute.xlu0 %2312
        %2314 = vrot.lane.b32.xlu0 %v2258, 2
        %v2315 = vpop.permute.xlu0 %2314
        %2316 = vrot.lane.b32.xlu0 %v2259, 2
        %v2317 = vpop.permute.xlu0 %2316
        %2318 = vrot.lane.b32.xlu0 %v2260, 2
        %v2319 = vpop.permute.xlu0 %2318
        %2320 = vrot.lane.b32.xlu0 %v2261, 2
        %v2321 = vpop.permute.xlu0 %2320
        %2322 = vrot.lane.b32.xlu0 %v2262, 2
        %v2323 = vpop.permute.xlu0 %2322
        %2324 = vrot.lane.b32.xlu0 %v2263, 2
        %v2325 = vpop.permute.xlu0 %2324
        %2326 = vrot.lane.b32.xlu0 %v2264, 2
        %v2327 = vpop.permute.xlu0 %2326
        %2328 = vrot.lane.b32.xlu0 %v2265, 2
        %v2329 = vpop.permute.xlu0 %2328
        %v2330 = vshra.s32 %v1914, 1
        %v2331 = vshra.s32 %v1915, 1
        %v2332 = vshra.s32 %v1916, 1
        %v2333 = vshra.s32 %v1917, 1
        %v2334 = vshra.s32 %v1918, 1
        %v2335 = vshra.s32 %v1919, 1
        %v2336 = vshra.s32 %v1920, 1
        %v2337 = vshra.s32 %v1921, 1
        %v2338 = vshra.s32 %v1922, 1
        %v2339 = vshra.s32 %v1923, 1
        %v2340 = vshra.s32 %v1924, 1
        %v2341 = vshra.s32 %v1925, 1
        %v2342 = vshra.s32 %v1926, 1
        %v2343 = vshra.s32 %v1927, 1
        %v2344 = vshra.s32 %v1928, 1
        %v2345 = vshra.s32 %v1929, 1
        %v2346 = vshra.s32 %v1930, 1
        %v2347 = vshra.s32 %v1931, 1
        %v2348 = vshra.s32 %v1932, 1
        %v2349 = vshra.s32 %v1933, 1
        %v2350 = vshra.s32 %v1934, 1
        %v2351 = vshra.s32 %v1935, 1
        %v2352 = vshra.s32 %v1936, 1
        %v2353 = vshra.s32 %v1937, 1
        %v2354 = vshra.s32 %v1938, 1
        %v2355 = vshra.s32 %v1939, 1
        %v2356 = vshra.s32 %v1940, 1
        %v2357 = vshra.s32 %v1941, 1
        %v2358 = vshra.s32 %v1942, 1
        %v2359 = vshra.s32 %v1943, 1
        %v2360 = vshra.s32 %v1944, 1
        %v2361 = vshra.s32 %v1945, 1
        %v2362 = vand.u32 %v2330, 1
        %v2363 = vand.u32 %v2331, 1
        %v2364 = vand.u32 %v2332, 1
        %v2365 = vand.u32 %v2333, 1
        %v2366 = vand.u32 %v2334, 1
        %v2367 = vand.u32 %v2335, 1
        %v2368 = vand.u32 %v2336, 1
        %v2369 = vand.u32 %v2337, 1
        %v2370 = vand.u32 %v2338, 1
        %v2371 = vand.u32 %v2339, 1
        %v2372 = vand.u32 %v2340, 1
        %v2373 = vand.u32 %v2341, 1
        %v2374 = vand.u32 %v2342, 1
        %v2375 = vand.u32 %v2343, 1
        %v2376 = vand.u32 %v2344, 1
        %v2377 = vand.u32 %v2345, 1
        %v2378 = vand.u32 %v2346, 1
        %v2379 = vand.u32 %v2347, 1
        %v2380 = vand.u32 %v2348, 1
        %v2381 = vand.u32 %v2349, 1
        %v2382 = vand.u32 %v2350, 1
        %v2383 = vand.u32 %v2351, 1
        %v2384 = vand.u32 %v2352, 1
        %v2385 = vand.u32 %v2353, 1
        %v2386 = vand.u32 %v2354, 1
        %v2387 = vand.u32 %v2355, 1
        %v2388 = vand.u32 %v2356, 1
        %v2389 = vand.u32 %v2357, 1
        %v2390 = vand.u32 %v2358, 1
        %v2391 = vand.u32 %v2359, 1
        %v2392 = vand.u32 %v2360, 1
        %v2393 = vand.u32 %v2361, 1
        %vm2394 = vcmp.gt.s32.totalorder %v2362, 0
        %vm2395 = vcmp.gt.s32.totalorder %v2363, 0
        %vm2396 = vcmp.gt.s32.totalorder %v2364, 0
        %vm2397 = vcmp.gt.s32.totalorder %v2365, 0
        %vm2398 = vcmp.gt.s32.totalorder %v2366, 0
        %vm2399 = vcmp.gt.s32.totalorder %v2367, 0
        %vm2400 = vcmp.gt.s32.totalorder %v2368, 0
        %vm2401 = vcmp.gt.s32.totalorder %v2369, 0
        %vm2402 = vcmp.gt.s32.totalorder %v2370, 0
        %vm2403 = vcmp.gt.s32.totalorder %v2371, 0
        %vm2404 = vcmp.gt.s32.totalorder %v2372, 0
        %vm2405 = vcmp.gt.s32.totalorder %v2373, 0
        %vm2406 = vcmp.gt.s32.totalorder %v2374, 0
        %vm2407 = vcmp.gt.s32.totalorder %v2375, 0
        %vm2408 = vcmp.gt.s32.totalorder %v2376, 0
        %vm2409 = vcmp.gt.s32.totalorder %v2377, 0
        %vm2410 = vcmp.gt.s32.totalorder %v2378, 0
        %vm2411 = vcmp.gt.s32.totalorder %v2379, 0
        %vm2412 = vcmp.gt.s32.totalorder %v2380, 0
        %vm2413 = vcmp.gt.s32.totalorder %v2381, 0
        %vm2414 = vcmp.gt.s32.totalorder %v2382, 0
        %vm2415 = vcmp.gt.s32.totalorder %v2383, 0
        %vm2416 = vcmp.gt.s32.totalorder %v2384, 0
        %vm2417 = vcmp.gt.s32.totalorder %v2385, 0
        %vm2418 = vcmp.gt.s32.totalorder %v2386, 0
        %vm2419 = vcmp.gt.s32.totalorder %v2387, 0
        %vm2420 = vcmp.gt.s32.totalorder %v2388, 0
        %vm2421 = vcmp.gt.s32.totalorder %v2389, 0
        %vm2422 = vcmp.gt.s32.totalorder %v2390, 0
        %vm2423 = vcmp.gt.s32.totalorder %v2391, 0
        %vm2424 = vcmp.gt.s32.totalorder %v2392, 0
        %vm2425 = vcmp.gt.s32.totalorder %v2393, 0
        %v2426 = vsel %vm2394, 1, 0
        %v2427 = vsel %vm2395, 1, 0
        %v2428 = vsel %vm2396, 1, 0
        %v2429 = vsel %vm2397, 1, 0
        %v2430 = vsel %vm2398, 1, 0
        %v2431 = vsel %vm2399, 1, 0
        %v2432 = vsel %vm2400, 1, 0
        %v2433 = vsel %vm2401, 1, 0
        %v2434 = vsel %vm2402, 1, 0
        %v2435 = vsel %vm2403, 1, 0
        %v2436 = vsel %vm2404, 1, 0
        %v2437 = vsel %vm2405, 1, 0
        %v2438 = vsel %vm2406, 1, 0
        %v2439 = vsel %vm2407, 1, 0
        %v2440 = vsel %vm2408, 1, 0
        %v2441 = vsel %vm2409, 1, 0
        %v2442 = vsel %vm2410, 1, 0
        %v2443 = vsel %vm2411, 1, 0
        %v2444 = vsel %vm2412, 1, 0
        %v2445 = vsel %vm2413, 1, 0
        %v2446 = vsel %vm2414, 1, 0
        %v2447 = vsel %vm2415, 1, 0
        %v2448 = vsel %vm2416, 1, 0
        %v2449 = vsel %vm2417, 1, 0
        %v2450 = vsel %vm2418, 1, 0
        %v2451 = vsel %vm2419, 1, 0
        %v2452 = vsel %vm2420, 1, 0
        %v2453 = vsel %vm2421, 1, 0
        %v2454 = vsel %vm2422, 1, 0
        %v2455 = vsel %vm2423, 1, 0
        %v2456 = vsel %vm2424, 1, 0
        %v2457 = vsel %vm2425, 1, 0
        %2458 = vset.pattern.permute.xlu0 0
        %2459 = vperm.xlu0 %2458, %v2426
        %v2460 = vpop.permute.xlu0 %2459
        %2461 = vset.pattern.permute.xlu0 0
        %2462 = vperm.xlu0 %2461, %v2427
        %v2463 = vpop.permute.xlu0 %2462
        %2464 = vset.pattern.permute.xlu0 0
        %2465 = vperm.xlu0 %2464, %v2428
        %v2466 = vpop.permute.xlu0 %2465
        %2467 = vset.pattern.permute.xlu0 0
        %2468 = vperm.xlu0 %2467, %v2429
        %v2469 = vpop.permute.xlu0 %2468
        %2470 = vset.pattern.permute.xlu0 0
        %2471 = vperm.xlu0 %2470, %v2430
        %v2472 = vpop.permute.xlu0 %2471
        %2473 = vset.pattern.permute.xlu0 0
        %2474 = vperm.xlu0 %2473, %v2431
        %v2475 = vpop.permute.xlu0 %2474
        %2476 = vset.pattern.permute.xlu0 0
        %2477 = vperm.xlu0 %2476, %v2432
        %v2478 = vpop.permute.xlu0 %2477
        %2479 = vset.pattern.permute.xlu0 0
        %2480 = vperm.xlu0 %2479, %v2433
        %v2481 = vpop.permute.xlu0 %2480
        %2482 = vset.pattern.permute.xlu0 0
        %2483 = vperm.xlu0 %2482, %v2434
        %v2484 = vpop.permute.xlu0 %2483
        %2485 = vset.pattern.permute.xlu0 0
        %2486 = vperm.xlu0 %2485, %v2435
        %v2487 = vpop.permute.xlu0 %2486
        %2488 = vset.pattern.permute.xlu0 0
        %2489 = vperm.xlu0 %2488, %v2436
        %v2490 = vpop.permute.xlu0 %2489
        %2491 = vset.pattern.permute.xlu0 0
        %2492 = vperm.xlu0 %2491, %v2437
        %v2493 = vpop.permute.xlu0 %2492
        %2494 = vset.pattern.permute.xlu0 0
        %2495 = vperm.xlu0 %2494, %v2438
        %v2496 = vpop.permute.xlu0 %2495
        %2497 = vset.pattern.permute.xlu0 0
        %2498 = vperm.xlu0 %2497, %v2439
        %v2499 = vpop.permute.xlu0 %2498
        %2500 = vset.pattern.permute.xlu0 0
        %2501 = vperm.xlu0 %2500, %v2440
        %v2502 = vpop.permute.xlu0 %2501
        %2503 = vset.pattern.permute.xlu0 0
        %2504 = vperm.xlu0 %2503, %v2441
        %v2505 = vpop.permute.xlu0 %2504
        %2506 = vset.pattern.permute.xlu0 0
        %2507 = vperm.xlu0 %2506, %v2442
        %v2508 = vpop.permute.xlu0 %2507
        %2509 = vset.pattern.permute.xlu0 0
        %2510 = vperm.xlu0 %2509, %v2443
        %v2511 = vpop.permute.xlu0 %2510
        %2512 = vset.pattern.permute.xlu0 0
        %2513 = vperm.xlu0 %2512, %v2444
        %v2514 = vpop.permute.xlu0 %2513
        %2515 = vset.pattern.permute.xlu0 0
        %2516 = vperm.xlu0 %2515, %v2445
        %v2517 = vpop.permute.xlu0 %2516
        %2518 = vset.pattern.permute.xlu0 0
        %2519 = vperm.xlu0 %2518, %v2446
        %v2520 = vpop.permute.xlu0 %2519
        %2521 = vset.pattern.permute.xlu0 0
        %2522 = vperm.xlu0 %2521, %v2447
        %v2523 = vpop.permute.xlu0 %2522
        %2524 = vset.pattern.permute.xlu0 0
        %2525 = vperm.xlu0 %2524, %v2448
        %v2526 = vpop.permute.xlu0 %2525
        %2527 = vset.pattern.permute.xlu0 0
        %2528 = vperm.xlu0 %2527, %v2449
        %v2529 = vpop.permute.xlu0 %2528
        %2530 = vset.pattern.permute.xlu0 0
        %2531 = vperm.xlu0 %2530, %v2450
        %v2532 = vpop.permute.xlu0 %2531
        %2533 = vset.pattern.permute.xlu0 0
        %2534 = vperm.xlu0 %2533, %v2451
        %v2535 = vpop.permute.xlu0 %2534
        %2536 = vset.pattern.permute.xlu0 0
        %2537 = vperm.xlu0 %2536, %v2452
        %v2538 = vpop.permute.xlu0 %2537
        %2539 = vset.pattern.permute.xlu0 0
        %2540 = vperm.xlu0 %2539, %v2453
        %v2541 = vpop.permute.xlu0 %2540
        %2542 = vset.pattern.permute.xlu0 0
        %2543 = vperm.xlu0 %2542, %v2454
        %v2544 = vpop.permute.xlu0 %2543
        %2545 = vset.pattern.permute.xlu0 0
        %2546 = vperm.xlu0 %2545, %v2455
        %v2547 = vpop.permute.xlu0 %2546
        %2548 = vset.pattern.permute.xlu0 0
        %2549 = vperm.xlu0 %2548, %v2456
        %v2550 = vpop.permute.xlu0 %2549
        %2551 = vset.pattern.permute.xlu0 0
        %2552 = vperm.xlu0 %2551, %v2457
        %v2553 = vpop.permute.xlu0 %2552
        %vm2554 = vcmp.eq.s32.totalorder %v2460, 1
        %vm2555 = vcmp.eq.s32.totalorder %v2463, 1
        %vm2556 = vcmp.eq.s32.totalorder %v2466, 1
        %vm2557 = vcmp.eq.s32.totalorder %v2469, 1
        %vm2558 = vcmp.eq.s32.totalorder %v2472, 1
        %vm2559 = vcmp.eq.s32.totalorder %v2475, 1
        %vm2560 = vcmp.eq.s32.totalorder %v2478, 1
        %vm2561 = vcmp.eq.s32.totalorder %v2481, 1
        %vm2562 = vcmp.eq.s32.totalorder %v2484, 1
        %vm2563 = vcmp.eq.s32.totalorder %v2487, 1
        %vm2564 = vcmp.eq.s32.totalorder %v2490, 1
        %vm2565 = vcmp.eq.s32.totalorder %v2493, 1
        %vm2566 = vcmp.eq.s32.totalorder %v2496, 1
        %vm2567 = vcmp.eq.s32.totalorder %v2499, 1
        %vm2568 = vcmp.eq.s32.totalorder %v2502, 1
        %vm2569 = vcmp.eq.s32.totalorder %v2505, 1
        %vm2570 = vcmp.eq.s32.totalorder %v2508, 1
        %vm2571 = vcmp.eq.s32.totalorder %v2511, 1
        %vm2572 = vcmp.eq.s32.totalorder %v2514, 1
        %vm2573 = vcmp.eq.s32.totalorder %v2517, 1
        %vm2574 = vcmp.eq.s32.totalorder %v2520, 1
        %vm2575 = vcmp.eq.s32.totalorder %v2523, 1
        %vm2576 = vcmp.eq.s32.totalorder %v2526, 1
        %vm2577 = vcmp.eq.s32.totalorder %v2529, 1
        %vm2578 = vcmp.eq.s32.totalorder %v2532, 1
        %vm2579 = vcmp.eq.s32.totalorder %v2535, 1
        %vm2580 = vcmp.eq.s32.totalorder %v2538, 1
        %vm2581 = vcmp.eq.s32.totalorder %v2541, 1
        %vm2582 = vcmp.eq.s32.totalorder %v2544, 1
        %vm2583 = vcmp.eq.s32.totalorder %v2547, 1
        %vm2584 = vcmp.eq.s32.totalorder %v2550, 1
        %vm2585 = vcmp.eq.s32.totalorder %v2553, 1
        %v2586 = vsel %vm2554, %v2267, %v2234
        %v2587 = vsel %vm2555, %v2269, %v2235
        %v2588 = vsel %vm2556, %v2271, %v2236
        %v2589 = vsel %vm2557, %v2273, %v2237
        %v2590 = vsel %vm2558, %v2275, %v2238
        %v2591 = vsel %vm2559, %v2277, %v2239
        %v2592 = vsel %vm2560, %v2279, %v2240
        %v2593 = vsel %vm2561, %v2281, %v2241
        %v2594 = vsel %vm2562, %v2283, %v2242
        %v2595 = vsel %vm2563, %v2285, %v2243
        %v2596 = vsel %vm2564, %v2287, %v2244
        %v2597 = vsel %vm2565, %v2289, %v2245
        %v2598 = vsel %vm2566, %v2291, %v2246
        %v2599 = vsel %vm2567, %v2293, %v2247
        %v2600 = vsel %vm2568, %v2295, %v2248
        %v2601 = vsel %vm2569, %v2297, %v2249
        %v2602 = vsel %vm2570, %v2299, %v2250
        %v2603 = vsel %vm2571, %v2301, %v2251
        %v2604 = vsel %vm2572, %v2303, %v2252
        %v2605 = vsel %vm2573, %v2305, %v2253
        %v2606 = vsel %vm2574, %v2307, %v2254
        %v2607 = vsel %vm2575, %v2309, %v2255
        %v2608 = vsel %vm2576, %v2311, %v2256
        %v2609 = vsel %vm2577, %v2313, %v2257
        %v2610 = vsel %vm2578, %v2315, %v2258
        %v2611 = vsel %vm2579, %v2317, %v2259
        %v2612 = vsel %vm2580, %v2319, %v2260
        %v2613 = vsel %vm2581, %v2321, %v2261
        %v2614 = vsel %vm2582, %v2323, %v2262
        %v2615 = vsel %vm2583, %v2325, %v2263
        %v2616 = vsel %vm2584, %v2327, %v2264
        %v2617 = vsel %vm2585, %v2329, %v2265
        %2618 = vrot.lane.b32.xlu0 %v2586, 4
        %v2619 = vpop.permute.xlu0 %2618
        %2620 = vrot.lane.b32.xlu0 %v2587, 4
        %v2621 = vpop.permute.xlu0 %2620
        %2622 = vrot.lane.b32.xlu0 %v2588, 4
        %v2623 = vpop.permute.xlu0 %2622
        %2624 = vrot.lane.b32.xlu0 %v2589, 4
        %v2625 = vpop.permute.xlu0 %2624
        %2626 = vrot.lane.b32.xlu0 %v2590, 4
        %v2627 = vpop.permute.xlu0 %2626
        %2628 = vrot.lane.b32.xlu0 %v2591, 4
        %v2629 = vpop.permute.xlu0 %2628
        %2630 = vrot.lane.b32.xlu0 %v2592, 4
        %v2631 = vpop.permute.xlu0 %2630
        %2632 = vrot.lane.b32.xlu0 %v2593, 4
        %v2633 = vpop.permute.xlu0 %2632
        %2634 = vrot.lane.b32.xlu0 %v2594, 4
        %v2635 = vpop.permute.xlu0 %2634
        %2636 = vrot.lane.b32.xlu0 %v2595, 4
        %v2637 = vpop.permute.xlu0 %2636
        %2638 = vrot.lane.b32.xlu0 %v2596, 4
        %v2639 = vpop.permute.xlu0 %2638
        %2640 = vrot.lane.b32.xlu0 %v2597, 4
        %v2641 = vpop.permute.xlu0 %2640
        %2642 = vrot.lane.b32.xlu0 %v2598, 4
        %v2643 = vpop.permute.xlu0 %2642
        %2644 = vrot.lane.b32.xlu0 %v2599, 4
        %v2645 = vpop.permute.xlu0 %2644
        %2646 = vrot.lane.b32.xlu0 %v2600, 4
        %v2647 = vpop.permute.xlu0 %2646
        %2648 = vrot.lane.b32.xlu0 %v2601, 4
        %v2649 = vpop.permute.xlu0 %2648
        %2650 = vrot.lane.b32.xlu0 %v2602, 4
        %v2651 = vpop.permute.xlu0 %2650
        %2652 = vrot.lane.b32.xlu0 %v2603, 4
        %v2653 = vpop.permute.xlu0 %2652
        %2654 = vrot.lane.b32.xlu0 %v2604, 4
        %v2655 = vpop.permute.xlu0 %2654
        %2656 = vrot.lane.b32.xlu0 %v2605, 4
        %v2657 = vpop.permute.xlu0 %2656
        %2658 = vrot.lane.b32.xlu0 %v2606, 4
        %v2659 = vpop.permute.xlu0 %2658
        %2660 = vrot.lane.b32.xlu0 %v2607, 4
        %v2661 = vpop.permute.xlu0 %2660
        %2662 = vrot.lane.b32.xlu0 %v2608, 4
        %v2663 = vpop.permute.xlu0 %2662
        %2664 = vrot.lane.b32.xlu0 %v2609, 4
        %v2665 = vpop.permute.xlu0 %2664
        %2666 = vrot.lane.b32.xlu0 %v2610, 4
        %v2667 = vpop.permute.xlu0 %2666
        %2668 = vrot.lane.b32.xlu0 %v2611, 4
        %v2669 = vpop.permute.xlu0 %2668
        %2670 = vrot.lane.b32.xlu0 %v2612, 4
        %v2671 = vpop.permute.xlu0 %2670
        %2672 = vrot.lane.b32.xlu0 %v2613, 4
        %v2673 = vpop.permute.xlu0 %2672
        %2674 = vrot.lane.b32.xlu0 %v2614, 4
        %v2675 = vpop.permute.xlu0 %2674
        %2676 = vrot.lane.b32.xlu0 %v2615, 4
        %v2677 = vpop.permute.xlu0 %2676
        %2678 = vrot.lane.b32.xlu0 %v2616, 4
        %v2679 = vpop.permute.xlu0 %2678
        %2680 = vrot.lane.b32.xlu0 %v2617, 4
        %v2681 = vpop.permute.xlu0 %2680
        %v2682 = vshra.s32 %v1914, 2
        %v2683 = vshra.s32 %v1915, 2
        %v2684 = vshra.s32 %v1916, 2
        %v2685 = vshra.s32 %v1917, 2
        %v2686 = vshra.s32 %v1918, 2
        %v2687 = vshra.s32 %v1919, 2
        %v2688 = vshra.s32 %v1920, 2
        %v2689 = vshra.s32 %v1921, 2
        %v2690 = vshra.s32 %v1922, 2
        %v2691 = vshra.s32 %v1923, 2
        %v2692 = vshra.s32 %v1924, 2
        %v2693 = vshra.s32 %v1925, 2
        %v2694 = vshra.s32 %v1926, 2
        %v2695 = vshra.s32 %v1927, 2
        %v2696 = vshra.s32 %v1928, 2
        %v2697 = vshra.s32 %v1929, 2
        %v2698 = vshra.s32 %v1930, 2
        %v2699 = vshra.s32 %v1931, 2
        %v2700 = vshra.s32 %v1932, 2
        %v2701 = vshra.s32 %v1933, 2
        %v2702 = vshra.s32 %v1934, 2
        %v2703 = vshra.s32 %v1935, 2
        %v2704 = vshra.s32 %v1936, 2
        %v2705 = vshra.s32 %v1937, 2
        %v2706 = vshra.s32 %v1938, 2
        %v2707 = vshra.s32 %v1939, 2
        %v2708 = vshra.s32 %v1940, 2
        %v2709 = vshra.s32 %v1941, 2
        %v2710 = vshra.s32 %v1942, 2
        %v2711 = vshra.s32 %v1943, 2
        %v2712 = vshra.s32 %v1944, 2
        %v2713 = vshra.s32 %v1945, 2
        %v2714 = vand.u32 %v2682, 1
        %v2715 = vand.u32 %v2683, 1
        %v2716 = vand.u32 %v2684, 1
        %v2717 = vand.u32 %v2685, 1
        %v2718 = vand.u32 %v2686, 1
        %v2719 = vand.u32 %v2687, 1
        %v2720 = vand.u32 %v2688, 1
        %v2721 = vand.u32 %v2689, 1
        %v2722 = vand.u32 %v2690, 1
        %v2723 = vand.u32 %v2691, 1
        %v2724 = vand.u32 %v2692, 1
        %v2725 = vand.u32 %v2693, 1
        %v2726 = vand.u32 %v2694, 1
        %v2727 = vand.u32 %v2695, 1
        %v2728 = vand.u32 %v2696, 1
        %v2729 = vand.u32 %v2697, 1
        %v2730 = vand.u32 %v2698, 1
        %v2731 = vand.u32 %v2699, 1
        %v2732 = vand.u32 %v2700, 1
        %v2733 = vand.u32 %v2701, 1
        %v2734 = vand.u32 %v2702, 1
        %v2735 = vand.u32 %v2703, 1
        %v2736 = vand.u32 %v2704, 1
        %v2737 = vand.u32 %v2705, 1
        %v2738 = vand.u32 %v2706, 1
        %v2739 = vand.u32 %v2707, 1
        %v2740 = vand.u32 %v2708, 1
        %v2741 = vand.u32 %v2709, 1
        %v2742 = vand.u32 %v2710, 1
        %v2743 = vand.u32 %v2711, 1
        %v2744 = vand.u32 %v2712, 1
        %v2745 = vand.u32 %v2713, 1
        %vm2746 = vcmp.gt.s32.totalorder %v2714, 0
        %vm2747 = vcmp.gt.s32.totalorder %v2715, 0
        %vm2748 = vcmp.gt.s32.totalorder %v2716, 0
        %vm2749 = vcmp.gt.s32.totalorder %v2717, 0
        %vm2750 = vcmp.gt.s32.totalorder %v2718, 0
        %vm2751 = vcmp.gt.s32.totalorder %v2719, 0
        %vm2752 = vcmp.gt.s32.totalorder %v2720, 0
        %vm2753 = vcmp.gt.s32.totalorder %v2721, 0
        %vm2754 = vcmp.gt.s32.totalorder %v2722, 0
        %vm2755 = vcmp.gt.s32.totalorder %v2723, 0
        %vm2756 = vcmp.gt.s32.totalorder %v2724, 0
        %vm2757 = vcmp.gt.s32.totalorder %v2725, 0
        %vm2758 = vcmp.gt.s32.totalorder %v2726, 0
        %vm2759 = vcmp.gt.s32.totalorder %v2727, 0
        %vm2760 = vcmp.gt.s32.totalorder %v2728, 0
        %vm2761 = vcmp.gt.s32.totalorder %v2729, 0
        %vm2762 = vcmp.gt.s32.totalorder %v2730, 0
        %vm2763 = vcmp.gt.s32.totalorder %v2731, 0
        %vm2764 = vcmp.gt.s32.totalorder %v2732, 0
        %vm2765 = vcmp.gt.s32.totalorder %v2733, 0
        %vm2766 = vcmp.gt.s32.totalorder %v2734, 0
        %vm2767 = vcmp.gt.s32.totalorder %v2735, 0
        %vm2768 = vcmp.gt.s32.totalorder %v2736, 0
        %vm2769 = vcmp.gt.s32.totalorder %v2737, 0
        %vm2770 = vcmp.gt.s32.totalorder %v2738, 0
        %vm2771 = vcmp.gt.s32.totalorder %v2739, 0
        %vm2772 = vcmp.gt.s32.totalorder %v2740, 0
        %vm2773 = vcmp.gt.s32.totalorder %v2741, 0
        %vm2774 = vcmp.gt.s32.totalorder %v2742, 0
        %vm2775 = vcmp.gt.s32.totalorder %v2743, 0
        %vm2776 = vcmp.gt.s32.totalorder %v2744, 0
        %vm2777 = vcmp.gt.s32.totalorder %v2745, 0
        %v2778 = vsel %vm2746, 1, 0
        %v2779 = vsel %vm2747, 1, 0
        %v2780 = vsel %vm2748, 1, 0
        %v2781 = vsel %vm2749, 1, 0
        %v2782 = vsel %vm2750, 1, 0
        %v2783 = vsel %vm2751, 1, 0
        %v2784 = vsel %vm2752, 1, 0
        %v2785 = vsel %vm2753, 1, 0
        %v2786 = vsel %vm2754, 1, 0
        %v2787 = vsel %vm2755, 1, 0
        %v2788 = vsel %vm2756, 1, 0
        %v2789 = vsel %vm2757, 1, 0
        %v2790 = vsel %vm2758, 1, 0
        %v2791 = vsel %vm2759, 1, 0
        %v2792 = vsel %vm2760, 1, 0
        %v2793 = vsel %vm2761, 1, 0
        %v2794 = vsel %vm2762, 1, 0
        %v2795 = vsel %vm2763, 1, 0
        %v2796 = vsel %vm2764, 1, 0
        %v2797 = vsel %vm2765, 1, 0
        %v2798 = vsel %vm2766, 1, 0
        %v2799 = vsel %vm2767, 1, 0
        %v2800 = vsel %vm2768, 1, 0
        %v2801 = vsel %vm2769, 1, 0
        %v2802 = vsel %vm2770, 1, 0
        %v2803 = vsel %vm2771, 1, 0
        %v2804 = vsel %vm2772, 1, 0
        %v2805 = vsel %vm2773, 1, 0
        %v2806 = vsel %vm2774, 1, 0
        %v2807 = vsel %vm2775, 1, 0
        %v2808 = vsel %vm2776, 1, 0
        %v2809 = vsel %vm2777, 1, 0
        %2810 = vset.pattern.permute.xlu0 0
        %2811 = vperm.xlu0 %2810, %v2778
        %v2812 = vpop.permute.xlu0 %2811
        %2813 = vset.pattern.permute.xlu0 0
        %2814 = vperm.xlu0 %2813, %v2779
        %v2815 = vpop.permute.xlu0 %2814
        %2816 = vset.pattern.permute.xlu0 0
        %2817 = vperm.xlu0 %2816, %v2780
        %v2818 = vpop.permute.xlu0 %2817
        %2819 = vset.pattern.permute.xlu0 0
        %2820 = vperm.xlu0 %2819, %v2781
        %v2821 = vpop.permute.xlu0 %2820
        %2822 = vset.pattern.permute.xlu0 0
        %2823 = vperm.xlu0 %2822, %v2782
        %v2824 = vpop.permute.xlu0 %2823
        %2825 = vset.pattern.permute.xlu0 0
        %2826 = vperm.xlu0 %2825, %v2783
        %v2827 = vpop.permute.xlu0 %2826
        %2828 = vset.pattern.permute.xlu0 0
        %2829 = vperm.xlu0 %2828, %v2784
        %v2830 = vpop.permute.xlu0 %2829
        %2831 = vset.pattern.permute.xlu0 0
        %2832 = vperm.xlu0 %2831, %v2785
        %v2833 = vpop.permute.xlu0 %2832
        %2834 = vset.pattern.permute.xlu0 0
        %2835 = vperm.xlu0 %2834, %v2786
        %v2836 = vpop.permute.xlu0 %2835
        %2837 = vset.pattern.permute.xlu0 0
        %2838 = vperm.xlu0 %2837, %v2787
        %v2839 = vpop.permute.xlu0 %2838
        %2840 = vset.pattern.permute.xlu0 0
        %2841 = vperm.xlu0 %2840, %v2788
        %v2842 = vpop.permute.xlu0 %2841
        %2843 = vset.pattern.permute.xlu0 0
        %2844 = vperm.xlu0 %2843, %v2789
        %v2845 = vpop.permute.xlu0 %2844
        %2846 = vset.pattern.permute.xlu0 0
        %2847 = vperm.xlu0 %2846, %v2790
        %v2848 = vpop.permute.xlu0 %2847
        %2849 = vset.pattern.permute.xlu0 0
        %2850 = vperm.xlu0 %2849, %v2791
        %v2851 = vpop.permute.xlu0 %2850
        %2852 = vset.pattern.permute.xlu0 0
        %2853 = vperm.xlu0 %2852, %v2792
        %v2854 = vpop.permute.xlu0 %2853
        %2855 = vset.pattern.permute.xlu0 0
        %2856 = vperm.xlu0 %2855, %v2793
        %v2857 = vpop.permute.xlu0 %2856
        %2858 = vset.pattern.permute.xlu0 0
        %2859 = vperm.xlu0 %2858, %v2794
        %v2860 = vpop.permute.xlu0 %2859
        %2861 = vset.pattern.permute.xlu0 0
        %2862 = vperm.xlu0 %2861, %v2795
        %v2863 = vpop.permute.xlu0 %2862
        %2864 = vset.pattern.permute.xlu0 0
        %2865 = vperm.xlu0 %2864, %v2796
        %v2866 = vpop.permute.xlu0 %2865
        %2867 = vset.pattern.permute.xlu0 0
        %2868 = vperm.xlu0 %2867, %v2797
        %v2869 = vpop.permute.xlu0 %2868
        %2870 = vset.pattern.permute.xlu0 0
        %2871 = vperm.xlu0 %2870, %v2798
        %v2872 = vpop.permute.xlu0 %2871
        %2873 = vset.pattern.permute.xlu0 0
        %2874 = vperm.xlu0 %2873, %v2799
        %v2875 = vpop.permute.xlu0 %2874
        %2876 = vset.pattern.permute.xlu0 0
        %2877 = vperm.xlu0 %2876, %v2800
        %v2878 = vpop.permute.xlu0 %2877
        %2879 = vset.pattern.permute.xlu0 0
        %2880 = vperm.xlu0 %2879, %v2801
        %v2881 = vpop.permute.xlu0 %2880
        %2882 = vset.pattern.permute.xlu0 0
        %2883 = vperm.xlu0 %2882, %v2802
        %v2884 = vpop.permute.xlu0 %2883
        %2885 = vset.pattern.permute.xlu0 0
        %2886 = vperm.xlu0 %2885, %v2803
        %v2887 = vpop.permute.xlu0 %2886
        %2888 = vset.pattern.permute.xlu0 0
        %2889 = vperm.xlu0 %2888, %v2804
        %v2890 = vpop.permute.xlu0 %2889
        %2891 = vset.pattern.permute.xlu0 0
        %2892 = vperm.xlu0 %2891, %v2805
        %v2893 = vpop.permute.xlu0 %2892
        %2894 = vset.pattern.permute.xlu0 0
        %2895 = vperm.xlu0 %2894, %v2806
        %v2896 = vpop.permute.xlu0 %2895
        %2897 = vset.pattern.permute.xlu0 0
        %2898 = vperm.xlu0 %2897, %v2807
        %v2899 = vpop.permute.xlu0 %2898
        %2900 = vset.pattern.permute.xlu0 0
        %2901 = vperm.xlu0 %2900, %v2808
        %v2902 = vpop.permute.xlu0 %2901
        %2903 = vset.pattern.permute.xlu0 0
        %2904 = vperm.xlu0 %2903, %v2809
        %v2905 = vpop.permute.xlu0 %2904
        %vm2906 = vcmp.eq.s32.totalorder %v2812, 1
        %vm2907 = vcmp.eq.s32.totalorder %v2815, 1
        %vm2908 = vcmp.eq.s32.totalorder %v2818, 1
        %vm2909 = vcmp.eq.s32.totalorder %v2821, 1
        %vm2910 = vcmp.eq.s32.totalorder %v2824, 1
        %vm2911 = vcmp.eq.s32.totalorder %v2827, 1
        %vm2912 = vcmp.eq.s32.totalorder %v2830, 1
        %vm2913 = vcmp.eq.s32.totalorder %v2833, 1
        %vm2914 = vcmp.eq.s32.totalorder %v2836, 1
        %vm2915 = vcmp.eq.s32.totalorder %v2839, 1
        %vm2916 = vcmp.eq.s32.totalorder %v2842, 1
        %vm2917 = vcmp.eq.s32.totalorder %v2845, 1
        %vm2918 = vcmp.eq.s32.totalorder %v2848, 1
        %vm2919 = vcmp.eq.s32.totalorder %v2851, 1
        %vm2920 = vcmp.eq.s32.totalorder %v2854, 1
        %vm2921 = vcmp.eq.s32.totalorder %v2857, 1
        %vm2922 = vcmp.eq.s32.totalorder %v2860, 1
        %vm2923 = vcmp.eq.s32.totalorder %v2863, 1
        %vm2924 = vcmp.eq.s32.totalorder %v2866, 1
        %vm2925 = vcmp.eq.s32.totalorder %v2869, 1
        %vm2926 = vcmp.eq.s32.totalorder %v2872, 1
        %vm2927 = vcmp.eq.s32.totalorder %v2875, 1
        %vm2928 = vcmp.eq.s32.totalorder %v2878, 1
        %vm2929 = vcmp.eq.s32.totalorder %v2881, 1
        %vm2930 = vcmp.eq.s32.totalorder %v2884, 1
        %vm2931 = vcmp.eq.s32.totalorder %v2887, 1
        %vm2932 = vcmp.eq.s32.totalorder %v2890, 1
        %vm2933 = vcmp.eq.s32.totalorder %v2893, 1
        %vm2934 = vcmp.eq.s32.totalorder %v2896, 1
        %vm2935 = vcmp.eq.s32.totalorder %v2899, 1
        %vm2936 = vcmp.eq.s32.totalorder %v2902, 1
        %vm2937 = vcmp.eq.s32.totalorder %v2905, 1
        %v2938 = vsel %vm2906, %v2619, %v2586
        %v2939 = vsel %vm2907, %v2621, %v2587
        %v2940 = vsel %vm2908, %v2623, %v2588
        %v2941 = vsel %vm2909, %v2625, %v2589
        %v2942 = vsel %vm2910, %v2627, %v2590
        %v2943 = vsel %vm2911, %v2629, %v2591
        %v2944 = vsel %vm2912, %v2631, %v2592
        %v2945 = vsel %vm2913, %v2633, %v2593
        %v2946 = vsel %vm2914, %v2635, %v2594
        %v2947 = vsel %vm2915, %v2637, %v2595
        %v2948 = vsel %vm2916, %v2639, %v2596
        %v2949 = vsel %vm2917, %v2641, %v2597
        %v2950 = vsel %vm2918, %v2643, %v2598
        %v2951 = vsel %vm2919, %v2645, %v2599
        %v2952 = vsel %vm2920, %v2647, %v2600
        %v2953 = vsel %vm2921, %v2649, %v2601
        %v2954 = vsel %vm2922, %v2651, %v2602
        %v2955 = vsel %vm2923, %v2653, %v2603
        %v2956 = vsel %vm2924, %v2655, %v2604
        %v2957 = vsel %vm2925, %v2657, %v2605
        %v2958 = vsel %vm2926, %v2659, %v2606
        %v2959 = vsel %vm2927, %v2661, %v2607
        %v2960 = vsel %vm2928, %v2663, %v2608
        %v2961 = vsel %vm2929, %v2665, %v2609
        %v2962 = vsel %vm2930, %v2667, %v2610
        %v2963 = vsel %vm2931, %v2669, %v2611
        %v2964 = vsel %vm2932, %v2671, %v2612
        %v2965 = vsel %vm2933, %v2673, %v2613
        %v2966 = vsel %vm2934, %v2675, %v2614
        %v2967 = vsel %vm2935, %v2677, %v2615
        %v2968 = vsel %vm2936, %v2679, %v2616
        %v2969 = vsel %vm2937, %v2681, %v2617
        %2970 = vrot.lane.b32.xlu0 %v2938, 8
        %v2971 = vpop.permute.xlu0 %2970
        %2972 = vrot.lane.b32.xlu0 %v2939, 8
        %v2973 = vpop.permute.xlu0 %2972
        %2974 = vrot.lane.b32.xlu0 %v2940, 8
        %v2975 = vpop.permute.xlu0 %2974
        %2976 = vrot.lane.b32.xlu0 %v2941, 8
        %v2977 = vpop.permute.xlu0 %2976
        %2978 = vrot.lane.b32.xlu0 %v2942, 8
        %v2979 = vpop.permute.xlu0 %2978
        %2980 = vrot.lane.b32.xlu0 %v2943, 8
        %v2981 = vpop.permute.xlu0 %2980
        %2982 = vrot.lane.b32.xlu0 %v2944, 8
        %v2983 = vpop.permute.xlu0 %2982
        %2984 = vrot.lane.b32.xlu0 %v2945, 8
        %v2985 = vpop.permute.xlu0 %2984
        %2986 = vrot.lane.b32.xlu0 %v2946, 8
        %v2987 = vpop.permute.xlu0 %2986
        %2988 = vrot.lane.b32.xlu0 %v2947, 8
        %v2989 = vpop.permute.xlu0 %2988
        %2990 = vrot.lane.b32.xlu0 %v2948, 8
        %v2991 = vpop.permute.xlu0 %2990
        %2992 = vrot.lane.b32.xlu0 %v2949, 8
        %v2993 = vpop.permute.xlu0 %2992
        %2994 = vrot.lane.b32.xlu0 %v2950, 8
        %v2995 = vpop.permute.xlu0 %2994
        %2996 = vrot.lane.b32.xlu0 %v2951, 8
        %v2997 = vpop.permute.xlu0 %2996
        %2998 = vrot.lane.b32.xlu0 %v2952, 8
        %v2999 = vpop.permute.xlu0 %2998
        %3000 = vrot.lane.b32.xlu0 %v2953, 8
        %v3001 = vpop.permute.xlu0 %3000
        %3002 = vrot.lane.b32.xlu0 %v2954, 8
        %v3003 = vpop.permute.xlu0 %3002
        %3004 = vrot.lane.b32.xlu0 %v2955, 8
        %v3005 = vpop.permute.xlu0 %3004
        %3006 = vrot.lane.b32.xlu0 %v2956, 8
        %v3007 = vpop.permute.xlu0 %3006
        %3008 = vrot.lane.b32.xlu0 %v2957, 8
        %v3009 = vpop.permute.xlu0 %3008
        %3010 = vrot.lane.b32.xlu0 %v2958, 8
        %v3011 = vpop.permute.xlu0 %3010
        %3012 = vrot.lane.b32.xlu0 %v2959, 8
        %v3013 = vpop.permute.xlu0 %3012
        %3014 = vrot.lane.b32.xlu0 %v2960, 8
        %v3015 = vpop.permute.xlu0 %3014
        %3016 = vrot.lane.b32.xlu0 %v2961, 8
        %v3017 = vpop.permute.xlu0 %3016
        %3018 = vrot.lane.b32.xlu0 %v2962, 8
        %v3019 = vpop.permute.xlu0 %3018
        %3020 = vrot.lane.b32.xlu0 %v2963, 8
        %v3021 = vpop.permute.xlu0 %3020
        %3022 = vrot.lane.b32.xlu0 %v2964, 8
        %v3023 = vpop.permute.xlu0 %3022
        %3024 = vrot.lane.b32.xlu0 %v2965, 8
        %v3025 = vpop.permute.xlu0 %3024
        %3026 = vrot.lane.b32.xlu0 %v2966, 8
        %v3027 = vpop.permute.xlu0 %3026
        %3028 = vrot.lane.b32.xlu0 %v2967, 8
        %v3029 = vpop.permute.xlu0 %3028
        %3030 = vrot.lane.b32.xlu0 %v2968, 8
        %v3031 = vpop.permute.xlu0 %3030
        %3032 = vrot.lane.b32.xlu0 %v2969, 8
        %v3033 = vpop.permute.xlu0 %3032
        %v3034 = vshra.s32 %v1914, 3
        %v3035 = vshra.s32 %v1915, 3
        %v3036 = vshra.s32 %v1916, 3
        %v3037 = vshra.s32 %v1917, 3
        %v3038 = vshra.s32 %v1918, 3
        %v3039 = vshra.s32 %v1919, 3
        %v3040 = vshra.s32 %v1920, 3
        %v3041 = vshra.s32 %v1921, 3
        %v3042 = vshra.s32 %v1922, 3
        %v3043 = vshra.s32 %v1923, 3
        %v3044 = vshra.s32 %v1924, 3
        %v3045 = vshra.s32 %v1925, 3
        %v3046 = vshra.s32 %v1926, 3
        %v3047 = vshra.s32 %v1927, 3
        %v3048 = vshra.s32 %v1928, 3
        %v3049 = vshra.s32 %v1929, 3
        %v3050 = vshra.s32 %v1930, 3
        %v3051 = vshra.s32 %v1931, 3
        %v3052 = vshra.s32 %v1932, 3
        %v3053 = vshra.s32 %v1933, 3
        %v3054 = vshra.s32 %v1934, 3
        %v3055 = vshra.s32 %v1935, 3
        %v3056 = vshra.s32 %v1936, 3
        %v3057 = vshra.s32 %v1937, 3
        %v3058 = vshra.s32 %v1938, 3
        %v3059 = vshra.s32 %v1939, 3
        %v3060 = vshra.s32 %v1940, 3
        %v3061 = vshra.s32 %v1941, 3
        %v3062 = vshra.s32 %v1942, 3
        %v3063 = vshra.s32 %v1943, 3
        %v3064 = vshra.s32 %v1944, 3
        %v3065 = vshra.s32 %v1945, 3
        %v3066 = vand.u32 %v3034, 1
        %v3067 = vand.u32 %v3035, 1
        %v3068 = vand.u32 %v3036, 1
        %v3069 = vand.u32 %v3037, 1
        %v3070 = vand.u32 %v3038, 1
        %v3071 = vand.u32 %v3039, 1
        %v3072 = vand.u32 %v3040, 1
        %v3073 = vand.u32 %v3041, 1
        %v3074 = vand.u32 %v3042, 1
        %v3075 = vand.u32 %v3043, 1
        %v3076 = vand.u32 %v3044, 1
        %v3077 = vand.u32 %v3045, 1
        %v3078 = vand.u32 %v3046, 1
        %v3079 = vand.u32 %v3047, 1
        %v3080 = vand.u32 %v3048, 1
        %v3081 = vand.u32 %v3049, 1
        %v3082 = vand.u32 %v3050, 1
        %v3083 = vand.u32 %v3051, 1
        %v3084 = vand.u32 %v3052, 1
        %v3085 = vand.u32 %v3053, 1
        %v3086 = vand.u32 %v3054, 1
        %v3087 = vand.u32 %v3055, 1
        %v3088 = vand.u32 %v3056, 1
        %v3089 = vand.u32 %v3057, 1
        %v3090 = vand.u32 %v3058, 1
        %v3091 = vand.u32 %v3059, 1
        %v3092 = vand.u32 %v3060, 1
        %v3093 = vand.u32 %v3061, 1
        %v3094 = vand.u32 %v3062, 1
        %v3095 = vand.u32 %v3063, 1
        %v3096 = vand.u32 %v3064, 1
        %v3097 = vand.u32 %v3065, 1
        %vm3098 = vcmp.gt.s32.totalorder %v3066, 0
        %vm3099 = vcmp.gt.s32.totalorder %v3067, 0
        %vm3100 = vcmp.gt.s32.totalorder %v3068, 0
        %vm3101 = vcmp.gt.s32.totalorder %v3069, 0
        %vm3102 = vcmp.gt.s32.totalorder %v3070, 0
        %vm3103 = vcmp.gt.s32.totalorder %v3071, 0
        %vm3104 = vcmp.gt.s32.totalorder %v3072, 0
        %vm3105 = vcmp.gt.s32.totalorder %v3073, 0
        %vm3106 = vcmp.gt.s32.totalorder %v3074, 0
        %vm3107 = vcmp.gt.s32.totalorder %v3075, 0
        %vm3108 = vcmp.gt.s32.totalorder %v3076, 0
        %vm3109 = vcmp.gt.s32.totalorder %v3077, 0
        %vm3110 = vcmp.gt.s32.totalorder %v3078, 0
        %vm3111 = vcmp.gt.s32.totalorder %v3079, 0
        %vm3112 = vcmp.gt.s32.totalorder %v3080, 0
        %vm3113 = vcmp.gt.s32.totalorder %v3081, 0
        %vm3114 = vcmp.gt.s32.totalorder %v3082, 0
        %vm3115 = vcmp.gt.s32.totalorder %v3083, 0
        %vm3116 = vcmp.gt.s32.totalorder %v3084, 0
        %vm3117 = vcmp.gt.s32.totalorder %v3085, 0
        %vm3118 = vcmp.gt.s32.totalorder %v3086, 0
        %vm3119 = vcmp.gt.s32.totalorder %v3087, 0
        %vm3120 = vcmp.gt.s32.totalorder %v3088, 0
        %vm3121 = vcmp.gt.s32.totalorder %v3089, 0
        %vm3122 = vcmp.gt.s32.totalorder %v3090, 0
        %vm3123 = vcmp.gt.s32.totalorder %v3091, 0
        %vm3124 = vcmp.gt.s32.totalorder %v3092, 0
        %vm3125 = vcmp.gt.s32.totalorder %v3093, 0
        %vm3126 = vcmp.gt.s32.totalorder %v3094, 0
        %vm3127 = vcmp.gt.s32.totalorder %v3095, 0
        %vm3128 = vcmp.gt.s32.totalorder %v3096, 0
        %vm3129 = vcmp.gt.s32.totalorder %v3097, 0
        %v3130 = vsel %vm3098, 1, 0
        %v3131 = vsel %vm3099, 1, 0
        %v3132 = vsel %vm3100, 1, 0
        %v3133 = vsel %vm3101, 1, 0
        %v3134 = vsel %vm3102, 1, 0
        %v3135 = vsel %vm3103, 1, 0
        %v3136 = vsel %vm3104, 1, 0
        %v3137 = vsel %vm3105, 1, 0
        %v3138 = vsel %vm3106, 1, 0
        %v3139 = vsel %vm3107, 1, 0
        %v3140 = vsel %vm3108, 1, 0
        %v3141 = vsel %vm3109, 1, 0
        %v3142 = vsel %vm3110, 1, 0
        %v3143 = vsel %vm3111, 1, 0
        %v3144 = vsel %vm3112, 1, 0
        %v3145 = vsel %vm3113, 1, 0
        %v3146 = vsel %vm3114, 1, 0
        %v3147 = vsel %vm3115, 1, 0
        %v3148 = vsel %vm3116, 1, 0
        %v3149 = vsel %vm3117, 1, 0
        %v3150 = vsel %vm3118, 1, 0
        %v3151 = vsel %vm3119, 1, 0
        %v3152 = vsel %vm3120, 1, 0
        %v3153 = vsel %vm3121, 1, 0
        %v3154 = vsel %vm3122, 1, 0
        %v3155 = vsel %vm3123, 1, 0
        %v3156 = vsel %vm3124, 1, 0
        %v3157 = vsel %vm3125, 1, 0
        %v3158 = vsel %vm3126, 1, 0
        %v3159 = vsel %vm3127, 1, 0
        %v3160 = vsel %vm3128, 1, 0
        %v3161 = vsel %vm3129, 1, 0
        %3162 = vset.pattern.permute.xlu0 0
        %3163 = vperm.xlu0 %3162, %v3130
        %v3164 = vpop.permute.xlu0 %3163
        %3165 = vset.pattern.permute.xlu0 0
        %3166 = vperm.xlu0 %3165, %v3131
        %v3167 = vpop.permute.xlu0 %3166
        %3168 = vset.pattern.permute.xlu0 0
        %3169 = vperm.xlu0 %3168, %v3132
        %v3170 = vpop.permute.xlu0 %3169
        %3171 = vset.pattern.permute.xlu0 0
        %3172 = vperm.xlu0 %3171, %v3133
        %v3173 = vpop.permute.xlu0 %3172
        %3174 = vset.pattern.permute.xlu0 0
        %3175 = vperm.xlu0 %3174, %v3134
        %v3176 = vpop.permute.xlu0 %3175
        %3177 = vset.pattern.permute.xlu0 0
        %3178 = vperm.xlu0 %3177, %v3135
        %v3179 = vpop.permute.xlu0 %3178
        %3180 = vset.pattern.permute.xlu0 0
        %3181 = vperm.xlu0 %3180, %v3136
        %v3182 = vpop.permute.xlu0 %3181
        %3183 = vset.pattern.permute.xlu0 0
        %3184 = vperm.xlu0 %3183, %v3137
        %v3185 = vpop.permute.xlu0 %3184
        %3186 = vset.pattern.permute.xlu0 0
        %3187 = vperm.xlu0 %3186, %v3138
        %v3188 = vpop.permute.xlu0 %3187
        %3189 = vset.pattern.permute.xlu0 0
        %3190 = vperm.xlu0 %3189, %v3139
        %v3191 = vpop.permute.xlu0 %3190
        %3192 = vset.pattern.permute.xlu0 0
        %3193 = vperm.xlu0 %3192, %v3140
        %v3194 = vpop.permute.xlu0 %3193
        %3195 = vset.pattern.permute.xlu0 0
        %3196 = vperm.xlu0 %3195, %v3141
        %v3197 = vpop.permute.xlu0 %3196
        %3198 = vset.pattern.permute.xlu0 0
        %3199 = vperm.xlu0 %3198, %v3142
        %v3200 = vpop.permute.xlu0 %3199
        %3201 = vset.pattern.permute.xlu0 0
        %3202 = vperm.xlu0 %3201, %v3143
        %v3203 = vpop.permute.xlu0 %3202
        %3204 = vset.pattern.permute.xlu0 0
        %3205 = vperm.xlu0 %3204, %v3144
        %v3206 = vpop.permute.xlu0 %3205
        %3207 = vset.pattern.permute.xlu0 0
        %3208 = vperm.xlu0 %3207, %v3145
        %v3209 = vpop.permute.xlu0 %3208
        %3210 = vset.pattern.permute.xlu0 0
        %3211 = vperm.xlu0 %3210, %v3146
        %v3212 = vpop.permute.xlu0 %3211
        %3213 = vset.pattern.permute.xlu0 0
        %3214 = vperm.xlu0 %3213, %v3147
        %v3215 = vpop.permute.xlu0 %3214
        %3216 = vset.pattern.permute.xlu0 0
        %3217 = vperm.xlu0 %3216, %v3148
        %v3218 = vpop.permute.xlu0 %3217
        %3219 = vset.pattern.permute.xlu0 0
        %3220 = vperm.xlu0 %3219, %v3149
        %v3221 = vpop.permute.xlu0 %3220
        %3222 = vset.pattern.permute.xlu0 0
        %3223 = vperm.xlu0 %3222, %v3150
        %v3224 = vpop.permute.xlu0 %3223
        %3225 = vset.pattern.permute.xlu0 0
        %3226 = vperm.xlu0 %3225, %v3151
        %v3227 = vpop.permute.xlu0 %3226
        %3228 = vset.pattern.permute.xlu0 0
        %3229 = vperm.xlu0 %3228, %v3152
        %v3230 = vpop.permute.xlu0 %3229
        %3231 = vset.pattern.permute.xlu0 0
        %3232 = vperm.xlu0 %3231, %v3153
        %v3233 = vpop.permute.xlu0 %3232
        %3234 = vset.pattern.permute.xlu0 0
        %3235 = vperm.xlu0 %3234, %v3154
        %v3236 = vpop.permute.xlu0 %3235
        %3237 = vset.pattern.permute.xlu0 0
        %3238 = vperm.xlu0 %3237, %v3155
        %v3239 = vpop.permute.xlu0 %3238
        %3240 = vset.pattern.permute.xlu0 0
        %3241 = vperm.xlu0 %3240, %v3156
        %v3242 = vpop.permute.xlu0 %3241
        %3243 = vset.pattern.permute.xlu0 0
        %3244 = vperm.xlu0 %3243, %v3157
        %v3245 = vpop.permute.xlu0 %3244
        %3246 = vset.pattern.permute.xlu0 0
        %3247 = vperm.xlu0 %3246, %v3158
        %v3248 = vpop.permute.xlu0 %3247
        %3249 = vset.pattern.permute.xlu0 0
        %3250 = vperm.xlu0 %3249, %v3159
        %v3251 = vpop.permute.xlu0 %3250
        %3252 = vset.pattern.permute.xlu0 0
        %3253 = vperm.xlu0 %3252, %v3160
        %v3254 = vpop.permute.xlu0 %3253
        %3255 = vset.pattern.permute.xlu0 0
        %3256 = vperm.xlu0 %3255, %v3161
        %v3257 = vpop.permute.xlu0 %3256
        %vm3258 = vcmp.eq.s32.totalorder %v3164, 1
        %vm3259 = vcmp.eq.s32.totalorder %v3167, 1
        %vm3260 = vcmp.eq.s32.totalorder %v3170, 1
        %vm3261 = vcmp.eq.s32.totalorder %v3173, 1
        %vm3262 = vcmp.eq.s32.totalorder %v3176, 1
        %vm3263 = vcmp.eq.s32.totalorder %v3179, 1
        %vm3264 = vcmp.eq.s32.totalorder %v3182, 1
        %vm3265 = vcmp.eq.s32.totalorder %v3185, 1
        %vm3266 = vcmp.eq.s32.totalorder %v3188, 1
        %vm3267 = vcmp.eq.s32.totalorder %v3191, 1
        %vm3268 = vcmp.eq.s32.totalorder %v3194, 1
        %vm3269 = vcmp.eq.s32.totalorder %v3197, 1
        %vm3270 = vcmp.eq.s32.totalorder %v3200, 1
        %vm3271 = vcmp.eq.s32.totalorder %v3203, 1
        %vm3272 = vcmp.eq.s32.totalorder %v3206, 1
        %vm3273 = vcmp.eq.s32.totalorder %v3209, 1
        %vm3274 = vcmp.eq.s32.totalorder %v3212, 1
        %vm3275 = vcmp.eq.s32.totalorder %v3215, 1
        %vm3276 = vcmp.eq.s32.totalorder %v3218, 1
        %vm3277 = vcmp.eq.s32.totalorder %v3221, 1
        %vm3278 = vcmp.eq.s32.totalorder %v3224, 1
        %vm3279 = vcmp.eq.s32.totalorder %v3227, 1
        %vm3280 = vcmp.eq.s32.totalorder %v3230, 1
        %vm3281 = vcmp.eq.s32.totalorder %v3233, 1
        %vm3282 = vcmp.eq.s32.totalorder %v3236, 1
        %vm3283 = vcmp.eq.s32.totalorder %v3239, 1
        %vm3284 = vcmp.eq.s32.totalorder %v3242, 1
        %vm3285 = vcmp.eq.s32.totalorder %v3245, 1
        %vm3286 = vcmp.eq.s32.totalorder %v3248, 1
        %vm3287 = vcmp.eq.s32.totalorder %v3251, 1
        %vm3288 = vcmp.eq.s32.totalorder %v3254, 1
        %vm3289 = vcmp.eq.s32.totalorder %v3257, 1
        %v3290 = vsel %vm3258, %v2971, %v2938
        %v3291 = vsel %vm3259, %v2973, %v2939
        %v3292 = vsel %vm3260, %v2975, %v2940
        %v3293 = vsel %vm3261, %v2977, %v2941
        %v3294 = vsel %vm3262, %v2979, %v2942
        %v3295 = vsel %vm3263, %v2981, %v2943
        %v3296 = vsel %vm3264, %v2983, %v2944
        %v3297 = vsel %vm3265, %v2985, %v2945
        %v3298 = vsel %vm3266, %v2987, %v2946
        %v3299 = vsel %vm3267, %v2989, %v2947
        %v3300 = vsel %vm3268, %v2991, %v2948
        %v3301 = vsel %vm3269, %v2993, %v2949
        %v3302 = vsel %vm3270, %v2995, %v2950
        %v3303 = vsel %vm3271, %v2997, %v2951
        %v3304 = vsel %vm3272, %v2999, %v2952
        %v3305 = vsel %vm3273, %v3001, %v2953
        %v3306 = vsel %vm3274, %v3003, %v2954
        %v3307 = vsel %vm3275, %v3005, %v2955
        %v3308 = vsel %vm3276, %v3007, %v2956
        %v3309 = vsel %vm3277, %v3009, %v2957
        %v3310 = vsel %vm3278, %v3011, %v2958
        %v3311 = vsel %vm3279, %v3013, %v2959
        %v3312 = vsel %vm3280, %v3015, %v2960
        %v3313 = vsel %vm3281, %v3017, %v2961
        %v3314 = vsel %vm3282, %v3019, %v2962
        %v3315 = vsel %vm3283, %v3021, %v2963
        %v3316 = vsel %vm3284, %v3023, %v2964
        %v3317 = vsel %vm3285, %v3025, %v2965
        %v3318 = vsel %vm3286, %v3027, %v2966
        %v3319 = vsel %vm3287, %v3029, %v2967
        %v3320 = vsel %vm3288, %v3031, %v2968
        %v3321 = vsel %vm3289, %v3033, %v2969
        %3322 = vrot.lane.b32.xlu0 %v3290, 16
        %v3323 = vpop.permute.xlu0 %3322
        %3324 = vrot.lane.b32.xlu0 %v3291, 16
        %v3325 = vpop.permute.xlu0 %3324
        %3326 = vrot.lane.b32.xlu0 %v3292, 16
        %v3327 = vpop.permute.xlu0 %3326
        %3328 = vrot.lane.b32.xlu0 %v3293, 16
        %v3329 = vpop.permute.xlu0 %3328
        %3330 = vrot.lane.b32.xlu0 %v3294, 16
        %v3331 = vpop.permute.xlu0 %3330
        %3332 = vrot.lane.b32.xlu0 %v3295, 16
        %v3333 = vpop.permute.xlu0 %3332
        %3334 = vrot.lane.b32.xlu0 %v3296, 16
        %v3335 = vpop.permute.xlu0 %3334
        %3336 = vrot.lane.b32.xlu0 %v3297, 16
        %v3337 = vpop.permute.xlu0 %3336
        %3338 = vrot.lane.b32.xlu0 %v3298, 16
        %v3339 = vpop.permute.xlu0 %3338
        %3340 = vrot.lane.b32.xlu0 %v3299, 16
        %v3341 = vpop.permute.xlu0 %3340
        %3342 = vrot.lane.b32.xlu0 %v3300, 16
        %v3343 = vpop.permute.xlu0 %3342
        %3344 = vrot.lane.b32.xlu0 %v3301, 16
        %v3345 = vpop.permute.xlu0 %3344
        %3346 = vrot.lane.b32.xlu0 %v3302, 16
        %v3347 = vpop.permute.xlu0 %3346
        %3348 = vrot.lane.b32.xlu0 %v3303, 16
        %v3349 = vpop.permute.xlu0 %3348
        %3350 = vrot.lane.b32.xlu0 %v3304, 16
        %v3351 = vpop.permute.xlu0 %3350
        %3352 = vrot.lane.b32.xlu0 %v3305, 16
        %v3353 = vpop.permute.xlu0 %3352
        %3354 = vrot.lane.b32.xlu0 %v3306, 16
        %v3355 = vpop.permute.xlu0 %3354
        %3356 = vrot.lane.b32.xlu0 %v3307, 16
        %v3357 = vpop.permute.xlu0 %3356
        %3358 = vrot.lane.b32.xlu0 %v3308, 16
        %v3359 = vpop.permute.xlu0 %3358
        %3360 = vrot.lane.b32.xlu0 %v3309, 16
        %v3361 = vpop.permute.xlu0 %3360
        %3362 = vrot.lane.b32.xlu0 %v3310, 16
        %v3363 = vpop.permute.xlu0 %3362
        %3364 = vrot.lane.b32.xlu0 %v3311, 16
        %v3365 = vpop.permute.xlu0 %3364
        %3366 = vrot.lane.b32.xlu0 %v3312, 16
        %v3367 = vpop.permute.xlu0 %3366
        %3368 = vrot.lane.b32.xlu0 %v3313, 16
        %v3369 = vpop.permute.xlu0 %3368
        %3370 = vrot.lane.b32.xlu0 %v3314, 16
        %v3371 = vpop.permute.xlu0 %3370
        %3372 = vrot.lane.b32.xlu0 %v3315, 16
        %v3373 = vpop.permute.xlu0 %3372
        %3374 = vrot.lane.b32.xlu0 %v3316, 16
        %v3375 = vpop.permute.xlu0 %3374
        %3376 = vrot.lane.b32.xlu0 %v3317, 16
        %v3377 = vpop.permute.xlu0 %3376
        %3378 = vrot.lane.b32.xlu0 %v3318, 16
        %v3379 = vpop.permute.xlu0 %3378
        %3380 = vrot.lane.b32.xlu0 %v3319, 16
        %v3381 = vpop.permute.xlu0 %3380
        %3382 = vrot.lane.b32.xlu0 %v3320, 16
        %v3383 = vpop.permute.xlu0 %3382
        %3384 = vrot.lane.b32.xlu0 %v3321, 16
        %v3385 = vpop.permute.xlu0 %3384
        %v3386 = vshra.s32 %v1914, 4
        %v3387 = vshra.s32 %v1915, 4
        %v3388 = vshra.s32 %v1916, 4
        %v3389 = vshra.s32 %v1917, 4
        %v3390 = vshra.s32 %v1918, 4
        %v3391 = vshra.s32 %v1919, 4
        %v3392 = vshra.s32 %v1920, 4
        %v3393 = vshra.s32 %v1921, 4
        %v3394 = vshra.s32 %v1922, 4
        %v3395 = vshra.s32 %v1923, 4
        %v3396 = vshra.s32 %v1924, 4
        %v3397 = vshra.s32 %v1925, 4
        %v3398 = vshra.s32 %v1926, 4
        %v3399 = vshra.s32 %v1927, 4
        %v3400 = vshra.s32 %v1928, 4
        %v3401 = vshra.s32 %v1929, 4
        %v3402 = vshra.s32 %v1930, 4
        %v3403 = vshra.s32 %v1931, 4
        %v3404 = vshra.s32 %v1932, 4
        %v3405 = vshra.s32 %v1933, 4
        %v3406 = vshra.s32 %v1934, 4
        %v3407 = vshra.s32 %v1935, 4
        %v3408 = vshra.s32 %v1936, 4
        %v3409 = vshra.s32 %v1937, 4
        %v3410 = vshra.s32 %v1938, 4
        %v3411 = vshra.s32 %v1939, 4
        %v3412 = vshra.s32 %v1940, 4
        %v3413 = vshra.s32 %v1941, 4
        %v3414 = vshra.s32 %v1942, 4
        %v3415 = vshra.s32 %v1943, 4
        %v3416 = vshra.s32 %v1944, 4
        %v3417 = vshra.s32 %v1945, 4
        %v3418 = vand.u32 %v3386, 1
        %v3419 = vand.u32 %v3387, 1
        %v3420 = vand.u32 %v3388, 1
        %v3421 = vand.u32 %v3389, 1
        %v3422 = vand.u32 %v3390, 1
        %v3423 = vand.u32 %v3391, 1
        %v3424 = vand.u32 %v3392, 1
        %v3425 = vand.u32 %v3393, 1
        %v3426 = vand.u32 %v3394, 1
        %v3427 = vand.u32 %v3395, 1
        %v3428 = vand.u32 %v3396, 1
        %v3429 = vand.u32 %v3397, 1
        %v3430 = vand.u32 %v3398, 1
        %v3431 = vand.u32 %v3399, 1
        %v3432 = vand.u32 %v3400, 1
        %v3433 = vand.u32 %v3401, 1
        %v3434 = vand.u32 %v3402, 1
        %v3435 = vand.u32 %v3403, 1
        %v3436 = vand.u32 %v3404, 1
        %v3437 = vand.u32 %v3405, 1
        %v3438 = vand.u32 %v3406, 1
        %v3439 = vand.u32 %v3407, 1
        %v3440 = vand.u32 %v3408, 1
        %v3441 = vand.u32 %v3409, 1
        %v3442 = vand.u32 %v3410, 1
        %v3443 = vand.u32 %v3411, 1
        %v3444 = vand.u32 %v3412, 1
        %v3445 = vand.u32 %v3413, 1
        %v3446 = vand.u32 %v3414, 1
        %v3447 = vand.u32 %v3415, 1
        %v3448 = vand.u32 %v3416, 1
        %v3449 = vand.u32 %v3417, 1
        %vm3450 = vcmp.gt.s32.totalorder %v3418, 0
        %vm3451 = vcmp.gt.s32.totalorder %v3419, 0
        %vm3452 = vcmp.gt.s32.totalorder %v3420, 0
        %vm3453 = vcmp.gt.s32.totalorder %v3421, 0
        %vm3454 = vcmp.gt.s32.totalorder %v3422, 0
        %vm3455 = vcmp.gt.s32.totalorder %v3423, 0
        %vm3456 = vcmp.gt.s32.totalorder %v3424, 0
        %vm3457 = vcmp.gt.s32.totalorder %v3425, 0
        %vm3458 = vcmp.gt.s32.totalorder %v3426, 0
        %vm3459 = vcmp.gt.s32.totalorder %v3427, 0
        %vm3460 = vcmp.gt.s32.totalorder %v3428, 0
        %vm3461 = vcmp.gt.s32.totalorder %v3429, 0
        %vm3462 = vcmp.gt.s32.totalorder %v3430, 0
        %vm3463 = vcmp.gt.s32.totalorder %v3431, 0
        %vm3464 = vcmp.gt.s32.totalorder %v3432, 0
        %vm3465 = vcmp.gt.s32.totalorder %v3433, 0
        %vm3466 = vcmp.gt.s32.totalorder %v3434, 0
        %vm3467 = vcmp.gt.s32.totalorder %v3435, 0
        %vm3468 = vcmp.gt.s32.totalorder %v3436, 0
        %vm3469 = vcmp.gt.s32.totalorder %v3437, 0
        %vm3470 = vcmp.gt.s32.totalorder %v3438, 0
        %vm3471 = vcmp.gt.s32.totalorder %v3439, 0
        %vm3472 = vcmp.gt.s32.totalorder %v3440, 0
        %vm3473 = vcmp.gt.s32.totalorder %v3441, 0
        %vm3474 = vcmp.gt.s32.totalorder %v3442, 0
        %vm3475 = vcmp.gt.s32.totalorder %v3443, 0
        %vm3476 = vcmp.gt.s32.totalorder %v3444, 0
        %vm3477 = vcmp.gt.s32.totalorder %v3445, 0
        %vm3478 = vcmp.gt.s32.totalorder %v3446, 0
        %vm3479 = vcmp.gt.s32.totalorder %v3447, 0
        %vm3480 = vcmp.gt.s32.totalorder %v3448, 0
        %vm3481 = vcmp.gt.s32.totalorder %v3449, 0
        %v3482 = vsel %vm3450, 1, 0
        %v3483 = vsel %vm3451, 1, 0
        %v3484 = vsel %vm3452, 1, 0
        %v3485 = vsel %vm3453, 1, 0
        %v3486 = vsel %vm3454, 1, 0
        %v3487 = vsel %vm3455, 1, 0
        %v3488 = vsel %vm3456, 1, 0
        %v3489 = vsel %vm3457, 1, 0
        %v3490 = vsel %vm3458, 1, 0
        %v3491 = vsel %vm3459, 1, 0
        %v3492 = vsel %vm3460, 1, 0
        %v3493 = vsel %vm3461, 1, 0
        %v3494 = vsel %vm3462, 1, 0
        %v3495 = vsel %vm3463, 1, 0
        %v3496 = vsel %vm3464, 1, 0
        %v3497 = vsel %vm3465, 1, 0
        %v3498 = vsel %vm3466, 1, 0
        %v3499 = vsel %vm3467, 1, 0
        %v3500 = vsel %vm3468, 1, 0
        %v3501 = vsel %vm3469, 1, 0
        %v3502 = vsel %vm3470, 1, 0
        %v3503 = vsel %vm3471, 1, 0
        %v3504 = vsel %vm3472, 1, 0
        %v3505 = vsel %vm3473, 1, 0
        %v3506 = vsel %vm3474, 1, 0
        %v3507 = vsel %vm3475, 1, 0
        %v3508 = vsel %vm3476, 1, 0
        %v3509 = vsel %vm3477, 1, 0
        %v3510 = vsel %vm3478, 1, 0
        %v3511 = vsel %vm3479, 1, 0
        %v3512 = vsel %vm3480, 1, 0
        %v3513 = vsel %vm3481, 1, 0
        %3514 = vset.pattern.permute.xlu0 0
        %3515 = vperm.xlu0 %3514, %v3482
        %v3516 = vpop.permute.xlu0 %3515
        %3517 = vset.pattern.permute.xlu0 0
        %3518 = vperm.xlu0 %3517, %v3483
        %v3519 = vpop.permute.xlu0 %3518
        %3520 = vset.pattern.permute.xlu0 0
        %3521 = vperm.xlu0 %3520, %v3484
        %v3522 = vpop.permute.xlu0 %3521
        %3523 = vset.pattern.permute.xlu0 0
        %3524 = vperm.xlu0 %3523, %v3485
        %v3525 = vpop.permute.xlu0 %3524
        %3526 = vset.pattern.permute.xlu0 0
        %3527 = vperm.xlu0 %3526, %v3486
        %v3528 = vpop.permute.xlu0 %3527
        %3529 = vset.pattern.permute.xlu0 0
        %3530 = vperm.xlu0 %3529, %v3487
        %v3531 = vpop.permute.xlu0 %3530
        %3532 = vset.pattern.permute.xlu0 0
        %3533 = vperm.xlu0 %3532, %v3488
        %v3534 = vpop.permute.xlu0 %3533
        %3535 = vset.pattern.permute.xlu0 0
        %3536 = vperm.xlu0 %3535, %v3489
        %v3537 = vpop.permute.xlu0 %3536
        %3538 = vset.pattern.permute.xlu0 0
        %3539 = vperm.xlu0 %3538, %v3490
        %v3540 = vpop.permute.xlu0 %3539
        %3541 = vset.pattern.permute.xlu0 0
        %3542 = vperm.xlu0 %3541, %v3491
        %v3543 = vpop.permute.xlu0 %3542
        %3544 = vset.pattern.permute.xlu0 0
        %3545 = vperm.xlu0 %3544, %v3492
        %v3546 = vpop.permute.xlu0 %3545
        %3547 = vset.pattern.permute.xlu0 0
        %3548 = vperm.xlu0 %3547, %v3493
        %v3549 = vpop.permute.xlu0 %3548
        %3550 = vset.pattern.permute.xlu0 0
        %3551 = vperm.xlu0 %3550, %v3494
        %v3552 = vpop.permute.xlu0 %3551
        %3553 = vset.pattern.permute.xlu0 0
        %3554 = vperm.xlu0 %3553, %v3495
        %v3555 = vpop.permute.xlu0 %3554
        %3556 = vset.pattern.permute.xlu0 0
        %3557 = vperm.xlu0 %3556, %v3496
        %v3558 = vpop.permute.xlu0 %3557
        %3559 = vset.pattern.permute.xlu0 0
        %3560 = vperm.xlu0 %3559, %v3497
        %v3561 = vpop.permute.xlu0 %3560
        %3562 = vset.pattern.permute.xlu0 0
        %3563 = vperm.xlu0 %3562, %v3498
        %v3564 = vpop.permute.xlu0 %3563
        %3565 = vset.pattern.permute.xlu0 0
        %3566 = vperm.xlu0 %3565, %v3499
        %v3567 = vpop.permute.xlu0 %3566
        %3568 = vset.pattern.permute.xlu0 0
        %3569 = vperm.xlu0 %3568, %v3500
        %v3570 = vpop.permute.xlu0 %3569
        %3571 = vset.pattern.permute.xlu0 0
        %3572 = vperm.xlu0 %3571, %v3501
        %v3573 = vpop.permute.xlu0 %3572
        %3574 = vset.pattern.permute.xlu0 0
        %3575 = vperm.xlu0 %3574, %v3502
        %v3576 = vpop.permute.xlu0 %3575
        %3577 = vset.pattern.permute.xlu0 0
        %3578 = vperm.xlu0 %3577, %v3503
        %v3579 = vpop.permute.xlu0 %3578
        %3580 = vset.pattern.permute.xlu0 0
        %3581 = vperm.xlu0 %3580, %v3504
        %v3582 = vpop.permute.xlu0 %3581
        %3583 = vset.pattern.permute.xlu0 0
        %3584 = vperm.xlu0 %3583, %v3505
        %v3585 = vpop.permute.xlu0 %3584
        %3586 = vset.pattern.permute.xlu0 0
        %3587 = vperm.xlu0 %3586, %v3506
        %v3588 = vpop.permute.xlu0 %3587
        %3589 = vset.pattern.permute.xlu0 0
        %3590 = vperm.xlu0 %3589, %v3507
        %v3591 = vpop.permute.xlu0 %3590
        %3592 = vset.pattern.permute.xlu0 0
        %3593 = vperm.xlu0 %3592, %v3508
        %v3594 = vpop.permute.xlu0 %3593
        %3595 = vset.pattern.permute.xlu0 0
        %3596 = vperm.xlu0 %3595, %v3509
        %v3597 = vpop.permute.xlu0 %3596
        %3598 = vset.pattern.permute.xlu0 0
        %3599 = vperm.xlu0 %3598, %v3510
        %v3600 = vpop.permute.xlu0 %3599
        %3601 = vset.pattern.permute.xlu0 0
        %3602 = vperm.xlu0 %3601, %v3511
        %v3603 = vpop.permute.xlu0 %3602
        %3604 = vset.pattern.permute.xlu0 0
        %3605 = vperm.xlu0 %3604, %v3512
        %v3606 = vpop.permute.xlu0 %3605
        %3607 = vset.pattern.permute.xlu0 0
        %3608 = vperm.xlu0 %3607, %v3513
        %v3609 = vpop.permute.xlu0 %3608
        %vm3610 = vcmp.eq.s32.totalorder %v3516, 1
        %vm3611 = vcmp.eq.s32.totalorder %v3519, 1
        %vm3612 = vcmp.eq.s32.totalorder %v3522, 1
        %vm3613 = vcmp.eq.s32.totalorder %v3525, 1
        %vm3614 = vcmp.eq.s32.totalorder %v3528, 1
        %vm3615 = vcmp.eq.s32.totalorder %v3531, 1
        %vm3616 = vcmp.eq.s32.totalorder %v3534, 1
        %vm3617 = vcmp.eq.s32.totalorder %v3537, 1
        %vm3618 = vcmp.eq.s32.totalorder %v3540, 1
        %vm3619 = vcmp.eq.s32.totalorder %v3543, 1
        %vm3620 = vcmp.eq.s32.totalorder %v3546, 1
        %vm3621 = vcmp.eq.s32.totalorder %v3549, 1
        %vm3622 = vcmp.eq.s32.totalorder %v3552, 1
        %vm3623 = vcmp.eq.s32.totalorder %v3555, 1
        %vm3624 = vcmp.eq.s32.totalorder %v3558, 1
        %vm3625 = vcmp.eq.s32.totalorder %v3561, 1
        %vm3626 = vcmp.eq.s32.totalorder %v3564, 1
        %vm3627 = vcmp.eq.s32.totalorder %v3567, 1
        %vm3628 = vcmp.eq.s32.totalorder %v3570, 1
        %vm3629 = vcmp.eq.s32.totalorder %v3573, 1
        %vm3630 = vcmp.eq.s32.totalorder %v3576, 1
        %vm3631 = vcmp.eq.s32.totalorder %v3579, 1
        %vm3632 = vcmp.eq.s32.totalorder %v3582, 1
        %vm3633 = vcmp.eq.s32.totalorder %v3585, 1
        %vm3634 = vcmp.eq.s32.totalorder %v3588, 1
        %vm3635 = vcmp.eq.s32.totalorder %v3591, 1
        %vm3636 = vcmp.eq.s32.totalorder %v3594, 1
        %vm3637 = vcmp.eq.s32.totalorder %v3597, 1
        %vm3638 = vcmp.eq.s32.totalorder %v3600, 1
        %vm3639 = vcmp.eq.s32.totalorder %v3603, 1
        %vm3640 = vcmp.eq.s32.totalorder %v3606, 1
        %vm3641 = vcmp.eq.s32.totalorder %v3609, 1
        %v3642 = vsel %vm3610, %v3323, %v3290
        %v3643 = vsel %vm3611, %v3325, %v3291
        %v3644 = vsel %vm3612, %v3327, %v3292
        %v3645 = vsel %vm3613, %v3329, %v3293
        %v3646 = vsel %vm3614, %v3331, %v3294
        %v3647 = vsel %vm3615, %v3333, %v3295
        %v3648 = vsel %vm3616, %v3335, %v3296
        %v3649 = vsel %vm3617, %v3337, %v3297
        %v3650 = vsel %vm3618, %v3339, %v3298
        %v3651 = vsel %vm3619, %v3341, %v3299
        %v3652 = vsel %vm3620, %v3343, %v3300
        %v3653 = vsel %vm3621, %v3345, %v3301
        %v3654 = vsel %vm3622, %v3347, %v3302
        %v3655 = vsel %vm3623, %v3349, %v3303
        %v3656 = vsel %vm3624, %v3351, %v3304
        %v3657 = vsel %vm3625, %v3353, %v3305
        %v3658 = vsel %vm3626, %v3355, %v3306
        %v3659 = vsel %vm3627, %v3357, %v3307
        %v3660 = vsel %vm3628, %v3359, %v3308
        %v3661 = vsel %vm3629, %v3361, %v3309
        %v3662 = vsel %vm3630, %v3363, %v3310
        %v3663 = vsel %vm3631, %v3365, %v3311
        %v3664 = vsel %vm3632, %v3367, %v3312
        %v3665 = vsel %vm3633, %v3369, %v3313
        %v3666 = vsel %vm3634, %v3371, %v3314
        %v3667 = vsel %vm3635, %v3373, %v3315
        %v3668 = vsel %vm3636, %v3375, %v3316
        %v3669 = vsel %vm3637, %v3377, %v3317
        %v3670 = vsel %vm3638, %v3379, %v3318
        %v3671 = vsel %vm3639, %v3381, %v3319
        %v3672 = vsel %vm3640, %v3383, %v3320
        %v3673 = vsel %vm3641, %v3385, %v3321
        %3674 = vrot.lane.b32.xlu0 %v3642, 32
        %v3675 = vpop.permute.xlu0 %3674
        %3676 = vrot.lane.b32.xlu0 %v3643, 32
        %v3677 = vpop.permute.xlu0 %3676
        %3678 = vrot.lane.b32.xlu0 %v3644, 32
        %v3679 = vpop.permute.xlu0 %3678
        %3680 = vrot.lane.b32.xlu0 %v3645, 32
        %v3681 = vpop.permute.xlu0 %3680
        %3682 = vrot.lane.b32.xlu0 %v3646, 32
        %v3683 = vpop.permute.xlu0 %3682
        %3684 = vrot.lane.b32.xlu0 %v3647, 32
        %v3685 = vpop.permute.xlu0 %3684
        %3686 = vrot.lane.b32.xlu0 %v3648, 32
        %v3687 = vpop.permute.xlu0 %3686
        %3688 = vrot.lane.b32.xlu0 %v3649, 32
        %v3689 = vpop.permute.xlu0 %3688
        %3690 = vrot.lane.b32.xlu0 %v3650, 32
        %v3691 = vpop.permute.xlu0 %3690
        %3692 = vrot.lane.b32.xlu0 %v3651, 32
        %v3693 = vpop.permute.xlu0 %3692
        %3694 = vrot.lane.b32.xlu0 %v3652, 32
        %v3695 = vpop.permute.xlu0 %3694
        %3696 = vrot.lane.b32.xlu0 %v3653, 32
        %v3697 = vpop.permute.xlu0 %3696
        %3698 = vrot.lane.b32.xlu0 %v3654, 32
        %v3699 = vpop.permute.xlu0 %3698
        %3700 = vrot.lane.b32.xlu0 %v3655, 32
        %v3701 = vpop.permute.xlu0 %3700
        %3702 = vrot.lane.b32.xlu0 %v3656, 32
        %v3703 = vpop.permute.xlu0 %3702
        %3704 = vrot.lane.b32.xlu0 %v3657, 32
        %v3705 = vpop.permute.xlu0 %3704
        %3706 = vrot.lane.b32.xlu0 %v3658, 32
        %v3707 = vpop.permute.xlu0 %3706
        %3708 = vrot.lane.b32.xlu0 %v3659, 32
        %v3709 = vpop.permute.xlu0 %3708
        %3710 = vrot.lane.b32.xlu0 %v3660, 32
        %v3711 = vpop.permute.xlu0 %3710
        %3712 = vrot.lane.b32.xlu0 %v3661, 32
        %v3713 = vpop.permute.xlu0 %3712
        %3714 = vrot.lane.b32.xlu0 %v3662, 32
        %v3715 = vpop.permute.xlu0 %3714
        %3716 = vrot.lane.b32.xlu0 %v3663, 32
        %v3717 = vpop.permute.xlu0 %3716
        %3718 = vrot.lane.b32.xlu0 %v3664, 32
        %v3719 = vpop.permute.xlu0 %3718
        %3720 = vrot.lane.b32.xlu0 %v3665, 32
        %v3721 = vpop.permute.xlu0 %3720
        %3722 = vrot.lane.b32.xlu0 %v3666, 32
        %v3723 = vpop.permute.xlu0 %3722
        %3724 = vrot.lane.b32.xlu0 %v3667, 32
        %v3725 = vpop.permute.xlu0 %3724
        %3726 = vrot.lane.b32.xlu0 %v3668, 32
        %v3727 = vpop.permute.xlu0 %3726
        %3728 = vrot.lane.b32.xlu0 %v3669, 32
        %v3729 = vpop.permute.xlu0 %3728
        %3730 = vrot.lane.b32.xlu0 %v3670, 32
        %v3731 = vpop.permute.xlu0 %3730
        %3732 = vrot.lane.b32.xlu0 %v3671, 32
        %v3733 = vpop.permute.xlu0 %3732
        %3734 = vrot.lane.b32.xlu0 %v3672, 32
        %v3735 = vpop.permute.xlu0 %3734
        %3736 = vrot.lane.b32.xlu0 %v3673, 32
        %v3737 = vpop.permute.xlu0 %3736
        %v3738 = vshra.s32 %v1914, 5
        %v3739 = vshra.s32 %v1915, 5
        %v3740 = vshra.s32 %v1916, 5
        %v3741 = vshra.s32 %v1917, 5
        %v3742 = vshra.s32 %v1918, 5
        %v3743 = vshra.s32 %v1919, 5
        %v3744 = vshra.s32 %v1920, 5
        %v3745 = vshra.s32 %v1921, 5
        %v3746 = vshra.s32 %v1922, 5
        %v3747 = vshra.s32 %v1923, 5
        %v3748 = vshra.s32 %v1924, 5
        %v3749 = vshra.s32 %v1925, 5
        %v3750 = vshra.s32 %v1926, 5
        %v3751 = vshra.s32 %v1927, 5
        %v3752 = vshra.s32 %v1928, 5
        %v3753 = vshra.s32 %v1929, 5
        %v3754 = vshra.s32 %v1930, 5
        %v3755 = vshra.s32 %v1931, 5
        %v3756 = vshra.s32 %v1932, 5
        %v3757 = vshra.s32 %v1933, 5
        %v3758 = vshra.s32 %v1934, 5
        %v3759 = vshra.s32 %v1935, 5
        %v3760 = vshra.s32 %v1936, 5
        %v3761 = vshra.s32 %v1937, 5
        %v3762 = vshra.s32 %v1938, 5
        %v3763 = vshra.s32 %v1939, 5
        %v3764 = vshra.s32 %v1940, 5
        %v3765 = vshra.s32 %v1941, 5
        %v3766 = vshra.s32 %v1942, 5
        %v3767 = vshra.s32 %v1943, 5
        %v3768 = vshra.s32 %v1944, 5
        %v3769 = vshra.s32 %v1945, 5
        %v3770 = vand.u32 %v3738, 1
        %v3771 = vand.u32 %v3739, 1
        %v3772 = vand.u32 %v3740, 1
        %v3773 = vand.u32 %v3741, 1
        %v3774 = vand.u32 %v3742, 1
        %v3775 = vand.u32 %v3743, 1
        %v3776 = vand.u32 %v3744, 1
        %v3777 = vand.u32 %v3745, 1
        %v3778 = vand.u32 %v3746, 1
        %v3779 = vand.u32 %v3747, 1
        %v3780 = vand.u32 %v3748, 1
        %v3781 = vand.u32 %v3749, 1
        %v3782 = vand.u32 %v3750, 1
        %v3783 = vand.u32 %v3751, 1
        %v3784 = vand.u32 %v3752, 1
        %v3785 = vand.u32 %v3753, 1
        %v3786 = vand.u32 %v3754, 1
        %v3787 = vand.u32 %v3755, 1
        %v3788 = vand.u32 %v3756, 1
        %v3789 = vand.u32 %v3757, 1
        %v3790 = vand.u32 %v3758, 1
        %v3791 = vand.u32 %v3759, 1
        %v3792 = vand.u32 %v3760, 1
        %v3793 = vand.u32 %v3761, 1
        %v3794 = vand.u32 %v3762, 1
        %v3795 = vand.u32 %v3763, 1
        %v3796 = vand.u32 %v3764, 1
        %v3797 = vand.u32 %v3765, 1
        %v3798 = vand.u32 %v3766, 1
        %v3799 = vand.u32 %v3767, 1
        %v3800 = vand.u32 %v3768, 1
        %v3801 = vand.u32 %v3769, 1
        %vm3802 = vcmp.gt.s32.totalorder %v3770, 0
        %vm3803 = vcmp.gt.s32.totalorder %v3771, 0
        %vm3804 = vcmp.gt.s32.totalorder %v3772, 0
        %vm3805 = vcmp.gt.s32.totalorder %v3773, 0
        %vm3806 = vcmp.gt.s32.totalorder %v3774, 0
        %vm3807 = vcmp.gt.s32.totalorder %v3775, 0
        %vm3808 = vcmp.gt.s32.totalorder %v3776, 0
        %vm3809 = vcmp.gt.s32.totalorder %v3777, 0
        %vm3810 = vcmp.gt.s32.totalorder %v3778, 0
        %vm3811 = vcmp.gt.s32.totalorder %v3779, 0
        %vm3812 = vcmp.gt.s32.totalorder %v3780, 0
        %vm3813 = vcmp.gt.s32.totalorder %v3781, 0
        %vm3814 = vcmp.gt.s32.totalorder %v3782, 0
        %vm3815 = vcmp.gt.s32.totalorder %v3783, 0
        %vm3816 = vcmp.gt.s32.totalorder %v3784, 0
        %vm3817 = vcmp.gt.s32.totalorder %v3785, 0
        %vm3818 = vcmp.gt.s32.totalorder %v3786, 0
        %vm3819 = vcmp.gt.s32.totalorder %v3787, 0
        %vm3820 = vcmp.gt.s32.totalorder %v3788, 0
        %vm3821 = vcmp.gt.s32.totalorder %v3789, 0
        %vm3822 = vcmp.gt.s32.totalorder %v3790, 0
        %vm3823 = vcmp.gt.s32.totalorder %v3791, 0
        %vm3824 = vcmp.gt.s32.totalorder %v3792, 0
        %vm3825 = vcmp.gt.s32.totalorder %v3793, 0
        %vm3826 = vcmp.gt.s32.totalorder %v3794, 0
        %vm3827 = vcmp.gt.s32.totalorder %v3795, 0
        %vm3828 = vcmp.gt.s32.totalorder %v3796, 0
        %vm3829 = vcmp.gt.s32.totalorder %v3797, 0
        %vm3830 = vcmp.gt.s32.totalorder %v3798, 0
        %vm3831 = vcmp.gt.s32.totalorder %v3799, 0
        %vm3832 = vcmp.gt.s32.totalorder %v3800, 0
        %vm3833 = vcmp.gt.s32.totalorder %v3801, 0
        %v3834 = vsel %vm3802, 1, 0
        %v3835 = vsel %vm3803, 1, 0
        %v3836 = vsel %vm3804, 1, 0
        %v3837 = vsel %vm3805, 1, 0
        %v3838 = vsel %vm3806, 1, 0
        %v3839 = vsel %vm3807, 1, 0
        %v3840 = vsel %vm3808, 1, 0
        %v3841 = vsel %vm3809, 1, 0
        %v3842 = vsel %vm3810, 1, 0
        %v3843 = vsel %vm3811, 1, 0
        %v3844 = vsel %vm3812, 1, 0
        %v3845 = vsel %vm3813, 1, 0
        %v3846 = vsel %vm3814, 1, 0
        %v3847 = vsel %vm3815, 1, 0
        %v3848 = vsel %vm3816, 1, 0
        %v3849 = vsel %vm3817, 1, 0
        %v3850 = vsel %vm3818, 1, 0
        %v3851 = vsel %vm3819, 1, 0
        %v3852 = vsel %vm3820, 1, 0
        %v3853 = vsel %vm3821, 1, 0
        %v3854 = vsel %vm3822, 1, 0
        %v3855 = vsel %vm3823, 1, 0
        %v3856 = vsel %vm3824, 1, 0
        %v3857 = vsel %vm3825, 1, 0
        %v3858 = vsel %vm3826, 1, 0
        %v3859 = vsel %vm3827, 1, 0
        %v3860 = vsel %vm3828, 1, 0
        %v3861 = vsel %vm3829, 1, 0
        %v3862 = vsel %vm3830, 1, 0
        %v3863 = vsel %vm3831, 1, 0
        %v3864 = vsel %vm3832, 1, 0
        %v3865 = vsel %vm3833, 1, 0
        %3866 = vset.pattern.permute.xlu0 0
        %3867 = vperm.xlu0 %3866, %v3834
        %v3868 = vpop.permute.xlu0 %3867
        %3869 = vset.pattern.permute.xlu0 0
        %3870 = vperm.xlu0 %3869, %v3835
        %v3871 = vpop.permute.xlu0 %3870
        %3872 = vset.pattern.permute.xlu0 0
        %3873 = vperm.xlu0 %3872, %v3836
        %v3874 = vpop.permute.xlu0 %3873
        %3875 = vset.pattern.permute.xlu0 0
        %3876 = vperm.xlu0 %3875, %v3837
        %v3877 = vpop.permute.xlu0 %3876
        %3878 = vset.pattern.permute.xlu0 0
        %3879 = vperm.xlu0 %3878, %v3838
        %v3880 = vpop.permute.xlu0 %3879
        %3881 = vset.pattern.permute.xlu0 0
        %3882 = vperm.xlu0 %3881, %v3839
        %v3883 = vpop.permute.xlu0 %3882
        %3884 = vset.pattern.permute.xlu0 0
        %3885 = vperm.xlu0 %3884, %v3840
        %v3886 = vpop.permute.xlu0 %3885
        %3887 = vset.pattern.permute.xlu0 0
        %3888 = vperm.xlu0 %3887, %v3841
        %v3889 = vpop.permute.xlu0 %3888
        %3890 = vset.pattern.permute.xlu0 0
        %3891 = vperm.xlu0 %3890, %v3842
        %v3892 = vpop.permute.xlu0 %3891
        %3893 = vset.pattern.permute.xlu0 0
        %3894 = vperm.xlu0 %3893, %v3843
        %v3895 = vpop.permute.xlu0 %3894
        %3896 = vset.pattern.permute.xlu0 0
        %3897 = vperm.xlu0 %3896, %v3844
        %v3898 = vpop.permute.xlu0 %3897
        %3899 = vset.pattern.permute.xlu0 0
        %3900 = vperm.xlu0 %3899, %v3845
        %v3901 = vpop.permute.xlu0 %3900
        %3902 = vset.pattern.permute.xlu0 0
        %3903 = vperm.xlu0 %3902, %v3846
        %v3904 = vpop.permute.xlu0 %3903
        %3905 = vset.pattern.permute.xlu0 0
        %3906 = vperm.xlu0 %3905, %v3847
        %v3907 = vpop.permute.xlu0 %3906
        %3908 = vset.pattern.permute.xlu0 0
        %3909 = vperm.xlu0 %3908, %v3848
        %v3910 = vpop.permute.xlu0 %3909
        %3911 = vset.pattern.permute.xlu0 0
        %3912 = vperm.xlu0 %3911, %v3849
        %v3913 = vpop.permute.xlu0 %3912
        %3914 = vset.pattern.permute.xlu0 0
        %3915 = vperm.xlu0 %3914, %v3850
        %v3916 = vpop.permute.xlu0 %3915
        %3917 = vset.pattern.permute.xlu0 0
        %3918 = vperm.xlu0 %3917, %v3851
        %v3919 = vpop.permute.xlu0 %3918
        %3920 = vset.pattern.permute.xlu0 0
        %3921 = vperm.xlu0 %3920, %v3852
        %v3922 = vpop.permute.xlu0 %3921
        %3923 = vset.pattern.permute.xlu0 0
        %3924 = vperm.xlu0 %3923, %v3853
        %v3925 = vpop.permute.xlu0 %3924
        %3926 = vset.pattern.permute.xlu0 0
        %3927 = vperm.xlu0 %3926, %v3854
        %v3928 = vpop.permute.xlu0 %3927
        %3929 = vset.pattern.permute.xlu0 0
        %3930 = vperm.xlu0 %3929, %v3855
        %v3931 = vpop.permute.xlu0 %3930
        %3932 = vset.pattern.permute.xlu0 0
        %3933 = vperm.xlu0 %3932, %v3856
        %v3934 = vpop.permute.xlu0 %3933
        %3935 = vset.pattern.permute.xlu0 0
        %3936 = vperm.xlu0 %3935, %v3857
        %v3937 = vpop.permute.xlu0 %3936
        %3938 = vset.pattern.permute.xlu0 0
        %3939 = vperm.xlu0 %3938, %v3858
        %v3940 = vpop.permute.xlu0 %3939
        %3941 = vset.pattern.permute.xlu0 0
        %3942 = vperm.xlu0 %3941, %v3859
        %v3943 = vpop.permute.xlu0 %3942
        %3944 = vset.pattern.permute.xlu0 0
        %3945 = vperm.xlu0 %3944, %v3860
        %v3946 = vpop.permute.xlu0 %3945
        %3947 = vset.pattern.permute.xlu0 0
        %3948 = vperm.xlu0 %3947, %v3861
        %v3949 = vpop.permute.xlu0 %3948
        %3950 = vset.pattern.permute.xlu0 0
        %3951 = vperm.xlu0 %3950, %v3862
        %v3952 = vpop.permute.xlu0 %3951
        %3953 = vset.pattern.permute.xlu0 0
        %3954 = vperm.xlu0 %3953, %v3863
        %v3955 = vpop.permute.xlu0 %3954
        %3956 = vset.pattern.permute.xlu0 0
        %3957 = vperm.xlu0 %3956, %v3864
        %v3958 = vpop.permute.xlu0 %3957
        %3959 = vset.pattern.permute.xlu0 0
        %3960 = vperm.xlu0 %3959, %v3865
        %v3961 = vpop.permute.xlu0 %3960
        %vm3962 = vcmp.eq.s32.totalorder %v3868, 1
        %vm3963 = vcmp.eq.s32.totalorder %v3871, 1
        %vm3964 = vcmp.eq.s32.totalorder %v3874, 1
        %vm3965 = vcmp.eq.s32.totalorder %v3877, 1
        %vm3966 = vcmp.eq.s32.totalorder %v3880, 1
        %vm3967 = vcmp.eq.s32.totalorder %v3883, 1
        %vm3968 = vcmp.eq.s32.totalorder %v3886, 1
        %vm3969 = vcmp.eq.s32.totalorder %v3889, 1
        %vm3970 = vcmp.eq.s32.totalorder %v3892, 1
        %vm3971 = vcmp.eq.s32.totalorder %v3895, 1
        %vm3972 = vcmp.eq.s32.totalorder %v3898, 1
        %vm3973 = vcmp.eq.s32.totalorder %v3901, 1
        %vm3974 = vcmp.eq.s32.totalorder %v3904, 1
        %vm3975 = vcmp.eq.s32.totalorder %v3907, 1
        %vm3976 = vcmp.eq.s32.totalorder %v3910, 1
        %vm3977 = vcmp.eq.s32.totalorder %v3913, 1
        %vm3978 = vcmp.eq.s32.totalorder %v3916, 1
        %vm3979 = vcmp.eq.s32.totalorder %v3919, 1
        %vm3980 = vcmp.eq.s32.totalorder %v3922, 1
        %vm3981 = vcmp.eq.s32.totalorder %v3925, 1
        %vm3982 = vcmp.eq.s32.totalorder %v3928, 1
        %vm3983 = vcmp.eq.s32.totalorder %v3931, 1
        %vm3984 = vcmp.eq.s32.totalorder %v3934, 1
        %vm3985 = vcmp.eq.s32.totalorder %v3937, 1
        %vm3986 = vcmp.eq.s32.totalorder %v3940, 1
        %vm3987 = vcmp.eq.s32.totalorder %v3943, 1
        %vm3988 = vcmp.eq.s32.totalorder %v3946, 1
        %vm3989 = vcmp.eq.s32.totalorder %v3949, 1
        %vm3990 = vcmp.eq.s32.totalorder %v3952, 1
        %vm3991 = vcmp.eq.s32.totalorder %v3955, 1
        %vm3992 = vcmp.eq.s32.totalorder %v3958, 1
        %vm3993 = vcmp.eq.s32.totalorder %v3961, 1
        %v3994 = vsel %vm3962, %v3675, %v3642
        %v3995 = vsel %vm3963, %v3677, %v3643
        %v3996 = vsel %vm3964, %v3679, %v3644
        %v3997 = vsel %vm3965, %v3681, %v3645
        %v3998 = vsel %vm3966, %v3683, %v3646
        %v3999 = vsel %vm3967, %v3685, %v3647
        %v4000 = vsel %vm3968, %v3687, %v3648
        %v4001 = vsel %vm3969, %v3689, %v3649
        %v4002 = vsel %vm3970, %v3691, %v3650
        %v4003 = vsel %vm3971, %v3693, %v3651
        %v4004 = vsel %vm3972, %v3695, %v3652
        %v4005 = vsel %vm3973, %v3697, %v3653
        %v4006 = vsel %vm3974, %v3699, %v3654
        %v4007 = vsel %vm3975, %v3701, %v3655
        %v4008 = vsel %vm3976, %v3703, %v3656
        %v4009 = vsel %vm3977, %v3705, %v3657
        %v4010 = vsel %vm3978, %v3707, %v3658
        %v4011 = vsel %vm3979, %v3709, %v3659
        %v4012 = vsel %vm3980, %v3711, %v3660
        %v4013 = vsel %vm3981, %v3713, %v3661
        %v4014 = vsel %vm3982, %v3715, %v3662
        %v4015 = vsel %vm3983, %v3717, %v3663
        %v4016 = vsel %vm3984, %v3719, %v3664
        %v4017 = vsel %vm3985, %v3721, %v3665
        %v4018 = vsel %vm3986, %v3723, %v3666
        %v4019 = vsel %vm3987, %v3725, %v3667
        %v4020 = vsel %vm3988, %v3727, %v3668
        %v4021 = vsel %vm3989, %v3729, %v3669
        %v4022 = vsel %vm3990, %v3731, %v3670
        %v4023 = vsel %vm3991, %v3733, %v3671
        %v4024 = vsel %vm3992, %v3735, %v3672
        %v4025 = vsel %vm3993, %v3737, %v3673
        %4026 = vrot.lane.b32.xlu0 %v3994, 64
        %v4027 = vpop.permute.xlu0 %4026
        %4028 = vrot.lane.b32.xlu0 %v3995, 64
        %v4029 = vpop.permute.xlu0 %4028
        %4030 = vrot.lane.b32.xlu0 %v3996, 64
        %v4031 = vpop.permute.xlu0 %4030
        %4032 = vrot.lane.b32.xlu0 %v3997, 64
        %v4033 = vpop.permute.xlu0 %4032
        %4034 = vrot.lane.b32.xlu0 %v3998, 64
        %v4035 = vpop.permute.xlu0 %4034
        %4036 = vrot.lane.b32.xlu0 %v3999, 64
        %v4037 = vpop.permute.xlu0 %4036
        %4038 = vrot.lane.b32.xlu0 %v4000, 64
        %v4039 = vpop.permute.xlu0 %4038
        %4040 = vrot.lane.b32.xlu0 %v4001, 64
        %v4041 = vpop.permute.xlu0 %4040
        %4042 = vrot.lane.b32.xlu0 %v4002, 64
        %v4043 = vpop.permute.xlu0 %4042
        %4044 = vrot.lane.b32.xlu0 %v4003, 64
        %v4045 = vpop.permute.xlu0 %4044
        %4046 = vrot.lane.b32.xlu0 %v4004, 64
        %v4047 = vpop.permute.xlu0 %4046
        %4048 = vrot.lane.b32.xlu0 %v4005, 64
        %v4049 = vpop.permute.xlu0 %4048
        %4050 = vrot.lane.b32.xlu0 %v4006, 64
        %v4051 = vpop.permute.xlu0 %4050
        %4052 = vrot.lane.b32.xlu0 %v4007, 64
        %v4053 = vpop.permute.xlu0 %4052
        %4054 = vrot.lane.b32.xlu0 %v4008, 64
        %v4055 = vpop.permute.xlu0 %4054
        %4056 = vrot.lane.b32.xlu0 %v4009, 64
        %v4057 = vpop.permute.xlu0 %4056
        %4058 = vrot.lane.b32.xlu0 %v4010, 64
        %v4059 = vpop.permute.xlu0 %4058
        %4060 = vrot.lane.b32.xlu0 %v4011, 64
        %v4061 = vpop.permute.xlu0 %4060
        %4062 = vrot.lane.b32.xlu0 %v4012, 64
        %v4063 = vpop.permute.xlu0 %4062
        %4064 = vrot.lane.b32.xlu0 %v4013, 64
        %v4065 = vpop.permute.xlu0 %4064
        %4066 = vrot.lane.b32.xlu0 %v4014, 64
        %v4067 = vpop.permute.xlu0 %4066
        %4068 = vrot.lane.b32.xlu0 %v4015, 64
        %v4069 = vpop.permute.xlu0 %4068
        %4070 = vrot.lane.b32.xlu0 %v4016, 64
        %v4071 = vpop.permute.xlu0 %4070
        %4072 = vrot.lane.b32.xlu0 %v4017, 64
        %v4073 = vpop.permute.xlu0 %4072
        %4074 = vrot.lane.b32.xlu0 %v4018, 64
        %v4075 = vpop.permute.xlu0 %4074
        %4076 = vrot.lane.b32.xlu0 %v4019, 64
        %v4077 = vpop.permute.xlu0 %4076
        %4078 = vrot.lane.b32.xlu0 %v4020, 64
        %v4079 = vpop.permute.xlu0 %4078
        %4080 = vrot.lane.b32.xlu0 %v4021, 64
        %v4081 = vpop.permute.xlu0 %4080
        %4082 = vrot.lane.b32.xlu0 %v4022, 64
        %v4083 = vpop.permute.xlu0 %4082
        %4084 = vrot.lane.b32.xlu0 %v4023, 64
        %v4085 = vpop.permute.xlu0 %4084
        %4086 = vrot.lane.b32.xlu0 %v4024, 64
        %v4087 = vpop.permute.xlu0 %4086
        %4088 = vrot.lane.b32.xlu0 %v4025, 64
        %v4089 = vpop.permute.xlu0 %4088
        %v4090 = vshra.s32 %v1914, 6
        %v4091 = vshra.s32 %v1915, 6
        %v4092 = vshra.s32 %v1916, 6
        %v4093 = vshra.s32 %v1917, 6
        %v4094 = vshra.s32 %v1918, 6
        %v4095 = vshra.s32 %v1919, 6
        %v4096 = vshra.s32 %v1920, 6
        %v4097 = vshra.s32 %v1921, 6
        %v4098 = vshra.s32 %v1922, 6
        %v4099 = vshra.s32 %v1923, 6
        %v4100 = vshra.s32 %v1924, 6
        %v4101 = vshra.s32 %v1925, 6
        %v4102 = vshra.s32 %v1926, 6
        %v4103 = vshra.s32 %v1927, 6
        %v4104 = vshra.s32 %v1928, 6
        %v4105 = vshra.s32 %v1929, 6
        %v4106 = vshra.s32 %v1930, 6
        %v4107 = vshra.s32 %v1931, 6
        %v4108 = vshra.s32 %v1932, 6
        %v4109 = vshra.s32 %v1933, 6
        %v4110 = vshra.s32 %v1934, 6
        %v4111 = vshra.s32 %v1935, 6
        %v4112 = vshra.s32 %v1936, 6
        %v4113 = vshra.s32 %v1937, 6
        %v4114 = vshra.s32 %v1938, 6
        %v4115 = vshra.s32 %v1939, 6
        %v4116 = vshra.s32 %v1940, 6
        %v4117 = vshra.s32 %v1941, 6
        %v4118 = vshra.s32 %v1942, 6
        %v4119 = vshra.s32 %v1943, 6
        %v4120 = vshra.s32 %v1944, 6
        %v4121 = vshra.s32 %v1945, 6
        %v4122 = vand.u32 %v4090, 1
        %v4123 = vand.u32 %v4091, 1
        %v4124 = vand.u32 %v4092, 1
        %v4125 = vand.u32 %v4093, 1
        %v4126 = vand.u32 %v4094, 1
        %v4127 = vand.u32 %v4095, 1
        %v4128 = vand.u32 %v4096, 1
        %v4129 = vand.u32 %v4097, 1
        %v4130 = vand.u32 %v4098, 1
        %v4131 = vand.u32 %v4099, 1
        %v4132 = vand.u32 %v4100, 1
        %v4133 = vand.u32 %v4101, 1
        %v4134 = vand.u32 %v4102, 1
        %v4135 = vand.u32 %v4103, 1
        %v4136 = vand.u32 %v4104, 1
        %v4137 = vand.u32 %v4105, 1
        %v4138 = vand.u32 %v4106, 1
        %v4139 = vand.u32 %v4107, 1
        %v4140 = vand.u32 %v4108, 1
        %v4141 = vand.u32 %v4109, 1
        %v4142 = vand.u32 %v4110, 1
        %v4143 = vand.u32 %v4111, 1
        %v4144 = vand.u32 %v4112, 1
        %v4145 = vand.u32 %v4113, 1
        %v4146 = vand.u32 %v4114, 1
        %v4147 = vand.u32 %v4115, 1
        %v4148 = vand.u32 %v4116, 1
        %v4149 = vand.u32 %v4117, 1
        %v4150 = vand.u32 %v4118, 1
        %v4151 = vand.u32 %v4119, 1
        %v4152 = vand.u32 %v4120, 1
        %v4153 = vand.u32 %v4121, 1
        %vm4154 = vcmp.gt.s32.totalorder %v4122, 0
        %vm4155 = vcmp.gt.s32.totalorder %v4123, 0
        %vm4156 = vcmp.gt.s32.totalorder %v4124, 0
        %vm4157 = vcmp.gt.s32.totalorder %v4125, 0
        %vm4158 = vcmp.gt.s32.totalorder %v4126, 0
        %vm4159 = vcmp.gt.s32.totalorder %v4127, 0
        %vm4160 = vcmp.gt.s32.totalorder %v4128, 0
        %vm4161 = vcmp.gt.s32.totalorder %v4129, 0
        %vm4162 = vcmp.gt.s32.totalorder %v4130, 0
        %vm4163 = vcmp.gt.s32.totalorder %v4131, 0
        %vm4164 = vcmp.gt.s32.totalorder %v4132, 0
        %vm4165 = vcmp.gt.s32.totalorder %v4133, 0
        %vm4166 = vcmp.gt.s32.totalorder %v4134, 0
        %vm4167 = vcmp.gt.s32.totalorder %v4135, 0
        %vm4168 = vcmp.gt.s32.totalorder %v4136, 0
        %vm4169 = vcmp.gt.s32.totalorder %v4137, 0
        %vm4170 = vcmp.gt.s32.totalorder %v4138, 0
        %vm4171 = vcmp.gt.s32.totalorder %v4139, 0
        %vm4172 = vcmp.gt.s32.totalorder %v4140, 0
        %vm4173 = vcmp.gt.s32.totalorder %v4141, 0
        %vm4174 = vcmp.gt.s32.totalorder %v4142, 0
        %vm4175 = vcmp.gt.s32.totalorder %v4143, 0
        %vm4176 = vcmp.gt.s32.totalorder %v4144, 0
        %vm4177 = vcmp.gt.s32.totalorder %v4145, 0
        %vm4178 = vcmp.gt.s32.totalorder %v4146, 0
        %vm4179 = vcmp.gt.s32.totalorder %v4147, 0
        %vm4180 = vcmp.gt.s32.totalorder %v4148, 0
        %vm4181 = vcmp.gt.s32.totalorder %v4149, 0
        %vm4182 = vcmp.gt.s32.totalorder %v4150, 0
        %vm4183 = vcmp.gt.s32.totalorder %v4151, 0
        %vm4184 = vcmp.gt.s32.totalorder %v4152, 0
        %vm4185 = vcmp.gt.s32.totalorder %v4153, 0
        %v4186 = vsel %vm4154, 1, 0
        %v4187 = vsel %vm4155, 1, 0
        %v4188 = vsel %vm4156, 1, 0
        %v4189 = vsel %vm4157, 1, 0
        %v4190 = vsel %vm4158, 1, 0
        %v4191 = vsel %vm4159, 1, 0
        %v4192 = vsel %vm4160, 1, 0
        %v4193 = vsel %vm4161, 1, 0
        %v4194 = vsel %vm4162, 1, 0
        %v4195 = vsel %vm4163, 1, 0
        %v4196 = vsel %vm4164, 1, 0
        %v4197 = vsel %vm4165, 1, 0
        %v4198 = vsel %vm4166, 1, 0
        %v4199 = vsel %vm4167, 1, 0
        %v4200 = vsel %vm4168, 1, 0
        %v4201 = vsel %vm4169, 1, 0
        %v4202 = vsel %vm4170, 1, 0
        %v4203 = vsel %vm4171, 1, 0
        %v4204 = vsel %vm4172, 1, 0
        %v4205 = vsel %vm4173, 1, 0
        %v4206 = vsel %vm4174, 1, 0
        %v4207 = vsel %vm4175, 1, 0
        %v4208 = vsel %vm4176, 1, 0
        %v4209 = vsel %vm4177, 1, 0
        %v4210 = vsel %vm4178, 1, 0
        %v4211 = vsel %vm4179, 1, 0
        %v4212 = vsel %vm4180, 1, 0
        %v4213 = vsel %vm4181, 1, 0
        %v4214 = vsel %vm4182, 1, 0
        %v4215 = vsel %vm4183, 1, 0
        %v4216 = vsel %vm4184, 1, 0
        %v4217 = vsel %vm4185, 1, 0
        %4218 = vset.pattern.permute.xlu0 0
        %4219 = vperm.xlu0 %4218, %v4186
        %v4220 = vpop.permute.xlu0 %4219
        %4221 = vset.pattern.permute.xlu0 0
        %4222 = vperm.xlu0 %4221, %v4187
        %v4223 = vpop.permute.xlu0 %4222
        %4224 = vset.pattern.permute.xlu0 0
        %4225 = vperm.xlu0 %4224, %v4188
        %v4226 = vpop.permute.xlu0 %4225
        %4227 = vset.pattern.permute.xlu0 0
        %4228 = vperm.xlu0 %4227, %v4189
        %v4229 = vpop.permute.xlu0 %4228
        %4230 = vset.pattern.permute.xlu0 0
        %4231 = vperm.xlu0 %4230, %v4190
        %v4232 = vpop.permute.xlu0 %4231
        %4233 = vset.pattern.permute.xlu0 0
        %4234 = vperm.xlu0 %4233, %v4191
        %v4235 = vpop.permute.xlu0 %4234
        %4236 = vset.pattern.permute.xlu0 0
        %4237 = vperm.xlu0 %4236, %v4192
        %v4238 = vpop.permute.xlu0 %4237
        %4239 = vset.pattern.permute.xlu0 0
        %4240 = vperm.xlu0 %4239, %v4193
        %v4241 = vpop.permute.xlu0 %4240
        %4242 = vset.pattern.permute.xlu0 0
        %4243 = vperm.xlu0 %4242, %v4194
        %v4244 = vpop.permute.xlu0 %4243
        %4245 = vset.pattern.permute.xlu0 0
        %4246 = vperm.xlu0 %4245, %v4195
        %v4247 = vpop.permute.xlu0 %4246
        %4248 = vset.pattern.permute.xlu0 0
        %4249 = vperm.xlu0 %4248, %v4196
        %v4250 = vpop.permute.xlu0 %4249
        %4251 = vset.pattern.permute.xlu0 0
        %4252 = vperm.xlu0 %4251, %v4197
        %v4253 = vpop.permute.xlu0 %4252
        %4254 = vset.pattern.permute.xlu0 0
        %4255 = vperm.xlu0 %4254, %v4198
        %v4256 = vpop.permute.xlu0 %4255
        %4257 = vset.pattern.permute.xlu0 0
        %4258 = vperm.xlu0 %4257, %v4199
        %v4259 = vpop.permute.xlu0 %4258
        %4260 = vset.pattern.permute.xlu0 0
        %4261 = vperm.xlu0 %4260, %v4200
        %v4262 = vpop.permute.xlu0 %4261
        %4263 = vset.pattern.permute.xlu0 0
        %4264 = vperm.xlu0 %4263, %v4201
        %v4265 = vpop.permute.xlu0 %4264
        %4266 = vset.pattern.permute.xlu0 0
        %4267 = vperm.xlu0 %4266, %v4202
        %v4268 = vpop.permute.xlu0 %4267
        %4269 = vset.pattern.permute.xlu0 0
        %4270 = vperm.xlu0 %4269, %v4203
        %v4271 = vpop.permute.xlu0 %4270
        %4272 = vset.pattern.permute.xlu0 0
        %4273 = vperm.xlu0 %4272, %v4204
        %v4274 = vpop.permute.xlu0 %4273
        %4275 = vset.pattern.permute.xlu0 0
        %4276 = vperm.xlu0 %4275, %v4205
        %v4277 = vpop.permute.xlu0 %4276
        %4278 = vset.pattern.permute.xlu0 0
        %4279 = vperm.xlu0 %4278, %v4206
        %v4280 = vpop.permute.xlu0 %4279
        %4281 = vset.pattern.permute.xlu0 0
        %4282 = vperm.xlu0 %4281, %v4207
        %v4283 = vpop.permute.xlu0 %4282
        %4284 = vset.pattern.permute.xlu0 0
        %4285 = vperm.xlu0 %4284, %v4208
        %v4286 = vpop.permute.xlu0 %4285
        %4287 = vset.pattern.permute.xlu0 0
        %4288 = vperm.xlu0 %4287, %v4209
        %v4289 = vpop.permute.xlu0 %4288
        %4290 = vset.pattern.permute.xlu0 0
        %4291 = vperm.xlu0 %4290, %v4210
        %v4292 = vpop.permute.xlu0 %4291
        %4293 = vset.pattern.permute.xlu0 0
        %4294 = vperm.xlu0 %4293, %v4211
        %v4295 = vpop.permute.xlu0 %4294
        %4296 = vset.pattern.permute.xlu0 0
        %4297 = vperm.xlu0 %4296, %v4212
        %v4298 = vpop.permute.xlu0 %4297
        %4299 = vset.pattern.permute.xlu0 0
        %4300 = vperm.xlu0 %4299, %v4213
        %v4301 = vpop.permute.xlu0 %4300
        %4302 = vset.pattern.permute.xlu0 0
        %4303 = vperm.xlu0 %4302, %v4214
        %v4304 = vpop.permute.xlu0 %4303
        %4305 = vset.pattern.permute.xlu0 0
        %4306 = vperm.xlu0 %4305, %v4215
        %v4307 = vpop.permute.xlu0 %4306
        %4308 = vset.pattern.permute.xlu0 0
        %4309 = vperm.xlu0 %4308, %v4216
        %v4310 = vpop.permute.xlu0 %4309
        %4311 = vset.pattern.permute.xlu0 0
        %4312 = vperm.xlu0 %4311, %v4217
        %v4313 = vpop.permute.xlu0 %4312
        %vm4314 = vcmp.eq.s32.totalorder %v4220, 1
        %vm4315 = vcmp.eq.s32.totalorder %v4223, 1
        %vm4316 = vcmp.eq.s32.totalorder %v4226, 1
        %vm4317 = vcmp.eq.s32.totalorder %v4229, 1
        %vm4318 = vcmp.eq.s32.totalorder %v4232, 1
        %vm4319 = vcmp.eq.s32.totalorder %v4235, 1
        %vm4320 = vcmp.eq.s32.totalorder %v4238, 1
        %vm4321 = vcmp.eq.s32.totalorder %v4241, 1
        %vm4322 = vcmp.eq.s32.totalorder %v4244, 1
        %vm4323 = vcmp.eq.s32.totalorder %v4247, 1
        %vm4324 = vcmp.eq.s32.totalorder %v4250, 1
        %vm4325 = vcmp.eq.s32.totalorder %v4253, 1
        %vm4326 = vcmp.eq.s32.totalorder %v4256, 1
        %vm4327 = vcmp.eq.s32.totalorder %v4259, 1
        %vm4328 = vcmp.eq.s32.totalorder %v4262, 1
        %vm4329 = vcmp.eq.s32.totalorder %v4265, 1
        %vm4330 = vcmp.eq.s32.totalorder %v4268, 1
        %vm4331 = vcmp.eq.s32.totalorder %v4271, 1
        %vm4332 = vcmp.eq.s32.totalorder %v4274, 1
        %vm4333 = vcmp.eq.s32.totalorder %v4277, 1
        %vm4334 = vcmp.eq.s32.totalorder %v4280, 1
        %vm4335 = vcmp.eq.s32.totalorder %v4283, 1
        %vm4336 = vcmp.eq.s32.totalorder %v4286, 1
        %vm4337 = vcmp.eq.s32.totalorder %v4289, 1
        %vm4338 = vcmp.eq.s32.totalorder %v4292, 1
        %vm4339 = vcmp.eq.s32.totalorder %v4295, 1
        %vm4340 = vcmp.eq.s32.totalorder %v4298, 1
        %vm4341 = vcmp.eq.s32.totalorder %v4301, 1
        %vm4342 = vcmp.eq.s32.totalorder %v4304, 1
        %vm4343 = vcmp.eq.s32.totalorder %v4307, 1
        %vm4344 = vcmp.eq.s32.totalorder %v4310, 1
        %vm4345 = vcmp.eq.s32.totalorder %v4313, 1
        %v4346 = vsel %vm4314, %v4027, %v3994
        %v4347 = vsel %vm4315, %v4029, %v3995
        %v4348 = vsel %vm4316, %v4031, %v3996
        %v4349 = vsel %vm4317, %v4033, %v3997
        %v4350 = vsel %vm4318, %v4035, %v3998
        %v4351 = vsel %vm4319, %v4037, %v3999
        %v4352 = vsel %vm4320, %v4039, %v4000
        %v4353 = vsel %vm4321, %v4041, %v4001
        %v4354 = vsel %vm4322, %v4043, %v4002
        %v4355 = vsel %vm4323, %v4045, %v4003
        %v4356 = vsel %vm4324, %v4047, %v4004
        %v4357 = vsel %vm4325, %v4049, %v4005
        %v4358 = vsel %vm4326, %v4051, %v4006
        %v4359 = vsel %vm4327, %v4053, %v4007
        %v4360 = vsel %vm4328, %v4055, %v4008
        %v4361 = vsel %vm4329, %v4057, %v4009
        %v4362 = vsel %vm4330, %v4059, %v4010
        %v4363 = vsel %vm4331, %v4061, %v4011
        %v4364 = vsel %vm4332, %v4063, %v4012
        %v4365 = vsel %vm4333, %v4065, %v4013
        %v4366 = vsel %vm4334, %v4067, %v4014
        %v4367 = vsel %vm4335, %v4069, %v4015
        %v4368 = vsel %vm4336, %v4071, %v4016
        %v4369 = vsel %vm4337, %v4073, %v4017
        %v4370 = vsel %vm4338, %v4075, %v4018
        %v4371 = vsel %vm4339, %v4077, %v4019
        %v4372 = vsel %vm4340, %v4079, %v4020
        %v4373 = vsel %vm4341, %v4081, %v4021
        %v4374 = vsel %vm4342, %v4083, %v4022
        %v4375 = vsel %vm4343, %v4085, %v4023
        %v4376 = vsel %vm4344, %v4087, %v4024
        %v4377 = vsel %vm4345, %v4089, %v4025
        %4378 = vxpose.xlu0.b32.start [1/16] %v4346, 128
        %4379 = vxpose.xlu0.b32.cont [2/16] %v4347, 128
        %4380 = vxpose.xlu0.b32.cont [3/16] %v4348, 128
        %4381 = vxpose.xlu0.b32.cont [4/16] %v4349, 128
        %4382 = vxpose.xlu0.b32.cont [5/16] %v4350, 128
        %4383 = vxpose.xlu0.b32.cont [6/16] %v4351, 128
        %4384 = vxpose.xlu0.b32.cont [7/16] %v4352, 128
        %4385 = vxpose.xlu0.b32.cont [8/16] %v4353, 128
        %4386 = vxpose.xlu0.b32.cont [9/16] %v4354, 128
        %4387 = vxpose.xlu0.b32.cont [10/16] %v4355, 128
        %4388 = vxpose.xlu0.b32.cont [11/16] %v4356, 128
        %4389 = vxpose.xlu0.b32.cont [12/16] %v4357, 128
        %4390 = vxpose.xlu0.b32.cont [13/16] %v4358, 128
        %4391 = vxpose.xlu0.b32.cont [14/16] %v4359, 128
        %4392 = vxpose.xlu0.b32.cont [15/16] %v4360, 128
        %4393 = vxpose.xlu0.b32.end [16/16] %v4361, 128
        %v4394 = vpop.trf.xlu0
        %v4395 = vpop.trf.xlu0
        %v4396 = vpop.trf.xlu0
        %v4397 = vpop.trf.xlu0
        %v4398 = vpop.trf.xlu0
        %v4399 = vpop.trf.xlu0
        %v4400 = vpop.trf.xlu0
        %v4401 = vpop.trf.xlu0
        %v4402 = vpop.trf.xlu0
        %v4403 = vpop.trf.xlu0
        %v4404 = vpop.trf.xlu0
        %v4405 = vpop.trf.xlu0
        %v4406 = vpop.trf.xlu0
        %v4407 = vpop.trf.xlu0
        %v4408 = vpop.trf.xlu0
        %v4409 = vpop.trf.xlu0
        %4410 = vxpose.xlu0.b32.start [1/16] %v4362, 128
        %4411 = vxpose.xlu0.b32.cont [2/16] %v4363, 128
        %4412 = vxpose.xlu0.b32.cont [3/16] %v4364, 128
        %4413 = vxpose.xlu0.b32.cont [4/16] %v4365, 128
        %4414 = vxpose.xlu0.b32.cont [5/16] %v4366, 128
        %4415 = vxpose.xlu0.b32.cont [6/16] %v4367, 128
        %4416 = vxpose.xlu0.b32.cont [7/16] %v4368, 128
        %4417 = vxpose.xlu0.b32.cont [8/16] %v4369, 128
        %4418 = vxpose.xlu0.b32.cont [9/16] %v4370, 128
        %4419 = vxpose.xlu0.b32.cont [10/16] %v4371, 128
        %4420 = vxpose.xlu0.b32.cont [11/16] %v4372, 128
        %4421 = vxpose.xlu0.b32.cont [12/16] %v4373, 128
        %4422 = vxpose.xlu0.b32.cont [13/16] %v4374, 128
        %4423 = vxpose.xlu0.b32.cont [14/16] %v4375, 128
        %4424 = vxpose.xlu0.b32.cont [15/16] %v4376, 128
        %4425 = vxpose.xlu0.b32.end [16/16] %v4377, 128
        %v4426 = vpop.trf.xlu0
        %v4427 = vpop.trf.xlu0
        %v4428 = vpop.trf.xlu0
        %v4429 = vpop.trf.xlu0
        %v4430 = vpop.trf.xlu0
        %v4431 = vpop.trf.xlu0
        %v4432 = vpop.trf.xlu0
        %v4433 = vpop.trf.xlu0
        %v4434 = vpop.trf.xlu0
        %v4435 = vpop.trf.xlu0
        %v4436 = vpop.trf.xlu0
        %v4437 = vpop.trf.xlu0
        %v4438 = vpop.trf.xlu0
        %v4439 = vpop.trf.xlu0
        %v4440 = vpop.trf.xlu0
        %v4441 = vpop.trf.xlu0
        %4442 = vst [vmem:[%s370] sm:$0xff] %v4394
        %4443 = vst [vmem:[%s370 + $0x8] sm:$0xff] %v4426
        %4444 = vst [vmem:[%s370 + $0x10] sm:$0xff] %v4395
        %4445 = vst [vmem:[%s370 + $0x18] sm:$0xff] %v4427
        %4446 = vst [vmem:[%s370 + $0x20] sm:$0xff] %v4396
        %4447 = vst [vmem:[%s370 + $0x28] sm:$0xff] %v4428
        %4448 = vst [vmem:[%s370 + $0x30] sm:$0xff] %v4397
        %4449 = vst [vmem:[%s370 + $0x38] sm:$0xff] %v4429
        %4450 = vst [vmem:[%s370 + $0x40] sm:$0xff] %v4398
        %4451 = vst [vmem:[%s370 + $0x48] sm:$0xff] %v4430
        %4452 = vst [vmem:[%s370 + $0x50] sm:$0xff] %v4399
        %4453 = vst [vmem:[%s370 + $0x58] sm:$0xff] %v4431
        %4454 = vst [vmem:[%s370 + $0x60] sm:$0xff] %v4400
        %4455 = vst [vmem:[%s370 + $0x68] sm:$0xff] %v4432
        %4456 = vst [vmem:[%s370 + $0x70] sm:$0xff] %v4401
        %4457 = vst [vmem:[%s370 + $0x78] sm:$0xff] %v4433
        %4458 = vst [vmem:[%s370 + $0x80] sm:$0xff] %v4402
        %4459 = vst [vmem:[%s370 + $0x88] sm:$0xff] %v4434
        %4460 = vst [vmem:[%s370 + $0x90] sm:$0xff] %v4403
        %4461 = vst [vmem:[%s370 + $0x98] sm:$0xff] %v4435
        %4462 = vst [vmem:[%s370 + $0xa0] sm:$0xff] %v4404
        %4463 = vst [vmem:[%s370 + $0xa8] sm:$0xff] %v4436
        %4464 = vst [vmem:[%s370 + $0xb0] sm:$0xff] %v4405
        %4465 = vst [vmem:[%s370 + $0xb8] sm:$0xff] %v4437
        %4466 = vst [vmem:[%s370 + $0xc0] sm:$0xff] %v4406
        %4467 = vst [vmem:[%s370 + $0xc8] sm:$0xff] %v4438
        %4468 = vst [vmem:[%s370 + $0xd0] sm:$0xff] %v4407
        %4469 = vst [vmem:[%s370 + $0xd8] sm:$0xff] %v4439
        %4470 = vst [vmem:[%s370 + $0xe0] sm:$0xff] %v4408
        %4471 = vst [vmem:[%s370 + $0xe8] sm:$0xff] %v4440
        %4472 = vst [vmem:[%s370 + $0xf0] sm:$0xff] %v4409
        %4473 = vst [vmem:[%s370 + $0xf8] sm:$0xff] %v4441
        %s4474 = sand.u32 %s246, 1
        %s4475 = scalar_lea.sflag [#allocation5], %s4474
        %s4476 = sand.u32 %s246, 1
        %s4477 = smul.addr %s4476, 256
        %s4478 = scalar_lea.vmem [#allocation6], %s4477
        // Predicated region
        $region61: #{tpu_custom_call.1} parent=55 // pred_check
          %p4479 = pneg %p256
        $region62: #{tpu_custom_call.1} parent=55 // pred_check_branch
          %4481 = sbr.rel (%p4479) target = $region64
        $region63: #{tpu_custom_call.1} parent=55 // pred_region
          %s4482 = smul.u32 2, %s33
          %s4484 = ssub.s32 4096, 4096
          %4485 = vsyncadd %s4475, %s4484
          %s4486 = smul.addr %s32, 32
          %s4487 = sadd.s32 %s4482, %s4486
          %s4488 = smul.addr %s4487, 128
          %s4489 = scalar_lea.hbm %s9, %s4488
          %s4490 = sshll.u32 %s4478, 4
          %s4491 = int_to_ptr.vmem [resolvable:$true] %s4490
          %4496 = dma.vmem_to_hbm [thread:$0]  %s4491, 4096, %s4489, %s4475, 256, 256, 16
        $region64: #{tpu_custom_call.1} parent=55 // pred_fallthru
          _
      $region56: #{tpu_custom_call.1} parent=5 // pred_fallthru
        _
      %p4497 = scmp.le.s32.totalorder 2, %s23
      // Predicated region
      $region65: #{tpu_custom_call.1} parent=5 // pred_check
        %p4498 = pneg %p4497
      $region66: #{tpu_custom_call.1} parent=5 // pred_check_branch
        %4500 = sbr.rel (%p4498) target = $region68
      $region67: #{tpu_custom_call.1} parent=5 // pred_region
        %s4501 = ssub.s32 %s23, 2
        // Predicated region
        $region69: #{tpu_custom_call.1} parent=67 // pred_check
          %p4502 = pneg %p262
        $region70: #{tpu_custom_call.1} parent=67 // pred_check_branch
          %4504 = sbr.rel (%p4502) target = $region72
        $region71: #{tpu_custom_call.1} parent=67 // pred_region
          %s4505 = sand.u32 %s247, 1
          %s4506 = scalar_lea.sflag [#allocation5], %s4505
          %s4507 = sand.u32 %s247, 1
          %s4508 = smul.addr %s4507, 256
          %s4509 = scalar_lea.vmem [#allocation6], %s4508
          %4510 = dma.done %s4506, 4096
        $region72: #{tpu_custom_call.1} parent=67 // pred_fallthru
          _
      $region68: #{tpu_custom_call.1} parent=5 // pred_fallthru
        _
    $region6: #{tpu_custom_call.1} parent=1 // loop_footer
      %s27 = sadd.s32 1, %s23
    $region7: #{tpu_custom_call.1} parent=1 // loop_footer_branch
      %22 = sbr.rel target = $region3
    $region8: #{tpu_custom_call.1} parent=1 // loop_exit
      _
    %4511 = vsyncpa [#allocation4], 1
    %s4512 = scalar_lea.sflag [#allocation4], 1
    %4513 = vsyncpa %s4512, 1
    %4514 = vsyncpa [#allocation5], 1
    %s4515 = scalar_lea.sflag [#allocation5], 1
    %4516 = vsyncpa %s4515, 1

</llo_original>
